<compile_context>
chip_gen: v6e
topology: v6e:2x2x1
jax: 0.10.0
libtpu: 0.0.40
codegen_flags: <defaults>
</compile_context>

<pallas_src>
import functools

import jax
import jax.numpy as jnp
import numpy as np
from jax.experimental import pallas as pl
from jax.experimental.pallas import tpu as pltpu

BN_EPS = 1e-5
MATMUL_DTYPE = jnp.bfloat16      # MXU operand dtype; accumulation stays f32.


def _pick_batch_grid(B):
    """v7x has 2 TensorCores per chip -> split the batch over 2 'parallel'
    grid steps there; single-TC v5e/v6e pay ~0.35us per extra step, so 1."""
    try:
        kind = jax.devices()[0].device_kind.lower()
    except Exception:
        kind = ""
    if "v7" in kind and B % 2 == 0:
        return 2
    return 1


def make_encoder_kernel(K, T, C, maxlen, B_blk):
    KC = K * C
    padl, padr = (K - 1) // 2, K // 2          # global 'same' pad for the bank
    Tpad = T + K - 1
    Tpool = T - 1                               # maxpool(kernel=2, stride=1)
    n1 = maxlen - Tpool                         # F.pad before project1
    p1_lo, p1_hi = n1 // 2, n1 - n1 // 2
    L1 = maxlen - 5 + 1                         # project1 output length
    n2 = maxlen - L1                            # F.pad before bn2 / project2
    p2_lo, p2_hi = n2 // 2, n2 - n2 // 2
    L2 = maxlen - 5 + 1                         # project2 output length
    n3 = maxlen - L2                            # final F.pad
    p3_lo, p3_hi = n3 // 2, n3 - n3 // 2

    def kernel(x_ref, wbank_ref, h1_ref, p1w_ref, h2p1_ref, p2w_ref,
               h2p2_ref, padrow_ref, out_ref, xpad_s, ypad_s, zpad_s):
        # ---- hoisted loads / constant broadcasts (outside the batch unroll;
        #      JAX does not CSE broadcast_in_dim) ----
        wb = [wbank_ref[j] for j in range(K)]       # (KC, C)  bf16, bn1 scale folded
        w1 = [p1w_ref[j] for j in range(5)]         # (C, KC)  bf16, bn2 scale folded
        w2 = [p2w_ref[j] for j in range(5)]         # (C, C)   bf16, bn2 scale folded
        h1 = h1_ref[...]                            # (KC, 1) f32  bn1 shift (+bias)
        h2p1 = h2p1_ref[...]                        # (C, 1)  f32  bn2 shift + p1 bias
        h2p2 = h2p2_ref[...]                        # (C, 1)  f32  bn2 shift + p2 bias
        padcol = padrow_ref[...]                    # (C, 1)  f32  == relu(h2)
        padcol_mm = padcol.astype(MATMUL_DTYPE)

        xz_lo = jnp.zeros((C, padl), MATMUL_DTYPE) if padl else None
        xz_hi = jnp.zeros((C, padr), MATMUL_DTYPE) if padr else None
        yz_lo = jnp.zeros((KC, p1_lo), MATMUL_DTYPE) if p1_lo else None
        yz_hi = jnp.zeros((KC, p1_hi), MATMUL_DTYPE) if p1_hi else None
        zp_lo = jnp.broadcast_to(padcol_mm, (C, p2_lo)) if p2_lo else None
        zp_hi = jnp.broadcast_to(padcol_mm, (C, p2_hi)) if p2_hi else None
        op_lo = jnp.broadcast_to(padcol, (C, p3_lo)) if p3_lo else None
        op_hi = jnp.broadcast_to(padcol, (C, p3_hi)) if p3_hi else None

        for b in range(B_blk):                      # static unroll (B_blk <= 2)
            # ---- 'same'-padded input scratch (channels on sublanes, time on lanes) ----
            if padl:
                xpad_s[b, :, 0:padl] = xz_lo
            xpad_s[b, :, padl:padl + T] = x_ref[b].astype(MATMUL_DTYPE)
            if padr:
                xpad_s[b, :, padl + T:Tpad] = xz_hi

            # ---- conv bank: K per-tap matmuls (all banks packed per tap) ----
            y = jnp.dot(wb[0], xpad_s[b, :, 0:T],
                        preferred_element_type=jnp.float32)
            for j in range(1, K):
                y = y + jnp.dot(wb[j], xpad_s[b, :, j:j + T],
                                preferred_element_type=jnp.float32)
            y = jnp.maximum(y + h1, 0.0)            # bn1 shift (+conv bias) + relu

            # ---- maxpool kernel=2 stride=1 along time ----
            yp = jnp.maximum(y[:, :Tpool], y[:, 1:T])       # (KC, Tpool) f32

            # ---- F.pad(->maxlen): scratch writes, no concatenate ----
            if p1_lo:
                ypad_s[b, :, 0:p1_lo] = yz_lo
            ypad_s[b, :, p1_lo:p1_lo + Tpool] = yp.astype(MATMUL_DTYPE)
            if p1_hi:
                ypad_s[b, :, p1_lo + Tpool:maxlen] = yz_hi

            # ---- project1 (k=5): 5 per-tap matmuls; bn2 scale folded ----
            z = jnp.dot(w1[0], ypad_s[b, :, 0:L1],
                        preferred_element_type=jnp.float32)
            for j in range(1, 5):
                z = z + jnp.dot(w1[j], ypad_s[b, :, j:j + L1],
                                preferred_element_type=jnp.float32)
            z = jnp.maximum(z + h2p1, 0.0)          # bn2 shift + p1 bias + relu

            # ---- F.pad(->maxlen): pad cols == relu(h2) (bn2+relu of zeros) ----
            if p2_lo:
                zpad_s[b, :, 0:p2_lo] = zp_lo
            zpad_s[b, :, p2_lo:p2_lo + L1] = z.astype(MATMUL_DTYPE)
            if p2_hi:
                zpad_s[b, :, p2_lo + L1:maxlen] = zp_hi

            # ---- project2 (k=5): 5 per-tap matmuls; bn2 scale folded ----
            u = jnp.dot(w2[0], zpad_s[b, :, 0:L2],
                        preferred_element_type=jnp.float32)
            for j in range(1, 5):
                u = u + jnp.dot(w2[j], zpad_s[b, :, j:j + L2],
                                preferred_element_type=jnp.float32)
            u = jnp.maximum(u + h2p2, 0.0)          # bn2 shift + p2 bias + relu

            # ---- final F.pad + bn2 + relu: direct NCL slice stores ----
            if p3_lo:
                out_ref[b, :, 0:p3_lo] = op_lo
            out_ref[b, :, p3_lo:p3_lo + L2] = u
            if p3_hi:
                out_ref[b, :, p3_lo + L2:maxlen] = op_hi
        # TODO(synk): if T/maxlen or C ever reach >=128, flatten (maxlen*C) onto
        # lanes so the output stores become unmasked 128-lane vst.

    return kernel


def prepare_params(P, K, C):
    """ONE-TIME host-side folding/packing (numpy). Fold inference-mode BN and
    conv biases into weights/shifts and transpose per-tap weights for the
    channels-on-sublanes kernel layout."""
    KC = K * C
    padl = (K - 1) // 2
    g1 = np.asarray(P['bn1_gamma'], np.float32)
    s1 = g1 / np.sqrt(np.asarray(P['bn1_var'], np.float32) + BN_EPS)       # (KC,)
    h1 = np.asarray(P['bn1_beta'], np.float32) - np.asarray(P['bn1_mean'], np.float32) * s1
    g2 = np.asarray(P['bn2_gamma'], np.float32)
    s2 = g2 / np.sqrt(np.asarray(P['bn2_var'], np.float32) + BN_EPS)       # (C,)
    h2 = np.asarray(P['bn2_beta'], np.float32) - np.asarray(P['bn2_mean'], np.float32) * s2

    # bank biases (banks k>=2, bank 1 has bias=False) applied before bn1 -> fold into h1.
    bias1 = np.concatenate([np.zeros((C,), np.float32)]
                           + [np.asarray(P['bank_b'][i], np.float32).reshape(C)
                              for i in range(K - 1)])
    h1 = (h1 + bias1 * s1).reshape(KC, 1).astype(np.float32)

    # per-tap bank weights, transposed to (K_tap, KC_out, C_in); bn1 scale folded.
    wbankT = np.zeros((K, KC, C), np.float32)
    for kb in range(K):
        ksz = kb + 1
        off = padl - (ksz - 1) // 2                 # align bank's own 'same' pad
        w = np.asarray(P['bank_w'][kb], np.float32)  # (ksz, Cin, Cout)
        for j in range(ksz):
            wbankT[off + j, kb * C:(kb + 1) * C, :] = w[j].T
    wbankT = wbankT * s1[None, :, None]

    # project1: (K, 5, Cin, Cout) -> per-tap transposed (5, Cout, K*Cin); s2 folded.
    p1 = np.asarray(P['p1_w'], np.float32)
    p1T = np.transpose(p1, (1, 3, 0, 2)).reshape(5, C, KC) * s2[None, :, None]
    # project2: (5, Cin, Cout) -> per-tap transposed (5, Cout, Cin); s2 folded.
    p2T = np.transpose(np.asarray(P['p2_w'], np.float32), (0, 2, 1)) * s2[None, :, None]

    h2p1 = (h2 + np.asarray(P['p1_b'], np.float32).reshape(C) * s2).reshape(C, 1)
    h2p2 = (h2 + np.asarray(P['p2_b'], np.float32).reshape(C) * s2).reshape(C, 1)
    padrow = np.maximum(h2, 0.0).reshape(C, 1)      # bn2+relu of F.pad zeros

    return dict(
        wbankT=jnp.asarray(wbankT, MATMUL_DTYPE),
        h1=jnp.asarray(h1, jnp.float32),
        p1T=jnp.asarray(p1T, MATMUL_DTYPE),
        h2p1=jnp.asarray(h2p1.astype(np.float32)),
        p2T=jnp.asarray(p2T, MATMUL_DTYPE),
        h2p2=jnp.asarray(h2p2.astype(np.float32)),
        padrow=jnp.asarray(padrow.astype(np.float32)),
    )


def _const_spec(shape):
    nd = len(shape)
    return pl.BlockSpec(shape, lambda i: (0,) * nd)


def encoder_forward(x_ncl, prep, *, K, maxlen, batch_grid=None):
    """x_ncl: (B, C, T) float32 (PyTorch NCL). Returns (B, C, maxlen) NCL.
    The per-call path is exactly one pallas_call (no wrapper layout ops)."""
    B, C, T = x_ncl.shape
    KC = K * C
    assert maxlen >= T - 1 and maxlen >= 5, (maxlen, T)
    if batch_grid is None:
        batch_grid = _pick_batch_grid(B)
    assert B % batch_grid == 0
    B_blk = B // batch_grid

    kernel = make_encoder_kernel(K, T, C, maxlen, B_blk)
    return pl.pallas_call(
        kernel,
        out_shape=jax.ShapeDtypeStruct((B, C, maxlen), jnp.float32),
        grid=(batch_grid,),
        in_specs=[
            pl.BlockSpec((B_blk, C, T), lambda i: (i, 0, 0)),   # x (NCL)
            _const_spec((K, KC, C)),                            # bank per-tap weights
            _const_spec((KC, 1)),                               # bn1 shift (+biases)
            _const_spec((5, C, KC)),                            # project1 per-tap weights
            _const_spec((C, 1)),                                # bn2 shift + p1 bias
            _const_spec((5, C, C)),                             # project2 per-tap weights
            _const_spec((C, 1)),                                # bn2 shift + p2 bias
            _const_spec((C, 1)),                                # relu(h2) pad column
        ],
        out_specs=pl.BlockSpec((B_blk, C, maxlen), lambda i: (i, 0, 0)),
        scratch_shapes=[
            pltpu.VMEM((B_blk, C, T + K - 1), MATMUL_DTYPE),    # padded input
            pltpu.VMEM((B_blk, KC, maxlen), MATMUL_DTYPE),      # padded maxpool out
            pltpu.VMEM((B_blk, C, maxlen), MATMUL_DTYPE),       # padded bn2(project1)
        ],
        compiler_params=pltpu.CompilerParams(dimension_semantics=("parallel",)),
    )(x_ncl, prep['wbankT'], prep['h1'], prep['p1T'], prep['h2p1'],
      prep['p2T'], prep['h2p2'], prep['padrow'])


def init_params(key, K, C):
    keys = iter(jax.random.split(key, 4 * K + 16))
    P = {}
    # bank weights stored as (k, C_in, C_out); torch layout is (C_out, C_in, k)
    P['bank_w'] = [0.1 * jax.random.normal(next(keys), (k, C, C), jnp.float32)
                   for k in range(1, K + 1)]
    P['bank_b'] = [0.1 * jax.random.normal(next(keys), (1, C), jnp.float32)
                   for _ in range(K - 1)]
    # project1 weight as (K, 5, C_in, C_out) == torch (C_out, K*C_in, 5) regrouped per bank
    P['p1_w'] = 0.1 * jax.random.normal(next(keys), (K, 5, C, C), jnp.float32)
    P['p1_b'] = 0.1 * jax.random.normal(next(keys), (1, C), jnp.float32)
    P['p2_w'] = 0.1 * jax.random.normal(next(keys), (5, C, C), jnp.float32)
    P['p2_b'] = 0.1 * jax.random.normal(next(keys), (1, C), jnp.float32)
    KC = K * C
    P['bn1_gamma'] = 1.0 + 0.1 * jax.random.normal(next(keys), (KC,), jnp.float32)
    P['bn1_beta'] = 0.1 * jax.random.normal(next(keys), (KC,), jnp.float32)
    P['bn1_mean'] = 0.1 * jax.random.normal(next(keys), (KC,), jnp.float32)
    P['bn1_var'] = jnp.abs(1.0 + 0.1 * jax.random.normal(next(keys), (KC,), jnp.float32))
    P['bn2_gamma'] = 1.0 + 0.1 * jax.random.normal(next(keys), (C,), jnp.float32)
    P['bn2_beta'] = 0.1 * jax.random.normal(next(keys), (C,), jnp.float32)
    P['bn2_mean'] = 0.1 * jax.random.normal(next(keys), (C,), jnp.float32)
    P['bn2_var'] = jnp.abs(1.0 + 0.1 * jax.random.normal(next(keys), (C,), jnp.float32))
    return P


def encoder_ref(x_ncl, P, K, maxlen):
    """Pure-JAX f32 reference mirroring the PyTorch forward (inference-mode BN)."""
    B, C, T = x_ncl.shape
    x = jnp.transpose(x_ncl, (0, 2, 1)).astype(jnp.float32)
    outs = []
    for kb in range(K):
        ksz = kb + 1
        plk = (ksz - 1) // 2
        xp = jnp.pad(x, ((0, 0), (plk, ksz - 1 - plk), (0, 0)))
        w = P['bank_w'][kb]
        y = sum(jnp.einsum('btc,cd->btd', xp[:, j:j + T, :], w[j]) for j in range(ksz))
        if ksz >= 2:
            y = y + P['bank_b'][kb - 1]
        outs.append(y)
    y = jnp.concatenate(outs, axis=-1)                              # (B, T, K*C)
    s1 = P['bn1_gamma'] / jnp.sqrt(P['bn1_var'] + BN_EPS)
    y = jnp.maximum((y - P['bn1_mean']) * s1 + P['bn1_beta'], 0.0)
    y = jnp.maximum(y[:, :-1, :], y[:, 1:, :])                      # maxpool 2/1

    def padt(a):
        n = maxlen - a.shape[1]
        return jnp.pad(a, ((0, 0), (n // 2, n - n // 2), (0, 0)))

    y = padt(y)
    L1 = maxlen - 4
    z = jnp.zeros((B, L1, C), jnp.float32)
    for kb in range(K):
        yk = y[:, :, kb * C:(kb + 1) * C]
        for j in range(5):
            z = z + jnp.einsum('btc,cd->btd', yk[:, j:j + L1, :], P['p1_w'][kb, j])
    z = padt(z + P['p1_b'])
    s2 = P['bn2_gamma'] / jnp.sqrt(P['bn2_var'] + BN_EPS)
    z = jnp.maximum((z - P['bn2_mean']) * s2 + P['bn2_beta'], 0.0)
    L2 = maxlen - 4
    u = jnp.zeros((B, L2, C), jnp.float32)
    for j in range(5):
        u = u + jnp.einsum('btc,cd->btd', z[:, j:j + L2, :], P['p2_w'][j])
    u = padt(u + P['p2_b'])
    u = jnp.maximum((u - P['bn2_mean']) * s2 + P['bn2_beta'], 0.0)
    return jnp.transpose(u, (0, 2, 1))


if __name__ == "__main__":
    word_dim = 32
    encoder_num_banks = 4
    C = word_dim // 2        # num_units = 16
    B, T = 2, 16
    maxlen = T               # config.maxlen assumed == input length

    key = jax.random.PRNGKey(0)
    kx, kp = jax.random.split(key)
    x = jax.random.normal(kx, (B, C, T), jnp.float32)   # NCL, as torch Conv1d expects
    params = init_params(kp, encoder_num_banks, C)

    # One-time host-side parameter folding/packing (hoisted off the call path).
    prep = prepare_params(params, encoder_num_banks, C)

    fwd = jax.jit(functools.partial(encoder_forward, K=encoder_num_banks, maxlen=maxlen))
    out = jax.block_until_ready(fwd(x, prep))

    ref = encoder_ref(x, params, encoder_num_banks, maxlen)
    assert out.shape == (B, C, maxlen), out.shape
    # Matmul operands run on the MXU in bf16 (f32 accumulation); compare against
    # the f32 reference with a tolerance covering bf16 rounding.
    np.testing.assert_allclose(np.asarray(out), np.asarray(ref), rtol=5e-2, atol=5e-2)
    print("KERNEL_OK")
</pallas_src>

<mosaic_0001>
module attributes {stable_mosaic.version = 11 : i64} {
  func.func @kernel(%arg0: i32, %arg1: memref<2x16x16xf32, #tpu.memory_space<vmem>>, %arg2: memref<4x64x16xbf16, #tpu.memory_space<vmem>>, %arg3: memref<64x1xf32, #tpu.memory_space<vmem>>, %arg4: memref<5x16x64xbf16, #tpu.memory_space<vmem>>, %arg5: memref<16x1xf32, #tpu.memory_space<vmem>>, %arg6: memref<5x16x16xbf16, #tpu.memory_space<vmem>>, %arg7: memref<16x1xf32, #tpu.memory_space<vmem>>, %arg8: memref<16x1xf32, #tpu.memory_space<vmem>>, %arg9: memref<2x16x16xf32, #tpu.memory_space<vmem>>, %arg10: memref<2x16x19xbf16, #tpu.memory_space<vmem>>, %arg11: memref<2x64x16xbf16, #tpu.memory_space<vmem>>, %arg12: memref<2x16x16xbf16, #tpu.memory_space<vmem>>) attributes {dimension_semantics = [#tpu.dimension_semantics<parallel>], iteration_bounds = array<i64: 1>, scalar_prefetch = 0 : i64, scratch_operands = 3 : i64, tpu.core_type = #tpu.core_type<tc>, window_params = [{transform_indices = @transform_0, window_bounds = array<i64: 2, 16, 16>}, {pipeline_mode = #tpu.pipeline_mode<synchronous>, transform_indices = @transform_1, window_bounds = array<i64: 4, 64, 16>}, {pipeline_mode = #tpu.pipeline_mode<synchronous>, transform_indices = @transform_2, window_bounds = array<i64: 64, 1>}, {pipeline_mode = #tpu.pipeline_mode<synchronous>, transform_indices = @transform_3, window_bounds = array<i64: 5, 16, 64>}, {pipeline_mode = #tpu.pipeline_mode<synchronous>, transform_indices = @transform_4, window_bounds = array<i64: 16, 1>}, {pipeline_mode = #tpu.pipeline_mode<synchronous>, transform_indices = @transform_5, window_bounds = array<i64: 5, 16, 16>}, {pipeline_mode = #tpu.pipeline_mode<synchronous>, transform_indices = @transform_6, window_bounds = array<i64: 16, 1>}, {pipeline_mode = #tpu.pipeline_mode<synchronous>, transform_indices = @transform_7, window_bounds = array<i64: 16, 1>}, {transform_indices = @transform_8, window_bounds = array<i64: 2, 16, 16>}]} {
    %c0 = arith.constant 0 : index
    %c0_0 = arith.constant 0 : index
    %c0_1 = arith.constant 0 : index
    %0 = vector.load %arg2[%c0, %c0_0, %c0_1] : memref<4x64x16xbf16, #tpu.memory_space<vmem>>, vector<1x64x16xbf16>
    %1 = vector.shape_cast %0 : vector<1x64x16xbf16> to vector<64x16xbf16>
    %c1 = arith.constant 1 : index
    %c0_2 = arith.constant 0 : index
    %c0_3 = arith.constant 0 : index
    %2 = vector.load %arg2[%c1, %c0_2, %c0_3] : memref<4x64x16xbf16, #tpu.memory_space<vmem>>, vector<1x64x16xbf16>
    %3 = vector.shape_cast %2 : vector<1x64x16xbf16> to vector<64x16xbf16>
    %c2 = arith.constant 2 : index
    %c0_4 = arith.constant 0 : index
    %c0_5 = arith.constant 0 : index
    %4 = vector.load %arg2[%c2, %c0_4, %c0_5] : memref<4x64x16xbf16, #tpu.memory_space<vmem>>, vector<1x64x16xbf16>
    %5 = vector.shape_cast %4 : vector<1x64x16xbf16> to vector<64x16xbf16>
    %c3 = arith.constant 3 : index
    %c0_6 = arith.constant 0 : index
    %c0_7 = arith.constant 0 : index
    %6 = vector.load %arg2[%c3, %c0_6, %c0_7] : memref<4x64x16xbf16, #tpu.memory_space<vmem>>, vector<1x64x16xbf16>
    %7 = vector.shape_cast %6 : vector<1x64x16xbf16> to vector<64x16xbf16>
    %c0_8 = arith.constant 0 : index
    %c0_9 = arith.constant 0 : index
    %c0_10 = arith.constant 0 : index
    %8 = vector.load %arg4[%c0_8, %c0_9, %c0_10] : memref<5x16x64xbf16, #tpu.memory_space<vmem>>, vector<1x16x64xbf16>
    %9 = vector.shape_cast %8 : vector<1x16x64xbf16> to vector<16x64xbf16>
    %c1_11 = arith.constant 1 : index
    %c0_12 = arith.constant 0 : index
    %c0_13 = arith.constant 0 : index
    %10 = vector.load %arg4[%c1_11, %c0_12, %c0_13] : memref<5x16x64xbf16, #tpu.memory_space<vmem>>, vector<1x16x64xbf16>
    %11 = vector.shape_cast %10 : vector<1x16x64xbf16> to vector<16x64xbf16>
    %c2_14 = arith.constant 2 : index
    %c0_15 = arith.constant 0 : index
    %c0_16 = arith.constant 0 : index
    %12 = vector.load %arg4[%c2_14, %c0_15, %c0_16] : memref<5x16x64xbf16, #tpu.memory_space<vmem>>, vector<1x16x64xbf16>
    %13 = vector.shape_cast %12 : vector<1x16x64xbf16> to vector<16x64xbf16>
    %c3_17 = arith.constant 3 : index
    %c0_18 = arith.constant 0 : index
    %c0_19 = arith.constant 0 : index
    %14 = vector.load %arg4[%c3_17, %c0_18, %c0_19] : memref<5x16x64xbf16, #tpu.memory_space<vmem>>, vector<1x16x64xbf16>
    %15 = vector.shape_cast %14 : vector<1x16x64xbf16> to vector<16x64xbf16>
    %c4 = arith.constant 4 : index
    %c0_20 = arith.constant 0 : index
    %c0_21 = arith.constant 0 : index
    %16 = vector.load %arg4[%c4, %c0_20, %c0_21] : memref<5x16x64xbf16, #tpu.memory_space<vmem>>, vector<1x16x64xbf16>
    %17 = vector.shape_cast %16 : vector<1x16x64xbf16> to vector<16x64xbf16>
    %c0_22 = arith.constant 0 : index
    %c0_23 = arith.constant 0 : index
    %c0_24 = arith.constant 0 : index
    %18 = vector.load %arg6[%c0_22, %c0_23, %c0_24] : memref<5x16x16xbf16, #tpu.memory_space<vmem>>, vector<1x16x16xbf16>
    %19 = vector.shape_cast %18 : vector<1x16x16xbf16> to vector<16x16xbf16>
    %c1_25 = arith.constant 1 : index
    %c0_26 = arith.constant 0 : index
    %c0_27 = arith.constant 0 : index
    %20 = vector.load %arg6[%c1_25, %c0_26, %c0_27] : memref<5x16x16xbf16, #tpu.memory_space<vmem>>, vector<1x16x16xbf16>
    %21 = vector.shape_cast %20 : vector<1x16x16xbf16> to vector<16x16xbf16>
    %c2_28 = arith.constant 2 : index
    %c0_29 = arith.constant 0 : index
    %c0_30 = arith.constant 0 : index
    %22 = vector.load %arg6[%c2_28, %c0_29, %c0_30] : memref<5x16x16xbf16, #tpu.memory_space<vmem>>, vector<1x16x16xbf16>
    %23 = vector.shape_cast %22 : vector<1x16x16xbf16> to vector<16x16xbf16>
    %c3_31 = arith.constant 3 : index
    %c0_32 = arith.constant 0 : index
    %c0_33 = arith.constant 0 : index
    %24 = vector.load %arg6[%c3_31, %c0_32, %c0_33] : memref<5x16x16xbf16, #tpu.memory_space<vmem>>, vector<1x16x16xbf16>
    %25 = vector.shape_cast %24 : vector<1x16x16xbf16> to vector<16x16xbf16>
    %c4_34 = arith.constant 4 : index
    %c0_35 = arith.constant 0 : index
    %c0_36 = arith.constant 0 : index
    %26 = vector.load %arg6[%c4_34, %c0_35, %c0_36] : memref<5x16x16xbf16, #tpu.memory_space<vmem>>, vector<1x16x16xbf16>
    %27 = vector.shape_cast %26 : vector<1x16x16xbf16> to vector<16x16xbf16>
    %c0_37 = arith.constant 0 : index
    %c0_38 = arith.constant 0 : index
    %28 = vector.load %arg3[%c0_37, %c0_38] : memref<64x1xf32, #tpu.memory_space<vmem>>, vector<64x1xf32>
    %c0_39 = arith.constant 0 : index
    %c0_40 = arith.constant 0 : index
    %29 = vector.load %arg5[%c0_39, %c0_40] : memref<16x1xf32, #tpu.memory_space<vmem>>, vector<16x1xf32>
    %c0_41 = arith.constant 0 : index
    %c0_42 = arith.constant 0 : index
    %30 = vector.load %arg7[%c0_41, %c0_42] : memref<16x1xf32, #tpu.memory_space<vmem>>, vector<16x1xf32>
    %c0_43 = arith.constant 0 : index
    %c0_44 = arith.constant 0 : index
    %31 = vector.load %arg8[%c0_43, %c0_44] : memref<16x1xf32, #tpu.memory_space<vmem>>, vector<16x1xf32>
    %32 = arith.truncf %31 : vector<16x1xf32> to vector<16x1xbf16>
    %cst = arith.constant 0.000000e+00 : bf16
    %33 = vector.broadcast %cst : bf16 to vector<16x1xbf16>
    %cst_45 = arith.constant 0.000000e+00 : bf16
    %34 = vector.broadcast %cst_45 : bf16 to vector<16x2xbf16>
    %cst_46 = arith.constant 0.000000e+00 : bf16
    %35 = vector.broadcast %cst_46 : bf16 to vector<64x1xbf16>
    %36 = vector.shape_cast %32 : vector<16x1xbf16> to vector<16x1xbf16>
    %37 = vector.broadcast %36 : vector<16x1xbf16> to vector<16x2xbf16>
    %38 = vector.shape_cast %32 : vector<16x1xbf16> to vector<16x1xbf16>
    %39 = vector.broadcast %38 : vector<16x1xbf16> to vector<16x2xbf16>
    %40 = vector.shape_cast %31 : vector<16x1xf32> to vector<16x1xf32>
    %41 = vector.broadcast %40 : vector<16x1xf32> to vector<16x2xf32>
    %42 = vector.shape_cast %31 : vector<16x1xf32> to vector<16x1xf32>
    %43 = vector.broadcast %42 : vector<16x1xf32> to vector<16x2xf32>
    %c0_47 = arith.constant 0 : index
    %c0_48 = arith.constant 0 : index
    %c0_49 = arith.constant 0 : index
    %44 = vector.load %arg10[%c0_47, %c0_48, %c0_49] : memref<2x16x19xbf16, #tpu.memory_space<vmem>>, vector<1x16x1xbf16>
    %45 = vector.shape_cast %44 : vector<1x16x1xbf16> to vector<16x1xbf16>
    %46 = vector.shape_cast %33 : vector<16x1xbf16> to vector<1x16x1xbf16>
    tpu.vector_store %arg10[%c0_47, %c0_48, %c0_49], %46 {strides = array<i32>} : memref<2x16x19xbf16, #tpu.memory_space<vmem>>, vector<1x16x1xbf16>,
    %c0_50 = arith.constant 0 : index
    %c0_51 = arith.constant 0 : index
    %c0_52 = arith.constant 0 : index
    %47 = vector.load %arg1[%c0_50, %c0_51, %c0_52] : memref<2x16x16xf32, #tpu.memory_space<vmem>>, vector<1x16x16xf32>
    %48 = vector.shape_cast %47 : vector<1x16x16xf32> to vector<16x16xf32>
    %49 = arith.truncf %48 : vector<16x16xf32> to vector<16x16xbf16>
    %c0_53 = arith.constant 0 : index
    %c0_54 = arith.constant 0 : index
    %c1_55 = arith.constant 1 : index
    %50 = vector.load %arg10[%c0_53, %c0_54, %c1_55] : memref<2x16x19xbf16, #tpu.memory_space<vmem>>, vector<1x16x16xbf16>
    %51 = vector.shape_cast %50 : vector<1x16x16xbf16> to vector<16x16xbf16>
    %52 = vector.shape_cast %49 : vector<16x16xbf16> to vector<1x16x16xbf16>
    tpu.vector_store %arg10[%c0_53, %c0_54, %c1_55], %52 {strides = array<i32>} : memref<2x16x19xbf16, #tpu.memory_space<vmem>>, vector<1x16x16xbf16>,
    %c0_56 = arith.constant 0 : index
    %c0_57 = arith.constant 0 : index
    %c17 = arith.constant 17 : index
    %53 = vector.load %arg10[%c0_56, %c0_57, %c17] : memref<2x16x19xbf16, #tpu.memory_space<vmem>>, vector<1x16x2xbf16>
    %54 = vector.shape_cast %53 : vector<1x16x2xbf16> to vector<16x2xbf16>
    %55 = vector.shape_cast %34 : vector<16x2xbf16> to vector<1x16x2xbf16>
    tpu.vector_store %arg10[%c0_56, %c0_57, %c17], %55 {strides = array<i32>} : memref<2x16x19xbf16, #tpu.memory_space<vmem>>, vector<1x16x2xbf16>,
    %c0_58 = arith.constant 0 : index
    %c0_59 = arith.constant 0 : index
    %c0_60 = arith.constant 0 : index
    %56 = vector.load %arg10[%c0_58, %c0_59, %c0_60] : memref<2x16x19xbf16, #tpu.memory_space<vmem>>, vector<1x16x16xbf16>
    %57 = vector.shape_cast %56 : vector<1x16x16xbf16> to vector<16x16xbf16>
    %cst_61 = arith.constant dense<0.000000e+00> : vector<64x16xf32>
    %58 = tpu.matmul %1, %57, %cst_61 {dimension_numbers = #tpu.dot_dimension_numbers<[1], [0], [0], [1], [0, 0, 1, 1], [], []>} : vector<64x16xbf16>, vector<16x16xbf16>, vector<64x16xf32> -> vector<64x16xf32>
    %c0_62 = arith.constant 0 : index
    %c0_63 = arith.constant 0 : index
    %c1_64 = arith.constant 1 : index
    %59 = vector.load %arg10[%c0_62, %c0_63, %c1_64] : memref<2x16x19xbf16, #tpu.memory_space<vmem>>, vector<1x16x16xbf16>
    %60 = vector.shape_cast %59 : vector<1x16x16xbf16> to vector<16x16xbf16>
    %cst_65 = arith.constant dense<0.000000e+00> : vector<64x16xf32>
    %61 = tpu.matmul %3, %60, %cst_65 {dimension_numbers = #tpu.dot_dimension_numbers<[1], [0], [0], [1], [0, 0, 1, 1], [], []>} : vector<64x16xbf16>, vector<16x16xbf16>, vector<64x16xf32> -> vector<64x16xf32>
    %62 = arith.addf %58, %61 : vector<64x16xf32>
    %c0_66 = arith.constant 0 : index
    %c0_67 = arith.constant 0 : index
    %c2_68 = arith.constant 2 : index
    %63 = vector.load %arg10[%c0_66, %c0_67, %c2_68] : memref<2x16x19xbf16, #tpu.memory_space<vmem>>, vector<1x16x16xbf16>
    %64 = vector.shape_cast %63 : vector<1x16x16xbf16> to vector<16x16xbf16>
    %cst_69 = arith.constant dense<0.000000e+00> : vector<64x16xf32>
    %65 = tpu.matmul %5, %64, %cst_69 {dimension_numbers = #tpu.dot_dimension_numbers<[1], [0], [0], [1], [0, 0, 1, 1], [], []>} : vector<64x16xbf16>, vector<16x16xbf16>, vector<64x16xf32> -> vector<64x16xf32>
    %66 = arith.addf %62, %65 : vector<64x16xf32>
    %c0_70 = arith.constant 0 : index
    %c0_71 = arith.constant 0 : index
    %c3_72 = arith.constant 3 : index
    %67 = vector.load %arg10[%c0_70, %c0_71, %c3_72] : memref<2x16x19xbf16, #tpu.memory_space<vmem>>, vector<1x16x16xbf16>
    %68 = vector.shape_cast %67 : vector<1x16x16xbf16> to vector<16x16xbf16>
    %cst_73 = arith.constant dense<0.000000e+00> : vector<64x16xf32>
    %69 = tpu.matmul %7, %68, %cst_73 {dimension_numbers = #tpu.dot_dimension_numbers<[1], [0], [0], [1], [0, 0, 1, 1], [], []>} : vector<64x16xbf16>, vector<16x16xbf16>, vector<64x16xf32> -> vector<64x16xf32>
    %70 = arith.addf %66, %69 : vector<64x16xf32>
    %71 = vector.broadcast %28 : vector<64x1xf32> to vector<64x16xf32>
    %72 = arith.addf %70, %71 : vector<64x16xf32>
    %cst_74 = arith.constant 0.000000e+00 : f32
    %73 = vector.broadcast %cst_74 : f32 to vector<64x16xf32>
    %74 = arith.maximumf %72, %73 : vector<64x16xf32>
    %75 = vector.extract_strided_slice %74 {offsets = [0, 0], sizes = [64, 15], strides = [1, 1]} : vector<64x16xf32> to vector<64x15xf32>
    %76 = vector.extract_strided_slice %74 {offsets = [0, 1], sizes = [64, 15], strides = [1, 1]} : vector<64x16xf32> to vector<64x15xf32>
    %77 = arith.maximumf %75, %76 : vector<64x15xf32>
    %78 = arith.truncf %77 : vector<64x15xf32> to vector<64x15xbf16>
    %c0_75 = arith.constant 0 : index
    %c0_76 = arith.constant 0 : index
    %c0_77 = arith.constant 0 : index
    %79 = vector.load %arg11[%c0_75, %c0_76, %c0_77] : memref<2x64x16xbf16, #tpu.memory_space<vmem>>, vector<1x64x15xbf16>
    %80 = vector.shape_cast %79 : vector<1x64x15xbf16> to vector<64x15xbf16>
    %81 = vector.shape_cast %78 : vector<64x15xbf16> to vector<1x64x15xbf16>
    tpu.vector_store %arg11[%c0_75, %c0_76, %c0_77], %81 {strides = array<i32>} : memref<2x64x16xbf16, #tpu.memory_space<vmem>>, vector<1x64x15xbf16>,
    %c0_78 = arith.constant 0 : index
    %c0_79 = arith.constant 0 : index
    %c15 = arith.constant 15 : index
    %82 = vector.load %arg11[%c0_78, %c0_79, %c15] : memref<2x64x16xbf16, #tpu.memory_space<vmem>>, vector<1x64x1xbf16>
    %83 = vector.shape_cast %82 : vector<1x64x1xbf16> to vector<64x1xbf16>
    %84 = vector.shape_cast %35 : vector<64x1xbf16> to vector<1x64x1xbf16>
    tpu.vector_store %arg11[%c0_78, %c0_79, %c15], %84 {strides = array<i32>} : memref<2x64x16xbf16, #tpu.memory_space<vmem>>, vector<1x64x1xbf16>,
    %c0_80 = arith.constant 0 : index
    %c0_81 = arith.constant 0 : index
    %c0_82 = arith.constant 0 : index
    %85 = vector.load %arg11[%c0_80, %c0_81, %c0_82] : memref<2x64x16xbf16, #tpu.memory_space<vmem>>, vector<1x64x12xbf16>
    %86 = vector.shape_cast %85 : vector<1x64x12xbf16> to vector<64x12xbf16>
    %cst_83 = arith.constant dense<0.000000e+00> : vector<16x12xf32>
    %87 = tpu.matmul %9, %86, %cst_83 {dimension_numbers = #tpu.dot_dimension_numbers<[1], [0], [0], [1], [0, 0, 1, 1], [], []>} : vector<16x64xbf16>, vector<64x12xbf16>, vector<16x12xf32> -> vector<16x12xf32>
    %c0_84 = arith.constant 0 : index
    %c0_85 = arith.constant 0 : index
    %c1_86 = arith.constant 1 : index
    %88 = vector.load %arg11[%c0_84, %c0_85, %c1_86] : memref<2x64x16xbf16, #tpu.memory_space<vmem>>, vector<1x64x12xbf16>
    %89 = vector.shape_cast %88 : vector<1x64x12xbf16> to vector<64x12xbf16>
    %cst_87 = arith.constant dense<0.000000e+00> : vector<16x12xf32>
    %90 = tpu.matmul %11, %89, %cst_87 {dimension_numbers = #tpu.dot_dimension_numbers<[1], [0], [0], [1], [0, 0, 1, 1], [], []>} : vector<16x64xbf16>, vector<64x12xbf16>, vector<16x12xf32> -> vector<16x12xf32>
    %91 = arith.addf %87, %90 : vector<16x12xf32>
    %c0_88 = arith.constant 0 : index
    %c0_89 = arith.constant 0 : index
    %c2_90 = arith.constant 2 : index
    %92 = vector.load %arg11[%c0_88, %c0_89, %c2_90] : memref<2x64x16xbf16, #tpu.memory_space<vmem>>, vector<1x64x12xbf16>
    %93 = vector.shape_cast %92 : vector<1x64x12xbf16> to vector<64x12xbf16>
    %cst_91 = arith.constant dense<0.000000e+00> : vector<16x12xf32>
    %94 = tpu.matmul %13, %93, %cst_91 {dimension_numbers = #tpu.dot_dimension_numbers<[1], [0], [0], [1], [0, 0, 1, 1], [], []>} : vector<16x64xbf16>, vector<64x12xbf16>, vector<16x12xf32> -> vector<16x12xf32>
    %95 = arith.addf %91, %94 : vector<16x12xf32>
    %c0_92 = arith.constant 0 : index
    %c0_93 = arith.constant 0 : index
    %c3_94 = arith.constant 3 : index
    %96 = vector.load %arg11[%c0_92, %c0_93, %c3_94] : memref<2x64x16xbf16, #tpu.memory_space<vmem>>, vector<1x64x12xbf16>
    %97 = vector.shape_cast %96 : vector<1x64x12xbf16> to vector<64x12xbf16>
    %cst_95 = arith.constant dense<0.000000e+00> : vector<16x12xf32>
    %98 = tpu.matmul %15, %97, %cst_95 {dimension_numbers = #tpu.dot_dimension_numbers<[1], [0], [0], [1], [0, 0, 1, 1], [], []>} : vector<16x64xbf16>, vector<64x12xbf16>, vector<16x12xf32> -> vector<16x12xf32>
    %99 = arith.addf %95, %98 : vector<16x12xf32>
    %c0_96 = arith.constant 0 : index
    %c0_97 = arith.constant 0 : index
    %c4_98 = arith.constant 4 : index
    %100 = vector.load %arg11[%c0_96, %c0_97, %c4_98] : memref<2x64x16xbf16, #tpu.memory_space<vmem>>, vector<1x64x12xbf16>
    %101 = vector.shape_cast %100 : vector<1x64x12xbf16> to vector<64x12xbf16>
    %cst_99 = arith.constant dense<0.000000e+00> : vector<16x12xf32>
    %102 = tpu.matmul %17, %101, %cst_99 {dimension_numbers = #tpu.dot_dimension_numbers<[1], [0], [0], [1], [0, 0, 1, 1], [], []>} : vector<16x64xbf16>, vector<64x12xbf16>, vector<16x12xf32> -> vector<16x12xf32>
    %103 = arith.addf %99, %102 : vector<16x12xf32>
    %104 = vector.broadcast %29 : vector<16x1xf32> to vector<16x12xf32>
    %105 = arith.addf %103, %104 : vector<16x12xf32>
    %cst_100 = arith.constant 0.000000e+00 : f32
    %106 = vector.broadcast %cst_100 : f32 to vector<16x12xf32>
    %107 = arith.maximumf %105, %106 : vector<16x12xf32>
    %c0_101 = arith.constant 0 : index
    %c0_102 = arith.constant 0 : index
    %c0_103 = arith.constant 0 : index
    %108 = vector.load %arg12[%c0_101, %c0_102, %c0_103] : memref<2x16x16xbf16, #tpu.memory_space<vmem>>, vector<1x16x2xbf16>
    %109 = vector.shape_cast %108 : vector<1x16x2xbf16> to vector<16x2xbf16>
    %110 = vector.shape_cast %37 : vector<16x2xbf16> to vector<1x16x2xbf16>
    tpu.vector_store %arg12[%c0_101, %c0_102, %c0_103], %110 {strides = array<i32>} : memref<2x16x16xbf16, #tpu.memory_space<vmem>>, vector<1x16x2xbf16>,
    %111 = arith.truncf %107 : vector<16x12xf32> to vector<16x12xbf16>
    %c0_104 = arith.constant 0 : index
    %c0_105 = arith.constant 0 : index
    %c2_106 = arith.constant 2 : index
    %112 = vector.load %arg12[%c0_104, %c0_105, %c2_106] : memref<2x16x16xbf16, #tpu.memory_space<vmem>>, vector<1x16x12xbf16>
    %113 = vector.shape_cast %112 : vector<1x16x12xbf16> to vector<16x12xbf16>
    %114 = vector.shape_cast %111 : vector<16x12xbf16> to vector<1x16x12xbf16>
    tpu.vector_store %arg12[%c0_104, %c0_105, %c2_106], %114 {strides = array<i32>} : memref<2x16x16xbf16, #tpu.memory_space<vmem>>, vector<1x16x12xbf16>,
    %c0_107 = arith.constant 0 : index
    %c0_108 = arith.constant 0 : index
    %c14 = arith.constant 14 : index
    %115 = vector.load %arg12[%c0_107, %c0_108, %c14] : memref<2x16x16xbf16, #tpu.memory_space<vmem>>, vector<1x16x2xbf16>
    %116 = vector.shape_cast %115 : vector<1x16x2xbf16> to vector<16x2xbf16>
    %117 = vector.shape_cast %39 : vector<16x2xbf16> to vector<1x16x2xbf16>
    tpu.vector_store %arg12[%c0_107, %c0_108, %c14], %117 {strides = array<i32>} : memref<2x16x16xbf16, #tpu.memory_space<vmem>>, vector<1x16x2xbf16>,
    %c0_109 = arith.constant 0 : index
    %c0_110 = arith.constant 0 : index
    %c0_111 = arith.constant 0 : index
    %118 = vector.load %arg12[%c0_109, %c0_110, %c0_111] : memref<2x16x16xbf16, #tpu.memory_space<vmem>>, vector<1x16x12xbf16>
    %119 = vector.shape_cast %118 : vector<1x16x12xbf16> to vector<16x12xbf16>
    %cst_112 = arith.constant dense<0.000000e+00> : vector<16x12xf32>
    %120 = tpu.matmul %19, %119, %cst_112 {dimension_numbers = #tpu.dot_dimension_numbers<[1], [0], [0], [1], [0, 0, 1, 1], [], []>} : vector<16x16xbf16>, vector<16x12xbf16>, vector<16x12xf32> -> vector<16x12xf32>
    %c0_113 = arith.constant 0 : index
    %c0_114 = arith.constant 0 : index
    %c1_115 = arith.constant 1 : index
    %121 = vector.load %arg12[%c0_113, %c0_114, %c1_115] : memref<2x16x16xbf16, #tpu.memory_space<vmem>>, vector<1x16x12xbf16>
    %122 = vector.shape_cast %121 : vector<1x16x12xbf16> to vector<16x12xbf16>
    %cst_116 = arith.constant dense<0.000000e+00> : vector<16x12xf32>
    %123 = tpu.matmul %21, %122, %cst_116 {dimension_numbers = #tpu.dot_dimension_numbers<[1], [0], [0], [1], [0, 0, 1, 1], [], []>} : vector<16x16xbf16>, vector<16x12xbf16>, vector<16x12xf32> -> vector<16x12xf32>
    %124 = arith.addf %120, %123 : vector<16x12xf32>
    %c0_117 = arith.constant 0 : index
    %c0_118 = arith.constant 0 : index
    %c2_119 = arith.constant 2 : index
    %125 = vector.load %arg12[%c0_117, %c0_118, %c2_119] : memref<2x16x16xbf16, #tpu.memory_space<vmem>>, vector<1x16x12xbf16>
    %126 = vector.shape_cast %125 : vector<1x16x12xbf16> to vector<16x12xbf16>
    %cst_120 = arith.constant dense<0.000000e+00> : vector<16x12xf32>
    %127 = tpu.matmul %23, %126, %cst_120 {dimension_numbers = #tpu.dot_dimension_numbers<[1], [0], [0], [1], [0, 0, 1, 1], [], []>} : vector<16x16xbf16>, vector<16x12xbf16>, vector<16x12xf32> -> vector<16x12xf32>
    %128 = arith.addf %124, %127 : vector<16x12xf32>
    %c0_121 = arith.constant 0 : index
    %c0_122 = arith.constant 0 : index
    %c3_123 = arith.constant 3 : index
    %129 = vector.load %arg12[%c0_121, %c0_122, %c3_123] : memref<2x16x16xbf16, #tpu.memory_space<vmem>>, vector<1x16x12xbf16>
    %130 = vector.shape_cast %129 : vector<1x16x12xbf16> to vector<16x12xbf16>
    %cst_124 = arith.constant dense<0.000000e+00> : vector<16x12xf32>
    %131 = tpu.matmul %25, %130, %cst_124 {dimension_numbers = #tpu.dot_dimension_numbers<[1], [0], [0], [1], [0, 0, 1, 1], [], []>} : vector<16x16xbf16>, vector<16x12xbf16>, vector<16x12xf32> -> vector<16x12xf32>
    %132 = arith.addf %128, %131 : vector<16x12xf32>
    %c0_125 = arith.constant 0 : index
    %c0_126 = arith.constant 0 : index
    %c4_127 = arith.constant 4 : index
    %133 = vector.load %arg12[%c0_125, %c0_126, %c4_127] : memref<2x16x16xbf16, #tpu.memory_space<vmem>>, vector<1x16x12xbf16>
    %134 = vector.shape_cast %133 : vector<1x16x12xbf16> to vector<16x12xbf16>
    %cst_128 = arith.constant dense<0.000000e+00> : vector<16x12xf32>
    %135 = tpu.matmul %27, %134, %cst_128 {dimension_numbers = #tpu.dot_dimension_numbers<[1], [0], [0], [1], [0, 0, 1, 1], [], []>} : vector<16x16xbf16>, vector<16x12xbf16>, vector<16x12xf32> -> vector<16x12xf32>
    %136 = arith.addf %132, %135 : vector<16x12xf32>
    %137 = vector.broadcast %30 : vector<16x1xf32> to vector<16x12xf32>
    %138 = arith.addf %136, %137 : vector<16x12xf32>
    %cst_129 = arith.constant 0.000000e+00 : f32
    %139 = vector.broadcast %cst_129 : f32 to vector<16x12xf32>
    %140 = arith.maximumf %138, %139 : vector<16x12xf32>
    %c0_130 = arith.constant 0 : index
    %c0_131 = arith.constant 0 : index
    %c0_132 = arith.constant 0 : index
    %141 = vector.load %arg9[%c0_130, %c0_131, %c0_132] : memref<2x16x16xf32, #tpu.memory_space<vmem>>, vector<1x16x2xf32>
    %142 = vector.shape_cast %141 : vector<1x16x2xf32> to vector<16x2xf32>
    %143 = vector.shape_cast %41 : vector<16x2xf32> to vector<1x16x2xf32>
    tpu.vector_store %arg9[%c0_130, %c0_131, %c0_132], %143 {strides = array<i32>} : memref<2x16x16xf32, #tpu.memory_space<vmem>>, vector<1x16x2xf32>,
    %c0_133 = arith.constant 0 : index
    %c0_134 = arith.constant 0 : index
    %c2_135 = arith.constant 2 : index
    %144 = vector.load %arg9[%c0_133, %c0_134, %c2_135] : memref<2x16x16xf32, #tpu.memory_space<vmem>>, vector<1x16x12xf32>
    %145 = vector.shape_cast %144 : vector<1x16x12xf32> to vector<16x12xf32>
    %146 = vector.shape_cast %140 : vector<16x12xf32> to vector<1x16x12xf32>
    tpu.vector_store %arg9[%c0_133, %c0_134, %c2_135], %146 {strides = array<i32>} : memref<2x16x16xf32, #tpu.memory_space<vmem>>, vector<1x16x12xf32>,
    %c0_136 = arith.constant 0 : index
    %c0_137 = arith.constant 0 : index
    %c14_138 = arith.constant 14 : index
    %147 = vector.load %arg9[%c0_136, %c0_137, %c14_138] : memref<2x16x16xf32, #tpu.memory_space<vmem>>, vector<1x16x2xf32>
    %148 = vector.shape_cast %147 : vector<1x16x2xf32> to vector<16x2xf32>
    %149 = vector.shape_cast %43 : vector<16x2xf32> to vector<1x16x2xf32>
    tpu.vector_store %arg9[%c0_136, %c0_137, %c14_138], %149 {strides = array<i32>} : memref<2x16x16xf32, #tpu.memory_space<vmem>>, vector<1x16x2xf32>,
    %c1_139 = arith.constant 1 : index
    %c0_140 = arith.constant 0 : index
    %c0_141 = arith.constant 0 : index
    %150 = vector.load %arg10[%c1_139, %c0_140, %c0_141] : memref<2x16x19xbf16, #tpu.memory_space<vmem>>, vector<1x16x1xbf16>
    %151 = vector.shape_cast %150 : vector<1x16x1xbf16> to vector<16x1xbf16>
    %152 = vector.shape_cast %33 : vector<16x1xbf16> to vector<1x16x1xbf16>
    tpu.vector_store %arg10[%c1_139, %c0_140, %c0_141], %152 {strides = array<i32>} : memref<2x16x19xbf16, #tpu.memory_space<vmem>>, vector<1x16x1xbf16>,
    %c1_142 = arith.constant 1 : index
    %c0_143 = arith.constant 0 : index
    %c0_144 = arith.constant 0 : index
    %153 = vector.load %arg1[%c1_142, %c0_143, %c0_144] : memref<2x16x16xf32, #tpu.memory_space<vmem>>, vector<1x16x16xf32>
    %154 = vector.shape_cast %153 : vector<1x16x16xf32> to vector<16x16xf32>
    %155 = arith.truncf %154 : vector<16x16xf32> to vector<16x16xbf16>
    %c1_145 = arith.constant 1 : index
    %c0_146 = arith.constant 0 : index
    %c1_147 = arith.constant 1 : index
    %156 = vector.load %arg10[%c1_145, %c0_146, %c1_147] : memref<2x16x19xbf16, #tpu.memory_space<vmem>>, vector<1x16x16xbf16>
    %157 = vector.shape_cast %156 : vector<1x16x16xbf16> to vector<16x16xbf16>
    %158 = vector.shape_cast %155 : vector<16x16xbf16> to vector<1x16x16xbf16>
    tpu.vector_store %arg10[%c1_145, %c0_146, %c1_147], %158 {strides = array<i32>} : memref<2x16x19xbf16, #tpu.memory_space<vmem>>, vector<1x16x16xbf16>,
    %c1_148 = arith.constant 1 : index
    %c0_149 = arith.constant 0 : index
    %c17_150 = arith.constant 17 : index
    %159 = vector.load %arg10[%c1_148, %c0_149, %c17_150] : memref<2x16x19xbf16, #tpu.memory_space<vmem>>, vector<1x16x2xbf16>
    %160 = vector.shape_cast %159 : vector<1x16x2xbf16> to vector<16x2xbf16>
    %161 = vector.shape_cast %34 : vector<16x2xbf16> to vector<1x16x2xbf16>
    tpu.vector_store %arg10[%c1_148, %c0_149, %c17_150], %161 {strides = array<i32>} : memref<2x16x19xbf16, #tpu.memory_space<vmem>>, vector<1x16x2xbf16>,
    %c1_151 = arith.constant 1 : index
    %c0_152 = arith.constant 0 : index
    %c0_153 = arith.constant 0 : index
    %162 = vector.load %arg10[%c1_151, %c0_152, %c0_153] : memref<2x16x19xbf16, #tpu.memory_space<vmem>>, vector<1x16x16xbf16>
    %163 = vector.shape_cast %162 : vector<1x16x16xbf16> to vector<16x16xbf16>
    %cst_154 = arith.constant dense<0.000000e+00> : vector<64x16xf32>
    %164 = tpu.matmul %1, %163, %cst_154 {dimension_numbers = #tpu.dot_dimension_numbers<[1], [0], [0], [1], [0, 0, 1, 1], [], []>} : vector<64x16xbf16>, vector<16x16xbf16>, vector<64x16xf32> -> vector<64x16xf32>
    %c1_155 = arith.constant 1 : index
    %c0_156 = arith.constant 0 : index
    %c1_157 = arith.constant 1 : index
    %165 = vector.load %arg10[%c1_155, %c0_156, %c1_157] : memref<2x16x19xbf16, #tpu.memory_space<vmem>>, vector<1x16x16xbf16>
    %166 = vector.shape_cast %165 : vector<1x16x16xbf16> to vector<16x16xbf16>
    %cst_158 = arith.constant dense<0.000000e+00> : vector<64x16xf32>
    %167 = tpu.matmul %3, %166, %cst_158 {dimension_numbers = #tpu.dot_dimension_numbers<[1], [0], [0], [1], [0, 0, 1, 1], [], []>} : vector<64x16xbf16>, vector<16x16xbf16>, vector<64x16xf32> -> vector<64x16xf32>
    %168 = arith.addf %164, %167 : vector<64x16xf32>
    %c1_159 = arith.constant 1 : index
    %c0_160 = arith.constant 0 : index
    %c2_161 = arith.constant 2 : index
    %169 = vector.load %arg10[%c1_159, %c0_160, %c2_161] : memref<2x16x19xbf16, #tpu.memory_space<vmem>>, vector<1x16x16xbf16>
    %170 = vector.shape_cast %169 : vector<1x16x16xbf16> to vector<16x16xbf16>
    %cst_162 = arith.constant dense<0.000000e+00> : vector<64x16xf32>
    %171 = tpu.matmul %5, %170, %cst_162 {dimension_numbers = #tpu.dot_dimension_numbers<[1], [0], [0], [1], [0, 0, 1, 1], [], []>} : vector<64x16xbf16>, vector<16x16xbf16>, vector<64x16xf32> -> vector<64x16xf32>
    %172 = arith.addf %168, %171 : vector<64x16xf32>
    %c1_163 = arith.constant 1 : index
    %c0_164 = arith.constant 0 : index
    %c3_165 = arith.constant 3 : index
    %173 = vector.load %arg10[%c1_163, %c0_164, %c3_165] : memref<2x16x19xbf16, #tpu.memory_space<vmem>>, vector<1x16x16xbf16>
    %174 = vector.shape_cast %173 : vector<1x16x16xbf16> to vector<16x16xbf16>
    %cst_166 = arith.constant dense<0.000000e+00> : vector<64x16xf32>
    %175 = tpu.matmul %7, %174, %cst_166 {dimension_numbers = #tpu.dot_dimension_numbers<[1], [0], [0], [1], [0, 0, 1, 1], [], []>} : vector<64x16xbf16>, vector<16x16xbf16>, vector<64x16xf32> -> vector<64x16xf32>
    %176 = arith.addf %172, %175 : vector<64x16xf32>
    %177 = vector.broadcast %28 : vector<64x1xf32> to vector<64x16xf32>
    %178 = arith.addf %176, %177 : vector<64x16xf32>
    %cst_167 = arith.constant 0.000000e+00 : f32
    %179 = vector.broadcast %cst_167 : f32 to vector<64x16xf32>
    %180 = arith.maximumf %178, %179 : vector<64x16xf32>
    %181 = vector.extract_strided_slice %180 {offsets = [0, 0], sizes = [64, 15], strides = [1, 1]} : vector<64x16xf32> to vector<64x15xf32>
    %182 = vector.extract_strided_slice %180 {offsets = [0, 1], sizes = [64, 15], strides = [1, 1]} : vector<64x16xf32> to vector<64x15xf32>
    %183 = arith.maximumf %181, %182 : vector<64x15xf32>
    %184 = arith.truncf %183 : vector<64x15xf32> to vector<64x15xbf16>
    %c1_168 = arith.constant 1 : index
    %c0_169 = arith.constant 0 : index
    %c0_170 = arith.constant 0 : index
    %185 = vector.load %arg11[%c1_168, %c0_169, %c0_170] : memref<2x64x16xbf16, #tpu.memory_space<vmem>>, vector<1x64x15xbf16>
    %186 = vector.shape_cast %185 : vector<1x64x15xbf16> to vector<64x15xbf16>
    %187 = vector.shape_cast %184 : vector<64x15xbf16> to vector<1x64x15xbf16>
    tpu.vector_store %arg11[%c1_168, %c0_169, %c0_170], %187 {strides = array<i32>} : memref<2x64x16xbf16, #tpu.memory_space<vmem>>, vector<1x64x15xbf16>,
    %c1_171 = arith.constant 1 : index
    %c0_172 = arith.constant 0 : index
    %c15_173 = arith.constant 15 : index
    %188 = vector.load %arg11[%c1_171, %c0_172, %c15_173] : memref<2x64x16xbf16, #tpu.memory_space<vmem>>, vector<1x64x1xbf16>
    %189 = vector.shape_cast %188 : vector<1x64x1xbf16> to vector<64x1xbf16>
    %190 = vector.shape_cast %35 : vector<64x1xbf16> to vector<1x64x1xbf16>
    tpu.vector_store %arg11[%c1_171, %c0_172, %c15_173], %190 {strides = array<i32>} : memref<2x64x16xbf16, #tpu.memory_space<vmem>>, vector<1x64x1xbf16>,
    %c1_174 = arith.constant 1 : index
    %c0_175 = arith.constant 0 : index
    %c0_176 = arith.constant 0 : index
    %191 = vector.load %arg11[%c1_174, %c0_175, %c0_176] : memref<2x64x16xbf16, #tpu.memory_space<vmem>>, vector<1x64x12xbf16>
    %192 = vector.shape_cast %191 : vector<1x64x12xbf16> to vector<64x12xbf16>
    %cst_177 = arith.constant dense<0.000000e+00> : vector<16x12xf32>
    %193 = tpu.matmul %9, %192, %cst_177 {dimension_numbers = #tpu.dot_dimension_numbers<[1], [0], [0], [1], [0, 0, 1, 1], [], []>} : vector<16x64xbf16>, vector<64x12xbf16>, vector<16x12xf32> -> vector<16x12xf32>
    %c1_178 = arith.constant 1 : index
    %c0_179 = arith.constant 0 : index
    %c1_180 = arith.constant 1 : index
    %194 = vector.load %arg11[%c1_178, %c0_179, %c1_180] : memref<2x64x16xbf16, #tpu.memory_space<vmem>>, vector<1x64x12xbf16>
    %195 = vector.shape_cast %194 : vector<1x64x12xbf16> to vector<64x12xbf16>
    %cst_181 = arith.constant dense<0.000000e+00> : vector<16x12xf32>
    %196 = tpu.matmul %11, %195, %cst_181 {dimension_numbers = #tpu.dot_dimension_numbers<[1], [0], [0], [1], [0, 0, 1, 1], [], []>} : vector<16x64xbf16>, vector<64x12xbf16>, vector<16x12xf32> -> vector<16x12xf32>
    %197 = arith.addf %193, %196 : vector<16x12xf32>
    %c1_182 = arith.constant 1 : index
    %c0_183 = arith.constant 0 : index
    %c2_184 = arith.constant 2 : index
    %198 = vector.load %arg11[%c1_182, %c0_183, %c2_184] : memref<2x64x16xbf16, #tpu.memory_space<vmem>>, vector<1x64x12xbf16>
    %199 = vector.shape_cast %198 : vector<1x64x12xbf16> to vector<64x12xbf16>
    %cst_185 = arith.constant dense<0.000000e+00> : vector<16x12xf32>
    %200 = tpu.matmul %13, %199, %cst_185 {dimension_numbers = #tpu.dot_dimension_numbers<[1], [0], [0], [1], [0, 0, 1, 1], [], []>} : vector<16x64xbf16>, vector<64x12xbf16>, vector<16x12xf32> -> vector<16x12xf32>
    %201 = arith.addf %197, %200 : vector<16x12xf32>
    %c1_186 = arith.constant 1 : index
    %c0_187 = arith.constant 0 : index
    %c3_188 = arith.constant 3 : index
    %202 = vector.load %arg11[%c1_186, %c0_187, %c3_188] : memref<2x64x16xbf16, #tpu.memory_space<vmem>>, vector<1x64x12xbf16>
    %203 = vector.shape_cast %202 : vector<1x64x12xbf16> to vector<64x12xbf16>
    %cst_189 = arith.constant dense<0.000000e+00> : vector<16x12xf32>
    %204 = tpu.matmul %15, %203, %cst_189 {dimension_numbers = #tpu.dot_dimension_numbers<[1], [0], [0], [1], [0, 0, 1, 1], [], []>} : vector<16x64xbf16>, vector<64x12xbf16>, vector<16x12xf32> -> vector<16x12xf32>
    %205 = arith.addf %201, %204 : vector<16x12xf32>
    %c1_190 = arith.constant 1 : index
    %c0_191 = arith.constant 0 : index
    %c4_192 = arith.constant 4 : index
    %206 = vector.load %arg11[%c1_190, %c0_191, %c4_192] : memref<2x64x16xbf16, #tpu.memory_space<vmem>>, vector<1x64x12xbf16>
    %207 = vector.shape_cast %206 : vector<1x64x12xbf16> to vector<64x12xbf16>
    %cst_193 = arith.constant dense<0.000000e+00> : vector<16x12xf32>
    %208 = tpu.matmul %17, %207, %cst_193 {dimension_numbers = #tpu.dot_dimension_numbers<[1], [0], [0], [1], [0, 0, 1, 1], [], []>} : vector<16x64xbf16>, vector<64x12xbf16>, vector<16x12xf32> -> vector<16x12xf32>
    %209 = arith.addf %205, %208 : vector<16x12xf32>
    %210 = vector.broadcast %29 : vector<16x1xf32> to vector<16x12xf32>
    %211 = arith.addf %209, %210 : vector<16x12xf32>
    %cst_194 = arith.constant 0.000000e+00 : f32
    %212 = vector.broadcast %cst_194 : f32 to vector<16x12xf32>
    %213 = arith.maximumf %211, %212 : vector<16x12xf32>
    %c1_195 = arith.constant 1 : index
    %c0_196 = arith.constant 0 : index
    %c0_197 = arith.constant 0 : index
    %214 = vector.load %arg12[%c1_195, %c0_196, %c0_197] : memref<2x16x16xbf16, #tpu.memory_space<vmem>>, vector<1x16x2xbf16>
    %215 = vector.shape_cast %214 : vector<1x16x2xbf16> to vector<16x2xbf16>
    %216 = vector.shape_cast %37 : vector<16x2xbf16> to vector<1x16x2xbf16>
    tpu.vector_store %arg12[%c1_195, %c0_196, %c0_197], %216 {strides = array<i32>} : memref<2x16x16xbf16, #tpu.memory_space<vmem>>, vector<1x16x2xbf16>,
    %217 = arith.truncf %213 : vector<16x12xf32> to vector<16x12xbf16>
    %c1_198 = arith.constant 1 : index
    %c0_199 = arith.constant 0 : index
    %c2_200 = arith.constant 2 : index
    %218 = vector.load %arg12[%c1_198, %c0_199, %c2_200] : memref<2x16x16xbf16, #tpu.memory_space<vmem>>, vector<1x16x12xbf16>
    %219 = vector.shape_cast %218 : vector<1x16x12xbf16> to vector<16x12xbf16>
    %220 = vector.shape_cast %217 : vector<16x12xbf16> to vector<1x16x12xbf16>
    tpu.vector_store %arg12[%c1_198, %c0_199, %c2_200], %220 {strides = array<i32>} : memref<2x16x16xbf16, #tpu.memory_space<vmem>>, vector<1x16x12xbf16>,
    %c1_201 = arith.constant 1 : index
    %c0_202 = arith.constant 0 : index
    %c14_203 = arith.constant 14 : index
    %221 = vector.load %arg12[%c1_201, %c0_202, %c14_203] : memref<2x16x16xbf16, #tpu.memory_space<vmem>>, vector<1x16x2xbf16>
    %222 = vector.shape_cast %221 : vector<1x16x2xbf16> to vector<16x2xbf16>
    %223 = vector.shape_cast %39 : vector<16x2xbf16> to vector<1x16x2xbf16>
    tpu.vector_store %arg12[%c1_201, %c0_202, %c14_203], %223 {strides = array<i32>} : memref<2x16x16xbf16, #tpu.memory_space<vmem>>, vector<1x16x2xbf16>,
    %c1_204 = arith.constant 1 : index
    %c0_205 = arith.constant 0 : index
    %c0_206 = arith.constant 0 : index
    %224 = vector.load %arg12[%c1_204, %c0_205, %c0_206] : memref<2x16x16xbf16, #tpu.memory_space<vmem>>, vector<1x16x12xbf16>
    %225 = vector.shape_cast %224 : vector<1x16x12xbf16> to vector<16x12xbf16>
    %cst_207 = arith.constant dense<0.000000e+00> : vector<16x12xf32>
    %226 = tpu.matmul %19, %225, %cst_207 {dimension_numbers = #tpu.dot_dimension_numbers<[1], [0], [0], [1], [0, 0, 1, 1], [], []>} : vector<16x16xbf16>, vector<16x12xbf16>, vector<16x12xf32> -> vector<16x12xf32>
    %c1_208 = arith.constant 1 : index
    %c0_209 = arith.constant 0 : index
    %c1_210 = arith.constant 1 : index
    %227 = vector.load %arg12[%c1_208, %c0_209, %c1_210] : memref<2x16x16xbf16, #tpu.memory_space<vmem>>, vector<1x16x12xbf16>
    %228 = vector.shape_cast %227 : vector<1x16x12xbf16> to vector<16x12xbf16>
    %cst_211 = arith.constant dense<0.000000e+00> : vector<16x12xf32>
    %229 = tpu.matmul %21, %228, %cst_211 {dimension_numbers = #tpu.dot_dimension_numbers<[1], [0], [0], [1], [0, 0, 1, 1], [], []>} : vector<16x16xbf16>, vector<16x12xbf16>, vector<16x12xf32> -> vector<16x12xf32>
    %230 = arith.addf %226, %229 : vector<16x12xf32>
    %c1_212 = arith.constant 1 : index
    %c0_213 = arith.constant 0 : index
    %c2_214 = arith.constant 2 : index
    %231 = vector.load %arg12[%c1_212, %c0_213, %c2_214] : memref<2x16x16xbf16, #tpu.memory_space<vmem>>, vector<1x16x12xbf16>
    %232 = vector.shape_cast %231 : vector<1x16x12xbf16> to vector<16x12xbf16>
    %cst_215 = arith.constant dense<0.000000e+00> : vector<16x12xf32>
    %233 = tpu.matmul %23, %232, %cst_215 {dimension_numbers = #tpu.dot_dimension_numbers<[1], [0], [0], [1], [0, 0, 1, 1], [], []>} : vector<16x16xbf16>, vector<16x12xbf16>, vector<16x12xf32> -> vector<16x12xf32>
    %234 = arith.addf %230, %233 : vector<16x12xf32>
    %c1_216 = arith.constant 1 : index
    %c0_217 = arith.constant 0 : index
    %c3_218 = arith.constant 3 : index
    %235 = vector.load %arg12[%c1_216, %c0_217, %c3_218] : memref<2x16x16xbf16, #tpu.memory_space<vmem>>, vector<1x16x12xbf16>
    %236 = vector.shape_cast %235 : vector<1x16x12xbf16> to vector<16x12xbf16>
    %cst_219 = arith.constant dense<0.000000e+00> : vector<16x12xf32>
    %237 = tpu.matmul %25, %236, %cst_219 {dimension_numbers = #tpu.dot_dimension_numbers<[1], [0], [0], [1], [0, 0, 1, 1], [], []>} : vector<16x16xbf16>, vector<16x12xbf16>, vector<16x12xf32> -> vector<16x12xf32>
    %238 = arith.addf %234, %237 : vector<16x12xf32>
    %c1_220 = arith.constant 1 : index
    %c0_221 = arith.constant 0 : index
    %c4_222 = arith.constant 4 : index
    %239 = vector.load %arg12[%c1_220, %c0_221, %c4_222] : memref<2x16x16xbf16, #tpu.memory_space<vmem>>, vector<1x16x12xbf16>
    %240 = vector.shape_cast %239 : vector<1x16x12xbf16> to vector<16x12xbf16>
    %cst_223 = arith.constant dense<0.000000e+00> : vector<16x12xf32>
    %241 = tpu.matmul %27, %240, %cst_223 {dimension_numbers = #tpu.dot_dimension_numbers<[1], [0], [0], [1], [0, 0, 1, 1], [], []>} : vector<16x16xbf16>, vector<16x12xbf16>, vector<16x12xf32> -> vector<16x12xf32>
    %242 = arith.addf %238, %241 : vector<16x12xf32>
    %243 = vector.broadcast %30 : vector<16x1xf32> to vector<16x12xf32>
    %244 = arith.addf %242, %243 : vector<16x12xf32>
    %cst_224 = arith.constant 0.000000e+00 : f32
    %245 = vector.broadcast %cst_224 : f32 to vector<16x12xf32>
    %246 = arith.maximumf %244, %245 : vector<16x12xf32>
    %c1_225 = arith.constant 1 : index
    %c0_226 = arith.constant 0 : index
    %c0_227 = arith.constant 0 : index
    %247 = vector.load %arg9[%c1_225, %c0_226, %c0_227] : memref<2x16x16xf32, #tpu.memory_space<vmem>>, vector<1x16x2xf32>
    %248 = vector.shape_cast %247 : vector<1x16x2xf32> to vector<16x2xf32>
    %249 = vector.shape_cast %41 : vector<16x2xf32> to vector<1x16x2xf32>
    tpu.vector_store %arg9[%c1_225, %c0_226, %c0_227], %249 {strides = array<i32>} : memref<2x16x16xf32, #tpu.memory_space<vmem>>, vector<1x16x2xf32>,
    %c1_228 = arith.constant 1 : index
    %c0_229 = arith.constant 0 : index
    %c2_230 = arith.constant 2 : index
    %250 = vector.load %arg9[%c1_228, %c0_229, %c2_230] : memref<2x16x16xf32, #tpu.memory_space<vmem>>, vector<1x16x12xf32>
    %251 = vector.shape_cast %250 : vector<1x16x12xf32> to vector<16x12xf32>
    %252 = vector.shape_cast %246 : vector<16x12xf32> to vector<1x16x12xf32>
    tpu.vector_store %arg9[%c1_228, %c0_229, %c2_230], %252 {strides = array<i32>} : memref<2x16x16xf32, #tpu.memory_space<vmem>>, vector<1x16x12xf32>,
    %c1_231 = arith.constant 1 : index
    %c0_232 = arith.constant 0 : index
    %c14_233 = arith.constant 14 : index
    %253 = vector.load %arg9[%c1_231, %c0_232, %c14_233] : memref<2x16x16xf32, #tpu.memory_space<vmem>>, vector<1x16x2xf32>
    %254 = vector.shape_cast %253 : vector<1x16x2xf32> to vector<16x2xf32>
    %255 = vector.shape_cast %43 : vector<16x2xf32> to vector<1x16x2xf32>
    tpu.vector_store %arg9[%c1_231, %c0_232, %c14_233], %255 {strides = array<i32>} : memref<2x16x16xf32, #tpu.memory_space<vmem>>, vector<1x16x2xf32>,
    return
  }
  func.func @transform_0(%arg0: i32) -> (i32, i32, i32) {
    %c0_i32 = arith.constant 0 : i32
    %c0_i32_0 = arith.constant 0 : i32
    %c0_i32_1 = arith.constant 0 : i32
    return %arg0, %c0_i32, %c0_i32_0 : i32, i32, i32
  }
  func.func @transform_1(%arg0: i32) -> (i32, i32, i32) {
    %c0_i32 = arith.constant 0 : i32
    %c0_i32_0 = arith.constant 0 : i32
    %c0_i32_1 = arith.constant 0 : i32
    %c0_i32_2 = arith.constant 0 : i32
    return %c0_i32, %c0_i32_0, %c0_i32_1 : i32, i32, i32
  }
  func.func @transform_2(%arg0: i32) -> (i32, i32) {
    %c0_i32 = arith.constant 0 : i32
    %c0_i32_0 = arith.constant 0 : i32
    %c0_i32_1 = arith.constant 0 : i32
    return %c0_i32, %c0_i32_0 : i32, i32
  }
  func.func @transform_3(%arg0: i32) -> (i32, i32, i32) {
    %c0_i32 = arith.constant 0 : i32
    %c0_i32_0 = arith.constant 0 : i32
    %c0_i32_1 = arith.constant 0 : i32
    %c0_i32_2 = arith.constant 0 : i32
    return %c0_i32, %c0_i32_0, %c0_i32_1 : i32, i32, i32
  }
  func.func @transform_4(%arg0: i32) -> (i32, i32) {
    %c0_i32 = arith.constant 0 : i32
    %c0_i32_0 = arith.constant 0 : i32
    %c0_i32_1 = arith.constant 0 : i32
    return %c0_i32, %c0_i32_0 : i32, i32
  }
  func.func @transform_5(%arg0: i32) -> (i32, i32, i32) {
    %c0_i32 = arith.constant 0 : i32
    %c0_i32_0 = arith.constant 0 : i32
    %c0_i32_1 = arith.constant 0 : i32
    %c0_i32_2 = arith.constant 0 : i32
    return %c0_i32, %c0_i32_0, %c0_i32_1 : i32, i32, i32
  }
  func.func @transform_6(%arg0: i32) -> (i32, i32) {
    %c0_i32 = arith.constant 0 : i32
    %c0_i32_0 = arith.constant 0 : i32
    %c0_i32_1 = arith.constant 0 : i32
    return %c0_i32, %c0_i32_0 : i32, i32
  }
  func.func @transform_7(%arg0: i32) -> (i32, i32) {
    %c0_i32 = arith.constant 0 : i32
    %c0_i32_0 = arith.constant 0 : i32
    %c0_i32_1 = arith.constant 0 : i32
    return %c0_i32, %c0_i32_0 : i32, i32
  }
  func.func @transform_8(%arg0: i32) -> (i32, i32, i32) {
    %c0_i32 = arith.constant 0 : i32
    %c0_i32_0 = arith.constant 0 : i32
    %c0_i32_1 = arith.constant 0 : i32
    return %arg0, %c0_i32, %c0_i32_0 : i32, i32, i32
  }
}

</mosaic_0001>

<llo_original>
// kernel: encoder_forward.1
$region0: #{encoder_forward.1}
  #allocation0 [shape = 'u32[]', space=smem, size = 0x4, offset = 0x4, fixed_abs, tag = 'smem constant byte address 0x4 - core index']
  #allocation1 [shape = 'u32[144,128]{1,0:T(1,128)}', space=vmem, size = 0x12000, scoped, tag = 'internal scratch']
  #allocation2 [shape = 'bf16[2,16,19]{2,1,0:T(8,128)(2,1)}', space=vmem, size = 0x2000, scoped, tag = 'scratch operand']
  #allocation3 [shape = 'bf16[2,64,16]{2,1,0:T(8,128)(2,1)}', space=vmem, size = 0x8000, scoped, tag = 'scratch operand']
  #allocation4 [shape = 'bf16[2,16,16]{2,1,0:T(8,128)(2,1)}', space=vmem, size = 0x2000, scoped, tag = 'scratch operand']
  %s0 = inlined_call_operand.vmem [shape: f32[2,16,16], index: 0, kind: input, shape index: {}]
  %s1 = inlined_call_operand.vmem [shape: bf16[4,64,16], index: 1, kind: input, shape index: {}]
  %s2 = inlined_call_operand.vmem [shape: f32[64,1], index: 2, kind: input, shape index: {}]
  %s3 = inlined_call_operand.vmem [shape: bf16[5,16,64], index: 3, kind: input, shape index: {}]
  %s4 = inlined_call_operand.vmem [shape: f32[16,1], index: 4, kind: input, shape index: {}]
  %s5 = inlined_call_operand.vmem [shape: bf16[5,16,16], index: 5, kind: input, shape index: {}]
  %s6 = inlined_call_operand.vmem [shape: f32[16,1], index: 6, kind: input, shape index: {}]
  %s7 = inlined_call_operand.vmem [shape: f32[16,1], index: 7, kind: input, shape index: {}]
  %s8 = inlined_call_operand.hbm [shape: f32[2,16,16], index: 8, kind: output, shape index: {}]
  %s9 = sld [smem:[#allocation0]]
  $region42: #{encoder_forward.1} parent=0
    _
  %s11 = ssub.s32 1, %s9
  %s12 = scalar_select 0, %s11, %s9
  $region1: #{encoder_forward.1} parent=0
    #allocation5 [shape = 'u8[16384]{0}', space=vmem, size = 0x4000, scoped, tag = 'output window, operand 0, single buffered']
    #allocation6 [shape = 's32[1]{0}', space=sflag, size = 0x4, scoped, tag = 'scoped memory for encoder_forward.1']
    %13 = vsyncpa [#allocation6], 0
    // Predicated region
    $region2: #{encoder_forward.1} parent=1 // pred_check
      _
    $region3: #{encoder_forward.1} parent=1 // pred_check_branch
      %15 = sbr.rel (0) target = $region5
    $region4: #{encoder_forward.1} parent=1 // pred_region
      _
    $region5: #{encoder_forward.1} parent=1 // pred_fallthru
      _
    // Predicated region
    $region6: #{encoder_forward.1} parent=1 // pred_check
      _
    $region7: #{encoder_forward.1} parent=1 // pred_check_branch
      %17 = sbr.rel (0) target = $region9
    $region8: #{encoder_forward.1} parent=1 // pred_region
      _
    $region9: #{encoder_forward.1} parent=1 // pred_fallthru
      _
    // Predicated region
    $region10: #{encoder_forward.1} parent=1 // pred_check
      _
    $region11: #{encoder_forward.1} parent=1 // pred_check_branch
      %19 = sbr.rel (0) target = $region13
    $region12: #{encoder_forward.1} parent=1 // pred_region
      _
    $region13: #{encoder_forward.1} parent=1 // pred_fallthru
      _
    // Predicated region
    $region14: #{encoder_forward.1} parent=1 // pred_check
      _
    $region15: #{encoder_forward.1} parent=1 // pred_check_branch
      %21 = sbr.rel (0) target = $region17
    $region16: #{encoder_forward.1} parent=1 // pred_region
      _
    $region17: #{encoder_forward.1} parent=1 // pred_fallthru
      _
    // Predicated region
    $region18: #{encoder_forward.1} parent=1 // pred_check
      _
    $region19: #{encoder_forward.1} parent=1 // pred_check_branch
      %23 = sbr.rel (0) target = $region21
    $region20: #{encoder_forward.1} parent=1 // pred_region
      _
    $region21: #{encoder_forward.1} parent=1 // pred_fallthru
      _
    // Predicated region
    $region22: #{encoder_forward.1} parent=1 // pred_check
      _
    $region23: #{encoder_forward.1} parent=1 // pred_check_branch
      %25 = sbr.rel (0) target = $region25
    $region24: #{encoder_forward.1} parent=1 // pred_region
      _
    $region25: #{encoder_forward.1} parent=1 // pred_fallthru
      _
    // Predicated region
    $region26: #{encoder_forward.1} parent=1 // pred_check
      _
    $region27: #{encoder_forward.1} parent=1 // pred_check_branch
      %27 = sbr.rel (0) target = $region29
    $region28: #{encoder_forward.1} parent=1 // pred_region
      _
    $region29: #{encoder_forward.1} parent=1 // pred_fallthru
      _
    // Predicated region
    $region30: #{encoder_forward.1} parent=1 // pred_check
      _
    $region31: #{encoder_forward.1} parent=1 // pred_check_branch
      %29 = sbr.rel (0) target = $region33
    $region32: #{encoder_forward.1} parent=1 // pred_region
      _
    $region33: #{encoder_forward.1} parent=1 // pred_fallthru
      _
    %v31 = vld [vmem:[%s1] sm:$0xf]
    %v32 = vld [vmem:[%s1 + $0x4] sm:$0xf]
    %v33 = vld [vmem:[%s1 + $0x8] sm:$0xf]
    %v34 = vld [vmem:[%s1 + $0xc] sm:$0xf]
    %v35 = vld [vmem:[%s1 + $0x10] sm:$0xf]
    %v36 = vld [vmem:[%s1 + $0x14] sm:$0xf]
    %v37 = vld [vmem:[%s1 + $0x18] sm:$0xf]
    %v38 = vld [vmem:[%s1 + $0x1c] sm:$0xf]
    %s39 = scalar_lea.vmem %s1, 32
    %v40 = vld [vmem:[%s39] sm:$0xf]
    %v41 = vld [vmem:[%s39 + $0x4] sm:$0xf]
    %v42 = vld [vmem:[%s39 + $0x8] sm:$0xf]
    %v43 = vld [vmem:[%s39 + $0xc] sm:$0xf]
    %v44 = vld [vmem:[%s39 + $0x10] sm:$0xf]
    %v45 = vld [vmem:[%s39 + $0x14] sm:$0xf]
    %v46 = vld [vmem:[%s39 + $0x18] sm:$0xf]
    %v47 = vld [vmem:[%s39 + $0x1c] sm:$0xf]
    %s48 = scalar_lea.vmem %s1, 64
    %v49 = vld [vmem:[%s48] sm:$0xf]
    %v50 = vld [vmem:[%s48 + $0x4] sm:$0xf]
    %v51 = vld [vmem:[%s48 + $0x8] sm:$0xf]
    %v52 = vld [vmem:[%s48 + $0xc] sm:$0xf]
    %v53 = vld [vmem:[%s48 + $0x10] sm:$0xf]
    %v54 = vld [vmem:[%s48 + $0x14] sm:$0xf]
    %v55 = vld [vmem:[%s48 + $0x18] sm:$0xf]
    %v56 = vld [vmem:[%s48 + $0x1c] sm:$0xf]
    %s57 = scalar_lea.vmem %s1, 96
    %v58 = vld [vmem:[%s57] sm:$0xf]
    %v59 = vld [vmem:[%s57 + $0x4] sm:$0xf]
    %v60 = vld [vmem:[%s57 + $0x8] sm:$0xf]
    %v61 = vld [vmem:[%s57 + $0xc] sm:$0xf]
    %v62 = vld [vmem:[%s57 + $0x10] sm:$0xf]
    %v63 = vld [vmem:[%s57 + $0x14] sm:$0xf]
    %v64 = vld [vmem:[%s57 + $0x18] sm:$0xf]
    %v65 = vld [vmem:[%s57 + $0x1c] sm:$0xf]
    %v66 = vld [vmem:[%s3] sm:$0xf]
    %v67 = vld [vmem:[%s3 + $0x4] sm:$0xf]
    %s68 = scalar_lea.vmem %s3, 8
    %v69 = vld [vmem:[%s68] sm:$0xf]
    %v70 = vld [vmem:[%s68 + $0x4] sm:$0xf]
    %s71 = scalar_lea.vmem %s3, 16
    %v72 = vld [vmem:[%s71] sm:$0xf]
    %v73 = vld [vmem:[%s71 + $0x4] sm:$0xf]
    %s74 = scalar_lea.vmem %s3, 24
    %v75 = vld [vmem:[%s74] sm:$0xf]
    %v76 = vld [vmem:[%s74 + $0x4] sm:$0xf]
    %s77 = scalar_lea.vmem %s3, 32
    %v78 = vld [vmem:[%s77] sm:$0xf]
    %v79 = vld [vmem:[%s77 + $0x4] sm:$0xf]
    %v80 = vld [vmem:[%s5] sm:$0xf]
    %v81 = vld [vmem:[%s5 + $0x4] sm:$0xf]
    %s82 = scalar_lea.vmem %s5, 8
    %v83 = vld [vmem:[%s82] sm:$0xf]
    %v84 = vld [vmem:[%s82 + $0x4] sm:$0xf]
    %s85 = scalar_lea.vmem %s5, 16
    %v86 = vld [vmem:[%s85] sm:$0xf]
    %v87 = vld [vmem:[%s85 + $0x4] sm:$0xf]
    %s88 = scalar_lea.vmem %s5, 24
    %v89 = vld [vmem:[%s88] sm:$0xf]
    %v90 = vld [vmem:[%s88 + $0x4] sm:$0xf]
    %s91 = scalar_lea.vmem %s5, 32
    %v92 = vld [vmem:[%s91] sm:$0xf]
    %v93 = vld [vmem:[%s91 + $0x4] sm:$0xf]
    %v94 = vld [vmem:[%s2] sm:$0xff]
    %v95 = vld [vmem:[%s2 + $0x8] sm:$0xff]
    %v96 = vld [vmem:[%s2 + $0x10] sm:$0xff]
    %v97 = vld [vmem:[%s2 + $0x18] sm:$0xff]
    %v98 = vld [vmem:[%s2 + $0x20] sm:$0xff]
    %v99 = vld [vmem:[%s2 + $0x28] sm:$0xff]
    %v100 = vld [vmem:[%s2 + $0x30] sm:$0xff]
    %v101 = vld [vmem:[%s2 + $0x38] sm:$0xff]
    %v102 = vld [vmem:[%s4] sm:$0xff]
    %v103 = vld [vmem:[%s4 + $0x8] sm:$0xff]
    %v104 = vld [vmem:[%s6] sm:$0xff]
    %v105 = vld [vmem:[%s6 + $0x8] sm:$0xff]
    %v106 = vld [vmem:[%s7] sm:$0xff]
    %v107 = vld [vmem:[%s7 + $0x8] sm:$0xff]
    %v108 = vpack.c.bf16 %v107, %v106
    %vm109 = vcmask 3072
    %110 = vst.msk [vmem:[#allocation2] sm:$0xf] %vm109, 0
    %111 = vst.msk [vmem:[#allocation2 + $0x4] sm:$0xf] %vm109, 0
    %v112 = vld [vmem:[%s0] sm:$0xff]
    %v113 = vld [vmem:[%s0 + $0x8] sm:$0xff]
    %v114 = vpack.c.bf16 %v113, %v112
    %v116 = vunpack.c.l.b16 %v114
    %v117 = vunpack.c.h.b16 %v114
    %v118 = vpack.c.b16 %v116, %v116
    %v119 = vpack.c.b16 %v117, %v117
    %120 = vrot.lane.b32.xlu0 %v118, 1
    %v121 = vpop.permute.xlu0 %120
    %122 = vrot.lane.b32.xlu0 %v119, 1
    %v123 = vpop.permute.xlu0 %122
    %vm126 = vcmask 134152
    %127 = vst.msk [vmem:[#allocation2] sm:$0xf] %vm126, %v121
    %128 = vst.msk [vmem:[#allocation2 + $0x4] sm:$0xf] %vm126, %v123
    %vm129 = vcmask 150664
    %130 = vst.msk [vmem:[#allocation2] sm:$0xf] %vm129, 0
    %131 = vst.msk [vmem:[#allocation2 + $0x4] sm:$0xf] %vm129, 0
    %v132 = vld [vmem:[#allocation2] sm:$0xf]
    %v133 = vld [vmem:[#allocation2 + $0x4] sm:$0xf]
    %v142 = vunpack.c.l.b16 %v40
    %v143 = vunpack.c.l.b16 %v41
    %v144 = vunpack.c.l.b16 %v42
    %v145 = vunpack.c.l.b16 %v43
    %v146 = vunpack.c.l.b16 %v44
    %v147 = vunpack.c.l.b16 %v45
    %v148 = vunpack.c.l.b16 %v46
    %v149 = vunpack.c.l.b16 %v47
    %v150 = vpack.c.b16 %v143, %v142
    %v151 = vpack.c.b16 %v145, %v144
    %v152 = vpack.c.b16 %v147, %v146
    %v153 = vpack.c.b16 %v149, %v148
    %v156 = vunpack.c.l.b16 %v132
    %v157 = vunpack.c.l.b16 %v133
    %v158 = vpack.c.b16 %v157, %v156
    %159 = vrot.lane.b32.xlu0 %v158, 127
    %v160 = vpop.permute.xlu0 %159
    %vm162 = vcmask 130048
    %v164 = vsel %vm162, %v150, 0
    %v167 = vsel %vm162, %v151, 0
    %v170 = vsel %vm162, %v152, 0
    %v173 = vsel %vm162, %v153, 0
    %175 = vmatprep.subr.bf16.mxu0 0
    %176 = vmatpush1.bf16.msra.mxu0 0
    %177 = vmatprep.subr.bf16.mxu0 0
    %178 = vmatpush1.bf16.msra.mxu0 0
    %179 = vmatprep.subr.bf16.mxu0 0
    %180 = vmatpush1.bf16.msra.mxu0 0
    %181 = vmatprep.subr.bf16.mxu0 0
    %182 = vmatpush1.bf16.msra.mxu0 0
    %183 = vmatprep.subr.bf16.mxu0 0
    %184 = vmatpush1.bf16.msra.mxu0 0
    %185 = vmatprep.subr.bf16.mxu0 0
    %186 = vmatpush1.bf16.msra.mxu0 0
    %187 = vmatprep.subr.bf16.mxu0 0
    %188 = vmatpush1.bf16.msra.mxu0 0
    %189 = vmatprep.subr.bf16.mxu0 0
    %190 = vmatpush1.bf16.msra.mxu0 %v160
    %191 = vmatprep.subr.bf16.mxu0 0
    %192 = vmatpush2.bf16.msra.mxu0 0
    %193 = vmatprep.subr.bf16.mxu0 0
    %194 = vmatpush2.bf16.msra.mxu0 0
    %195 = vmatprep.subr.bf16.mxu0 0
    %196 = vmatpush2.bf16.msra.mxu0 0
    %197 = vmatprep.subr.bf16.mxu0 0
    %198 = vmatpush2.bf16.msra.mxu0 0
    %199 = vmatprep.subr.bf16.mxu0 0
    %200 = vmatpush2.bf16.msra.mxu0 0
    %201 = vmatprep.subr.bf16.mxu0 0
    %202 = vmatpush2.bf16.msra.mxu0 0
    %203 = vmatprep.subr.bf16.mxu0 0
    %204 = vmatpush2.bf16.msra.mxu0 0
    %205 = vmatprep.subr.bf16.mxu0 0
    %206 = vmatpush2.bf16.msra.mxu0 0
    %207 = vmatprep.mubr.bf16.mxu0 0
    %208 = vmatmul.mubr.bf16.gmra.mxu0 %v164
    %v209 = vpop.f32.mrf.mxu0
    %v210 = vadd.f32 0.0, %v209
    %v211 = vpop.f32.mrf.mxu0
    %v212 = vpop.f32.mrf.mxu0
    %v213 = vadd.f32 0.0, %v212
    %v214 = vpop.f32.mrf.mxu0
    %215 = vmatprep.mubr.bf16.mxu0 0
    %216 = vmatmul.mubr.bf16.gmra.mxu0 %v167
    %v217 = vpop.f32.mrf.mxu0
    %v218 = vadd.f32 0.0, %v217
    %v219 = vpop.f32.mrf.mxu0
    %v220 = vpop.f32.mrf.mxu0
    %v221 = vadd.f32 0.0, %v220
    %v222 = vpop.f32.mrf.mxu0
    %223 = vmatprep.mubr.bf16.mxu0 0
    %224 = vmatmul.mubr.bf16.gmra.mxu0 %v170
    %v225 = vpop.f32.mrf.mxu0
    %v226 = vadd.f32 0.0, %v225
    %v227 = vpop.f32.mrf.mxu0
    %v228 = vpop.f32.mrf.mxu0
    %v229 = vadd.f32 0.0, %v228
    %v230 = vpop.f32.mrf.mxu0
    %231 = vmatprep.mubr.bf16.mxu0 0
    %232 = vmatmul.mubr.bf16.gmra.mxu0 %v173
    %v233 = vpop.f32.mrf.mxu0
    %v234 = vadd.f32 0.0, %v233
    %v235 = vpop.f32.mrf.mxu0
    %v236 = vpop.f32.mrf.mxu0
    %v237 = vadd.f32 0.0, %v236
    %v238 = vpop.f32.mrf.mxu0
    %239 = vdwg.mxu0
    %v248 = vunpack.c.l.b16 %v31
    %v249 = vunpack.c.l.b16 %v32
    %v250 = vunpack.c.l.b16 %v33
    %v251 = vunpack.c.l.b16 %v34
    %v252 = vunpack.c.l.b16 %v35
    %v253 = vunpack.c.l.b16 %v36
    %v254 = vunpack.c.l.b16 %v37
    %v255 = vunpack.c.l.b16 %v38
    %v256 = vpack.c.b16 %v249, %v248
    %v257 = vpack.c.b16 %v251, %v250
    %v258 = vpack.c.b16 %v253, %v252
    %v259 = vpack.c.b16 %v255, %v254
    %v262 = vsel %vm162, %v256, 0
    %v265 = vsel %vm162, %v257, 0
    %v268 = vsel %vm162, %v258, 0
    %v271 = vsel %vm162, %v259, 0
    %273 = vmatprep.subr.bf16.mxu0 0
    %274 = vmatpush1.bf16.msra.mxu0 0
    %275 = vmatprep.subr.bf16.mxu0 0
    %276 = vmatpush1.bf16.msra.mxu0 0
    %277 = vmatprep.subr.bf16.mxu0 0
    %278 = vmatpush1.bf16.msra.mxu0 0
    %279 = vmatprep.subr.bf16.mxu0 0
    %280 = vmatpush1.bf16.msra.mxu0 0
    %281 = vmatprep.subr.bf16.mxu0 0
    %282 = vmatpush1.bf16.msra.mxu0 0
    %283 = vmatprep.subr.bf16.mxu0 0
    %284 = vmatpush1.bf16.msra.mxu0 0
    %285 = vmatprep.subr.bf16.mxu0 0
    %286 = vmatpush1.bf16.msra.mxu0 0
    %287 = vmatprep.subr.bf16.mxu0 0
    %288 = vmatpush1.bf16.msra.mxu0 %v158
    %289 = vmatprep.subr.bf16.mxu0 0
    %290 = vmatpush2.bf16.msra.mxu0 0
    %291 = vmatprep.subr.bf16.mxu0 0
    %292 = vmatpush2.bf16.msra.mxu0 0
    %293 = vmatprep.subr.bf16.mxu0 0
    %294 = vmatpush2.bf16.msra.mxu0 0
    %295 = vmatprep.subr.bf16.mxu0 0
    %296 = vmatpush2.bf16.msra.mxu0 0
    %297 = vmatprep.subr.bf16.mxu0 0
    %298 = vmatpush2.bf16.msra.mxu0 0
    %299 = vmatprep.subr.bf16.mxu0 0
    %300 = vmatpush2.bf16.msra.mxu0 0
    %301 = vmatprep.subr.bf16.mxu0 0
    %302 = vmatpush2.bf16.msra.mxu0 0
    %303 = vmatprep.subr.bf16.mxu0 0
    %304 = vmatpush2.bf16.msra.mxu0 0
    %305 = vmatprep.mubr.bf16.mxu0 0
    %306 = vmatmul.mubr.bf16.gmra.mxu0 %v262
    %v307 = vpop.f32.mrf.mxu0
    %v308 = vadd.f32 %v210, %v307
    %v309 = vpop.f32.mrf.mxu0
    %v310 = vpop.f32.mrf.mxu0
    %v311 = vadd.f32 %v213, %v310
    %v312 = vpop.f32.mrf.mxu0
    %313 = vmatprep.mubr.bf16.mxu0 0
    %314 = vmatmul.mubr.bf16.gmra.mxu0 %v265
    %v315 = vpop.f32.mrf.mxu0
    %v316 = vadd.f32 %v218, %v315
    %v317 = vpop.f32.mrf.mxu0
    %v318 = vpop.f32.mrf.mxu0
    %v319 = vadd.f32 %v221, %v318
    %v320 = vpop.f32.mrf.mxu0
    %321 = vmatprep.mubr.bf16.mxu0 0
    %322 = vmatmul.mubr.bf16.gmra.mxu0 %v268
    %v323 = vpop.f32.mrf.mxu0
    %v324 = vadd.f32 %v226, %v323
    %v325 = vpop.f32.mrf.mxu0
    %v326 = vpop.f32.mrf.mxu0
    %v327 = vadd.f32 %v229, %v326
    %v328 = vpop.f32.mrf.mxu0
    %329 = vmatprep.mubr.bf16.mxu0 0
    %330 = vmatmul.mubr.bf16.gmra.mxu0 %v271
    %v331 = vpop.f32.mrf.mxu0
    %v332 = vadd.f32 %v234, %v331
    %v333 = vpop.f32.mrf.mxu0
    %v334 = vpop.f32.mrf.mxu0
    %v335 = vadd.f32 %v237, %v334
    %v336 = vpop.f32.mrf.mxu0
    %337 = vdwg.mxu0
    %v346 = vunpack.c.l.b16 %v49
    %v347 = vunpack.c.l.b16 %v50
    %v348 = vunpack.c.l.b16 %v51
    %v349 = vunpack.c.l.b16 %v52
    %v350 = vunpack.c.l.b16 %v53
    %v351 = vunpack.c.l.b16 %v54
    %v352 = vunpack.c.l.b16 %v55
    %v353 = vunpack.c.l.b16 %v56
    %v354 = vpack.c.b16 %v347, %v346
    %v355 = vpack.c.b16 %v349, %v348
    %v356 = vpack.c.b16 %v351, %v350
    %v357 = vpack.c.b16 %v353, %v352
    %358 = vrot.lane.b32.xlu0 %v158, 126
    %v359 = vpop.permute.xlu0 %358
    %v362 = vsel %vm162, %v354, 0
    %v365 = vsel %vm162, %v355, 0
    %v368 = vsel %vm162, %v356, 0
    %v371 = vsel %vm162, %v357, 0
    %373 = vmatprep.subr.bf16.mxu0 0
    %374 = vmatpush1.bf16.msra.mxu0 0
    %375 = vmatprep.subr.bf16.mxu0 0
    %376 = vmatpush1.bf16.msra.mxu0 0
    %377 = vmatprep.subr.bf16.mxu0 0
    %378 = vmatpush1.bf16.msra.mxu0 0
    %379 = vmatprep.subr.bf16.mxu0 0
    %380 = vmatpush1.bf16.msra.mxu0 0
    %381 = vmatprep.subr.bf16.mxu0 0
    %382 = vmatpush1.bf16.msra.mxu0 0
    %383 = vmatprep.subr.bf16.mxu0 0
    %384 = vmatpush1.bf16.msra.mxu0 0
    %385 = vmatprep.subr.bf16.mxu0 0
    %386 = vmatpush1.bf16.msra.mxu0 0
    %387 = vmatprep.subr.bf16.mxu0 0
    %388 = vmatpush1.bf16.msra.mxu0 %v359
    %389 = vmatprep.subr.bf16.mxu0 0
    %390 = vmatpush2.bf16.msra.mxu0 0
    %391 = vmatprep.subr.bf16.mxu0 0
    %392 = vmatpush2.bf16.msra.mxu0 0
    %393 = vmatprep.subr.bf16.mxu0 0
    %394 = vmatpush2.bf16.msra.mxu0 0
    %395 = vmatprep.subr.bf16.mxu0 0
    %396 = vmatpush2.bf16.msra.mxu0 0
    %397 = vmatprep.subr.bf16.mxu0 0
    %398 = vmatpush2.bf16.msra.mxu0 0
    %399 = vmatprep.subr.bf16.mxu0 0
    %400 = vmatpush2.bf16.msra.mxu0 0
    %401 = vmatprep.subr.bf16.mxu0 0
    %402 = vmatpush2.bf16.msra.mxu0 0
    %403 = vmatprep.subr.bf16.mxu0 0
    %404 = vmatpush2.bf16.msra.mxu0 0
    %405 = vmatprep.mubr.bf16.mxu0 0
    %406 = vmatmul.mubr.bf16.gmra.mxu0 %v362
    %v407 = vpop.f32.mrf.mxu0
    %v408 = vadd.f32 0.0, %v407
    %v409 = vpop.f32.mrf.mxu0
    %v410 = vpop.f32.mrf.mxu0
    %v411 = vadd.f32 0.0, %v410
    %v412 = vpop.f32.mrf.mxu0
    %413 = vmatprep.mubr.bf16.mxu0 0
    %414 = vmatmul.mubr.bf16.gmra.mxu0 %v365
    %v415 = vpop.f32.mrf.mxu0
    %v416 = vadd.f32 0.0, %v415
    %v417 = vpop.f32.mrf.mxu0
    %v418 = vpop.f32.mrf.mxu0
    %v419 = vadd.f32 0.0, %v418
    %v420 = vpop.f32.mrf.mxu0
    %421 = vmatprep.mubr.bf16.mxu0 0
    %422 = vmatmul.mubr.bf16.gmra.mxu0 %v368
    %v423 = vpop.f32.mrf.mxu0
    %v424 = vadd.f32 0.0, %v423
    %v425 = vpop.f32.mrf.mxu0
    %v426 = vpop.f32.mrf.mxu0
    %v427 = vadd.f32 0.0, %v426
    %v428 = vpop.f32.mrf.mxu0
    %429 = vmatprep.mubr.bf16.mxu0 0
    %430 = vmatmul.mubr.bf16.gmra.mxu0 %v371
    %v431 = vpop.f32.mrf.mxu0
    %v432 = vadd.f32 0.0, %v431
    %v433 = vpop.f32.mrf.mxu0
    %v434 = vpop.f32.mrf.mxu0
    %v435 = vadd.f32 0.0, %v434
    %v436 = vpop.f32.mrf.mxu0
    %437 = vdwg.mxu0
    %v438 = vadd.f32 %v308, %v408
    %v439 = vadd.f32 %v311, %v411
    %v440 = vadd.f32 %v316, %v416
    %v441 = vadd.f32 %v319, %v419
    %v442 = vadd.f32 %v324, %v424
    %v443 = vadd.f32 %v327, %v427
    %v444 = vadd.f32 %v332, %v432
    %v445 = vadd.f32 %v335, %v435
    %v454 = vunpack.c.l.b16 %v58
    %v455 = vunpack.c.l.b16 %v59
    %v456 = vunpack.c.l.b16 %v60
    %v457 = vunpack.c.l.b16 %v61
    %v458 = vunpack.c.l.b16 %v62
    %v459 = vunpack.c.l.b16 %v63
    %v460 = vunpack.c.l.b16 %v64
    %v461 = vunpack.c.l.b16 %v65
    %v462 = vpack.c.b16 %v455, %v454
    %v463 = vpack.c.b16 %v457, %v456
    %v464 = vpack.c.b16 %v459, %v458
    %v465 = vpack.c.b16 %v461, %v460
    %466 = vrot.lane.b32.xlu0 %v158, 125
    %v467 = vpop.permute.xlu0 %466
    %v470 = vsel %vm162, %v462, 0
    %v473 = vsel %vm162, %v463, 0
    %v476 = vsel %vm162, %v464, 0
    %v479 = vsel %vm162, %v465, 0
    %481 = vmatprep.subr.bf16.mxu0 0
    %482 = vmatpush1.bf16.msra.mxu0 0
    %483 = vmatprep.subr.bf16.mxu0 0
    %484 = vmatpush1.bf16.msra.mxu0 0
    %485 = vmatprep.subr.bf16.mxu0 0
    %486 = vmatpush1.bf16.msra.mxu0 0
    %487 = vmatprep.subr.bf16.mxu0 0
    %488 = vmatpush1.bf16.msra.mxu0 0
    %489 = vmatprep.subr.bf16.mxu0 0
    %490 = vmatpush1.bf16.msra.mxu0 0
    %491 = vmatprep.subr.bf16.mxu0 0
    %492 = vmatpush1.bf16.msra.mxu0 0
    %493 = vmatprep.subr.bf16.mxu0 0
    %494 = vmatpush1.bf16.msra.mxu0 0
    %495 = vmatprep.subr.bf16.mxu0 0
    %496 = vmatpush1.bf16.msra.mxu0 %v467
    %497 = vmatprep.subr.bf16.mxu0 0
    %498 = vmatpush2.bf16.msra.mxu0 0
    %499 = vmatprep.subr.bf16.mxu0 0
    %500 = vmatpush2.bf16.msra.mxu0 0
    %501 = vmatprep.subr.bf16.mxu0 0
    %502 = vmatpush2.bf16.msra.mxu0 0
    %503 = vmatprep.subr.bf16.mxu0 0
    %504 = vmatpush2.bf16.msra.mxu0 0
    %505 = vmatprep.subr.bf16.mxu0 0
    %506 = vmatpush2.bf16.msra.mxu0 0
    %507 = vmatprep.subr.bf16.mxu0 0
    %508 = vmatpush2.bf16.msra.mxu0 0
    %509 = vmatprep.subr.bf16.mxu0 0
    %510 = vmatpush2.bf16.msra.mxu0 0
    %511 = vmatprep.subr.bf16.mxu0 0
    %512 = vmatpush2.bf16.msra.mxu0 0
    %513 = vmatprep.mubr.bf16.mxu0 0
    %514 = vmatmul.mubr.bf16.gmra.mxu0 %v470
    %v515 = vpop.f32.mrf.mxu0
    %v516 = vadd.f32 0.0, %v515
    %v517 = vpop.f32.mrf.mxu0
    %v518 = vpop.f32.mrf.mxu0
    %v519 = vadd.f32 0.0, %v518
    %v520 = vpop.f32.mrf.mxu0
    %521 = vmatprep.mubr.bf16.mxu0 0
    %522 = vmatmul.mubr.bf16.gmra.mxu0 %v473
    %v523 = vpop.f32.mrf.mxu0
    %v524 = vadd.f32 0.0, %v523
    %v525 = vpop.f32.mrf.mxu0
    %v526 = vpop.f32.mrf.mxu0
    %v527 = vadd.f32 0.0, %v526
    %v528 = vpop.f32.mrf.mxu0
    %529 = vmatprep.mubr.bf16.mxu0 0
    %530 = vmatmul.mubr.bf16.gmra.mxu0 %v476
    %v531 = vpop.f32.mrf.mxu0
    %v532 = vadd.f32 0.0, %v531
    %v533 = vpop.f32.mrf.mxu0
    %v534 = vpop.f32.mrf.mxu0
    %v535 = vadd.f32 0.0, %v534
    %v536 = vpop.f32.mrf.mxu0
    %537 = vmatprep.mubr.bf16.mxu0 0
    %538 = vmatmul.mubr.bf16.gmra.mxu0 %v479
    %v539 = vpop.f32.mrf.mxu0
    %v540 = vadd.f32 0.0, %v539
    %v541 = vpop.f32.mrf.mxu0
    %v542 = vpop.f32.mrf.mxu0
    %v543 = vadd.f32 0.0, %v542
    %v544 = vpop.f32.mrf.mxu0
    %545 = vdwg.mxu0
    %v546 = vadd.f32 %v438, %v516
    %v547 = vadd.f32 %v439, %v519
    %v548 = vadd.f32 %v440, %v524
    %v549 = vadd.f32 %v441, %v527
    %v550 = vadd.f32 %v442, %v532
    %v551 = vadd.f32 %v443, %v535
    %v552 = vadd.f32 %v444, %v540
    %v553 = vadd.f32 %v445, %v543
    %555 = vset.pattern.permute.xlu0 0
    %556 = vperm.xlu0 %555, %v94
    %v557 = vpop.permute.xlu0 %556
    %560 = vset.pattern.permute.xlu0 0
    %561 = vperm.xlu0 %560, %v95
    %v562 = vpop.permute.xlu0 %561
    %565 = vset.pattern.permute.xlu0 0
    %566 = vperm.xlu0 %565, %v96
    %v567 = vpop.permute.xlu0 %566
    %570 = vset.pattern.permute.xlu0 0
    %571 = vperm.xlu0 %570, %v97
    %v572 = vpop.permute.xlu0 %571
    %575 = vset.pattern.permute.xlu0 0
    %576 = vperm.xlu0 %575, %v98
    %v577 = vpop.permute.xlu0 %576
    %580 = vset.pattern.permute.xlu0 0
    %581 = vperm.xlu0 %580, %v99
    %v582 = vpop.permute.xlu0 %581
    %585 = vset.pattern.permute.xlu0 0
    %586 = vperm.xlu0 %585, %v100
    %v587 = vpop.permute.xlu0 %586
    %590 = vset.pattern.permute.xlu0 0
    %591 = vperm.xlu0 %590, %v101
    %v592 = vpop.permute.xlu0 %591
    %v594 = vadd.f32 %v546, %v557
    %v595 = vadd.f32 %v547, %v562
    %v596 = vadd.f32 %v548, %v567
    %v597 = vadd.f32 %v549, %v572
    %v598 = vadd.f32 %v550, %v577
    %v599 = vadd.f32 %v551, %v582
    %v600 = vadd.f32 %v552, %v587
    %v601 = vadd.f32 %v553, %v592
    %v602 = vmax.f32 %v594, 0.0
    %v603 = vmax.f32 %v595, 0.0
    %v604 = vmax.f32 %v596, 0.0
    %v605 = vmax.f32 %v597, 0.0
    %v606 = vmax.f32 %v598, 0.0
    %v607 = vmax.f32 %v599, 0.0
    %v608 = vmax.f32 %v600, 0.0
    %v609 = vmax.f32 %v601, 0.0
    %618 = vrot.lane.b32.xlu0 %v602, 127
    %v619 = vpop.permute.xlu0 %618
    %620 = vrot.lane.b32.xlu0 %v603, 127
    %v621 = vpop.permute.xlu0 %620
    %622 = vrot.lane.b32.xlu0 %v604, 127
    %v623 = vpop.permute.xlu0 %622
    %624 = vrot.lane.b32.xlu0 %v605, 127
    %v625 = vpop.permute.xlu0 %624
    %626 = vrot.lane.b32.xlu0 %v606, 127
    %v627 = vpop.permute.xlu0 %626
    %628 = vrot.lane.b32.xlu0 %v607, 127
    %v629 = vpop.permute.xlu0 %628
    %630 = vrot.lane.b32.xlu0 %v608, 127
    %v631 = vpop.permute.xlu0 %630
    %632 = vrot.lane.b32.xlu0 %v609, 127
    %v633 = vpop.permute.xlu0 %632
    %v642 = vmax.f32 %v602, %v619
    %v643 = vmax.f32 %v603, %v621
    %v644 = vmax.f32 %v604, %v623
    %v645 = vmax.f32 %v605, %v625
    %v646 = vmax.f32 %v606, %v627
    %v647 = vmax.f32 %v607, %v629
    %v648 = vmax.f32 %v608, %v631
    %v649 = vmax.f32 %v609, %v633
    %v650 = vpack.c.bf16 %v643, %v642
    %v651 = vpack.c.bf16 %v645, %v644
    %v652 = vpack.c.bf16 %v647, %v646
    %v653 = vpack.c.bf16 %v649, %v648
    %v658 = vunpack.c.l.b16 %v650
    %v659 = vunpack.c.h.b16 %v650
    %v660 = vunpack.c.l.b16 %v651
    %v661 = vunpack.c.h.b16 %v651
    %v662 = vunpack.c.l.b16 %v652
    %v663 = vunpack.c.h.b16 %v652
    %v664 = vunpack.c.l.b16 %v653
    %v665 = vunpack.c.h.b16 %v653
    %v666 = vpack.c.b16 %v658, %v658
    %v667 = vpack.c.b16 %v659, %v659
    %v668 = vpack.c.b16 %v660, %v660
    %v669 = vpack.c.b16 %v661, %v661
    %v670 = vpack.c.b16 %v662, %v662
    %v671 = vpack.c.b16 %v663, %v663
    %v672 = vpack.c.b16 %v664, %v664
    %v673 = vpack.c.b16 %v665, %v665
    %vm682 = vcmask 117760
    %683 = vst.msk [vmem:[#allocation3] sm:$0xf] %vm682, %v666
    %684 = vst.msk [vmem:[#allocation3 + $0x4] sm:$0xf] %vm682, %v667
    %685 = vst.msk [vmem:[#allocation3 + $0x8] sm:$0xf] %vm682, %v668
    %686 = vst.msk [vmem:[#allocation3 + $0xc] sm:$0xf] %vm682, %v669
    %687 = vst.msk [vmem:[#allocation3 + $0x10] sm:$0xf] %vm682, %v670
    %688 = vst.msk [vmem:[#allocation3 + $0x14] sm:$0xf] %vm682, %v671
    %689 = vst.msk [vmem:[#allocation3 + $0x18] sm:$0xf] %vm682, %v672
    %690 = vst.msk [vmem:[#allocation3 + $0x1c] sm:$0xf] %vm682, %v673
    %vm691 = vcmask 126072
    %692 = vst.msk [vmem:[#allocation3] sm:$0xf] %vm691, 0
    %693 = vst.msk [vmem:[#allocation3 + $0x4] sm:$0xf] %vm691, 0
    %694 = vst.msk [vmem:[#allocation3 + $0x8] sm:$0xf] %vm691, 0
    %695 = vst.msk [vmem:[#allocation3 + $0xc] sm:$0xf] %vm691, 0
    %696 = vst.msk [vmem:[#allocation3 + $0x10] sm:$0xf] %vm691, 0
    %697 = vst.msk [vmem:[#allocation3 + $0x14] sm:$0xf] %vm691, 0
    %698 = vst.msk [vmem:[#allocation3 + $0x18] sm:$0xf] %vm691, 0
    %699 = vst.msk [vmem:[#allocation3 + $0x1c] sm:$0xf] %vm691, 0
    %v700 = vld [vmem:[#allocation3] sm:$0xf]
    %v701 = vld [vmem:[#allocation3 + $0x4] sm:$0xf]
    %v702 = vld [vmem:[#allocation3 + $0x8] sm:$0xf]
    %v703 = vld [vmem:[#allocation3 + $0xc] sm:$0xf]
    %v704 = vld [vmem:[#allocation3 + $0x10] sm:$0xf]
    %v705 = vld [vmem:[#allocation3 + $0x14] sm:$0xf]
    %v706 = vld [vmem:[#allocation3 + $0x18] sm:$0xf]
    %v707 = vld [vmem:[#allocation3 + $0x1c] sm:$0xf]
    %v710 = vunpack.c.l.b16 %v69
    %v711 = vunpack.c.l.b16 %v70
    %v712 = vpack.c.b16 %v711, %v710
    %v721 = vunpack.c.l.b16 %v700
    %v722 = vunpack.c.l.b16 %v701
    %v723 = vunpack.c.l.b16 %v702
    %v724 = vunpack.c.l.b16 %v703
    %v725 = vunpack.c.l.b16 %v704
    %v726 = vunpack.c.l.b16 %v705
    %v727 = vunpack.c.l.b16 %v706
    %v728 = vunpack.c.l.b16 %v707
    %v729 = vpack.c.b16 %v722, %v721
    %v730 = vpack.c.b16 %v724, %v723
    %v731 = vpack.c.b16 %v726, %v725
    %v732 = vpack.c.b16 %v728, %v727
    %733 = vrot.lane.b32.xlu0 %v729, 127
    %v734 = vpop.permute.xlu0 %733
    %735 = vrot.lane.b32.xlu0 %v730, 127
    %v736 = vpop.permute.xlu0 %735
    %737 = vrot.lane.b32.xlu0 %v731, 127
    %v738 = vpop.permute.xlu0 %737
    %739 = vrot.lane.b32.xlu0 %v732, 127
    %v740 = vpop.permute.xlu0 %739
    %vm745 = vcmask 523264
    %v747 = vsel %vm745, %v712, 0
    %749 = vmatprep.subr.bf16.mxu0 0
    %750 = vmatpush1.bf16.msra.mxu0 0
    %751 = vmatprep.subr.bf16.mxu0 0
    %752 = vmatpush1.bf16.msra.mxu0 0
    %753 = vmatprep.subr.bf16.mxu0 0
    %754 = vmatpush1.bf16.msra.mxu0 0
    %755 = vmatprep.subr.bf16.mxu0 0
    %756 = vmatpush1.bf16.msra.mxu0 0
    %757 = vmatprep.subr.bf16.mxu0 0
    %758 = vmatpush1.bf16.msra.mxu0 %v740
    %759 = vmatprep.subr.bf16.mxu0 0
    %760 = vmatpush1.bf16.msra.mxu0 %v738
    %761 = vmatprep.subr.bf16.mxu0 0
    %762 = vmatpush1.bf16.msra.mxu0 %v736
    %763 = vmatprep.subr.bf16.mxu0 0
    %764 = vmatpush1.bf16.msra.mxu0 %v734
    %765 = vmatprep.subr.bf16.mxu0 0
    %766 = vmatpush2.bf16.msra.mxu0 0
    %767 = vmatprep.subr.bf16.mxu0 0
    %768 = vmatpush2.bf16.msra.mxu0 0
    %769 = vmatprep.subr.bf16.mxu0 0
    %770 = vmatpush2.bf16.msra.mxu0 0
    %771 = vmatprep.subr.bf16.mxu0 0
    %772 = vmatpush2.bf16.msra.mxu0 0
    %773 = vmatprep.subr.bf16.mxu0 0
    %774 = vmatpush2.bf16.msra.mxu0 0
    %775 = vmatprep.subr.bf16.mxu0 0
    %776 = vmatpush2.bf16.msra.mxu0 0
    %777 = vmatprep.subr.bf16.mxu0 0
    %778 = vmatpush2.bf16.msra.mxu0 0
    %779 = vmatprep.subr.bf16.mxu0 0
    %780 = vmatpush2.bf16.msra.mxu0 0
    %781 = vmatprep.mubr.bf16.mxu0 0
    %782 = vmatmul.mubr.bf16.gmra.mxu0 %v747
    %v783 = vpop.f32.mrf.mxu0
    %v784 = vadd.f32 0.0, %v783
    %v785 = vpop.f32.mrf.mxu0
    %v786 = vpop.f32.mrf.mxu0
    %v787 = vadd.f32 0.0, %v786
    %v788 = vpop.f32.mrf.mxu0
    %789 = vdwg.mxu0
    %v792 = vunpack.c.l.b16 %v66
    %v793 = vunpack.c.l.b16 %v67
    %v794 = vpack.c.b16 %v793, %v792
    %v800 = vsel %vm745, %v794, 0
    %802 = vmatprep.subr.bf16.mxu0 0
    %803 = vmatpush1.bf16.msra.mxu0 0
    %804 = vmatprep.subr.bf16.mxu0 0
    %805 = vmatpush1.bf16.msra.mxu0 0
    %806 = vmatprep.subr.bf16.mxu0 0
    %807 = vmatpush1.bf16.msra.mxu0 0
    %808 = vmatprep.subr.bf16.mxu0 0
    %809 = vmatpush1.bf16.msra.mxu0 0
    %810 = vmatprep.subr.bf16.mxu0 0
    %811 = vmatpush1.bf16.msra.mxu0 %v732
    %812 = vmatprep.subr.bf16.mxu0 0
    %813 = vmatpush1.bf16.msra.mxu0 %v731
    %814 = vmatprep.subr.bf16.mxu0 0
    %815 = vmatpush1.bf16.msra.mxu0 %v730
    %816 = vmatprep.subr.bf16.mxu0 0
    %817 = vmatpush1.bf16.msra.mxu0 %v729
    %818 = vmatprep.subr.bf16.mxu0 0
    %819 = vmatpush2.bf16.msra.mxu0 0
    %820 = vmatprep.subr.bf16.mxu0 0
    %821 = vmatpush2.bf16.msra.mxu0 0
    %822 = vmatprep.subr.bf16.mxu0 0
    %823 = vmatpush2.bf16.msra.mxu0 0
    %824 = vmatprep.subr.bf16.mxu0 0
    %825 = vmatpush2.bf16.msra.mxu0 0
    %826 = vmatprep.subr.bf16.mxu0 0
    %827 = vmatpush2.bf16.msra.mxu0 0
    %828 = vmatprep.subr.bf16.mxu0 0
    %829 = vmatpush2.bf16.msra.mxu0 0
    %830 = vmatprep.subr.bf16.mxu0 0
    %831 = vmatpush2.bf16.msra.mxu0 0
    %832 = vmatprep.subr.bf16.mxu0 0
    %833 = vmatpush2.bf16.msra.mxu0 0
    %834 = vmatprep.mubr.bf16.mxu0 0
    %835 = vmatmul.mubr.bf16.gmra.mxu0 %v800
    %v836 = vpop.f32.mrf.mxu0
    %v837 = vadd.f32 %v784, %v836
    %v838 = vpop.f32.mrf.mxu0
    %v839 = vpop.f32.mrf.mxu0
    %v840 = vadd.f32 %v787, %v839
    %v841 = vpop.f32.mrf.mxu0
    %842 = vdwg.mxu0
    %v845 = vunpack.c.l.b16 %v72
    %v846 = vunpack.c.l.b16 %v73
    %v847 = vpack.c.b16 %v846, %v845
    %848 = vrot.lane.b32.xlu0 %v729, 126
    %v849 = vpop.permute.xlu0 %848
    %850 = vrot.lane.b32.xlu0 %v730, 126
    %v851 = vpop.permute.xlu0 %850
    %852 = vrot.lane.b32.xlu0 %v731, 126
    %v853 = vpop.permute.xlu0 %852
    %854 = vrot.lane.b32.xlu0 %v732, 126
    %v855 = vpop.permute.xlu0 %854
    %v861 = vsel %vm745, %v847, 0
    %863 = vmatprep.subr.bf16.mxu0 0
    %864 = vmatpush1.bf16.msra.mxu0 0
    %865 = vmatprep.subr.bf16.mxu0 0
    %866 = vmatpush1.bf16.msra.mxu0 0
    %867 = vmatprep.subr.bf16.mxu0 0
    %868 = vmatpush1.bf16.msra.mxu0 0
    %869 = vmatprep.subr.bf16.mxu0 0
    %870 = vmatpush1.bf16.msra.mxu0 0
    %871 = vmatprep.subr.bf16.mxu0 0
    %872 = vmatpush1.bf16.msra.mxu0 %v855
    %873 = vmatprep.subr.bf16.mxu0 0
    %874 = vmatpush1.bf16.msra.mxu0 %v853
    %875 = vmatprep.subr.bf16.mxu0 0
    %876 = vmatpush1.bf16.msra.mxu0 %v851
    %877 = vmatprep.subr.bf16.mxu0 0
    %878 = vmatpush1.bf16.msra.mxu0 %v849
    %879 = vmatprep.subr.bf16.mxu0 0
    %880 = vmatpush2.bf16.msra.mxu0 0
    %881 = vmatprep.subr.bf16.mxu0 0
    %882 = vmatpush2.bf16.msra.mxu0 0
    %883 = vmatprep.subr.bf16.mxu0 0
    %884 = vmatpush2.bf16.msra.mxu0 0
    %885 = vmatprep.subr.bf16.mxu0 0
    %886 = vmatpush2.bf16.msra.mxu0 0
    %887 = vmatprep.subr.bf16.mxu0 0
    %888 = vmatpush2.bf16.msra.mxu0 0
    %889 = vmatprep.subr.bf16.mxu0 0
    %890 = vmatpush2.bf16.msra.mxu0 0
    %891 = vmatprep.subr.bf16.mxu0 0
    %892 = vmatpush2.bf16.msra.mxu0 0
    %893 = vmatprep.subr.bf16.mxu0 0
    %894 = vmatpush2.bf16.msra.mxu0 0
    %895 = vmatprep.mubr.bf16.mxu0 0
    %896 = vmatmul.mubr.bf16.gmra.mxu0 %v861
    %v897 = vpop.f32.mrf.mxu0
    %v898 = vadd.f32 0.0, %v897
    %v899 = vpop.f32.mrf.mxu0
    %v900 = vpop.f32.mrf.mxu0
    %v901 = vadd.f32 0.0, %v900
    %v902 = vpop.f32.mrf.mxu0
    %903 = vdwg.mxu0
    %v904 = vadd.f32 %v837, %v898
    %v905 = vadd.f32 %v840, %v901
    %v908 = vunpack.c.l.b16 %v75
    %v909 = vunpack.c.l.b16 %v76
    %v910 = vpack.c.b16 %v909, %v908
    %911 = vrot.lane.b32.xlu0 %v729, 125
    %v912 = vpop.permute.xlu0 %911
    %913 = vrot.lane.b32.xlu0 %v730, 125
    %v914 = vpop.permute.xlu0 %913
    %915 = vrot.lane.b32.xlu0 %v731, 125
    %v916 = vpop.permute.xlu0 %915
    %917 = vrot.lane.b32.xlu0 %v732, 125
    %v918 = vpop.permute.xlu0 %917
    %v924 = vsel %vm745, %v910, 0
    %926 = vmatprep.subr.bf16.mxu0 0
    %927 = vmatpush1.bf16.msra.mxu0 0
    %928 = vmatprep.subr.bf16.mxu0 0
    %929 = vmatpush1.bf16.msra.mxu0 0
    %930 = vmatprep.subr.bf16.mxu0 0
    %931 = vmatpush1.bf16.msra.mxu0 0
    %932 = vmatprep.subr.bf16.mxu0 0
    %933 = vmatpush1.bf16.msra.mxu0 0
    %934 = vmatprep.subr.bf16.mxu0 0
    %935 = vmatpush1.bf16.msra.mxu0 %v918
    %936 = vmatprep.subr.bf16.mxu0 0
    %937 = vmatpush1.bf16.msra.mxu0 %v916
    %938 = vmatprep.subr.bf16.mxu0 0
    %939 = vmatpush1.bf16.msra.mxu0 %v914
    %940 = vmatprep.subr.bf16.mxu0 0
    %941 = vmatpush1.bf16.msra.mxu0 %v912
    %942 = vmatprep.subr.bf16.mxu0 0
    %943 = vmatpush2.bf16.msra.mxu0 0
    %944 = vmatprep.subr.bf16.mxu0 0
    %945 = vmatpush2.bf16.msra.mxu0 0
    %946 = vmatprep.subr.bf16.mxu0 0
    %947 = vmatpush2.bf16.msra.mxu0 0
    %948 = vmatprep.subr.bf16.mxu0 0
    %949 = vmatpush2.bf16.msra.mxu0 0
    %950 = vmatprep.subr.bf16.mxu0 0
    %951 = vmatpush2.bf16.msra.mxu0 0
    %952 = vmatprep.subr.bf16.mxu0 0
    %953 = vmatpush2.bf16.msra.mxu0 0
    %954 = vmatprep.subr.bf16.mxu0 0
    %955 = vmatpush2.bf16.msra.mxu0 0
    %956 = vmatprep.subr.bf16.mxu0 0
    %957 = vmatpush2.bf16.msra.mxu0 0
    %958 = vmatprep.mubr.bf16.mxu0 0
    %959 = vmatmul.mubr.bf16.gmra.mxu0 %v924
    %v960 = vpop.f32.mrf.mxu0
    %v961 = vadd.f32 0.0, %v960
    %v962 = vpop.f32.mrf.mxu0
    %v963 = vpop.f32.mrf.mxu0
    %v964 = vadd.f32 0.0, %v963
    %v965 = vpop.f32.mrf.mxu0
    %966 = vdwg.mxu0
    %v967 = vadd.f32 %v904, %v961
    %v968 = vadd.f32 %v905, %v964
    %v971 = vunpack.c.l.b16 %v78
    %v972 = vunpack.c.l.b16 %v79
    %v973 = vpack.c.b16 %v972, %v971
    %974 = vrot.lane.b32.xlu0 %v729, 124
    %v975 = vpop.permute.xlu0 %974
    %976 = vrot.lane.b32.xlu0 %v730, 124
    %v977 = vpop.permute.xlu0 %976
    %978 = vrot.lane.b32.xlu0 %v731, 124
    %v979 = vpop.permute.xlu0 %978
    %980 = vrot.lane.b32.xlu0 %v732, 124
    %v981 = vpop.permute.xlu0 %980
    %v987 = vsel %vm745, %v973, 0
    %989 = vmatprep.subr.bf16.mxu0 0
    %990 = vmatpush1.bf16.msra.mxu0 0
    %991 = vmatprep.subr.bf16.mxu0 0
    %992 = vmatpush1.bf16.msra.mxu0 0
    %993 = vmatprep.subr.bf16.mxu0 0
    %994 = vmatpush1.bf16.msra.mxu0 0
    %995 = vmatprep.subr.bf16.mxu0 0
    %996 = vmatpush1.bf16.msra.mxu0 0
    %997 = vmatprep.subr.bf16.mxu0 0
    %998 = vmatpush1.bf16.msra.mxu0 %v981
    %999 = vmatprep.subr.bf16.mxu0 0
    %1000 = vmatpush1.bf16.msra.mxu0 %v979
    %1001 = vmatprep.subr.bf16.mxu0 0
    %1002 = vmatpush1.bf16.msra.mxu0 %v977
    %1003 = vmatprep.subr.bf16.mxu0 0
    %1004 = vmatpush1.bf16.msra.mxu0 %v975
    %1005 = vmatprep.subr.bf16.mxu0 0
    %1006 = vmatpush2.bf16.msra.mxu0 0
    %1007 = vmatprep.subr.bf16.mxu0 0
    %1008 = vmatpush2.bf16.msra.mxu0 0
    %1009 = vmatprep.subr.bf16.mxu0 0
    %1010 = vmatpush2.bf16.msra.mxu0 0
    %1011 = vmatprep.subr.bf16.mxu0 0
    %1012 = vmatpush2.bf16.msra.mxu0 0
    %1013 = vmatprep.subr.bf16.mxu0 0
    %1014 = vmatpush2.bf16.msra.mxu0 0
    %1015 = vmatprep.subr.bf16.mxu0 0
    %1016 = vmatpush2.bf16.msra.mxu0 0
    %1017 = vmatprep.subr.bf16.mxu0 0
    %1018 = vmatpush2.bf16.msra.mxu0 0
    %1019 = vmatprep.subr.bf16.mxu0 0
    %1020 = vmatpush2.bf16.msra.mxu0 0
    %1021 = vmatprep.mubr.bf16.mxu0 0
    %1022 = vmatmul.mubr.bf16.gmra.mxu0 %v987
    %v1023 = vpop.f32.mrf.mxu0
    %v1024 = vadd.f32 0.0, %v1023
    %v1025 = vpop.f32.mrf.mxu0
    %v1026 = vpop.f32.mrf.mxu0
    %v1027 = vadd.f32 0.0, %v1026
    %v1028 = vpop.f32.mrf.mxu0
    %1029 = vdwg.mxu0
    %v1030 = vadd.f32 %v967, %v1024
    %v1031 = vadd.f32 %v968, %v1027
    %1033 = vset.pattern.permute.xlu0 0
    %1034 = vperm.xlu0 %1033, %v102
    %v1035 = vpop.permute.xlu0 %1034
    %1038 = vset.pattern.permute.xlu0 0
    %1039 = vperm.xlu0 %1038, %v103
    %v1040 = vpop.permute.xlu0 %1039
    %v1042 = vadd.f32 %v1030, %v1035
    %v1043 = vadd.f32 %v1031, %v1040
    %v1044 = vmax.f32 %v1042, 0.0
    %v1045 = vmax.f32 %v1043, 0.0
    %1047 = vset.pattern.permute.xlu0 0
    %1048 = vperm.xlu0 %1047, %v108
    %v1049 = vpop.permute.xlu0 %1048
    %v1052 = vunpack.c.l.s4 839922192
    %v1053 = vunpack.c.0.s8 %v1052
    %v1054 = vlaneseq
    %v1055 = vshrl.u32 %v1054, 7
    %v1056 = vsub.s32 %v1053, %v1055
    %v1057 = vrot.slane %v1049, %v1056
    %v1059 = vunpack.c.l.s4 1985246804
    %v1060 = vunpack.c.0.s8 %v1059
    %v1061 = vlaneseq
    %v1062 = vshrl.u32 %v1061, 7
    %v1063 = vsub.s32 %v1060, %v1062
    %v1064 = vrot.slane %v1049, %v1063
    %vm1067 = vcmask 11264
    %1068 = vst.msk [vmem:[#allocation4] sm:$0xf] %vm1067, %v1057
    %1069 = vst.msk [vmem:[#allocation4 + $0x4] sm:$0xf] %vm1067, %v1064
    %v1070 = vpack.c.bf16 %v1045, %v1044
    %v1072 = vunpack.c.l.b16 %v1070
    %v1073 = vunpack.c.h.b16 %v1070
    %v1074 = vpack.c.b16 %v1072, %v1072
    %v1075 = vpack.c.b16 %v1073, %v1073
    %1076 = vrot.lane.b32.xlu0 %v1074, 2
    %v1077 = vpop.permute.xlu0 %1076
    %1078 = vrot.lane.b32.xlu0 %v1075, 2
    %v1079 = vpop.permute.xlu0 %1078
    %vm1082 = vcmask 109584
    %1083 = vst.msk [vmem:[#allocation4] sm:$0xf] %vm1082, %v1077
    %1084 = vst.msk [vmem:[#allocation4 + $0x4] sm:$0xf] %vm1082, %v1079
    %vm1085 = vcmask 126064
    %1086 = vst.msk [vmem:[#allocation4] sm:$0xf] %vm1085, %v1057
    %1087 = vst.msk [vmem:[#allocation4 + $0x4] sm:$0xf] %vm1085, %v1064
    %v1088 = vld [vmem:[#allocation4] sm:$0xf]
    %v1089 = vld [vmem:[#allocation4 + $0x4] sm:$0xf]
    %v1092 = vunpack.c.l.b16 %v83
    %v1093 = vunpack.c.l.b16 %v84
    %v1094 = vpack.c.b16 %v1093, %v1092
    %v1097 = vunpack.c.l.b16 %v1088
    %v1098 = vunpack.c.l.b16 %v1089
    %v1099 = vpack.c.b16 %v1098, %v1097
    %1100 = vrot.lane.b32.xlu0 %v1099, 127
    %v1101 = vpop.permute.xlu0 %1100
    %v1104 = vsel %vm162, %v1094, 0
    %1106 = vmatprep.subr.bf16.mxu0 0
    %1107 = vmatpush1.bf16.msra.mxu0 0
    %1108 = vmatprep.subr.bf16.mxu0 0
    %1109 = vmatpush1.bf16.msra.mxu0 0
    %1110 = vmatprep.subr.bf16.mxu0 0
    %1111 = vmatpush1.bf16.msra.mxu0 0
    %1112 = vmatprep.subr.bf16.mxu0 0
    %1113 = vmatpush1.bf16.msra.mxu0 0
    %1114 = vmatprep.subr.bf16.mxu0 0
    %1115 = vmatpush1.bf16.msra.mxu0 0
    %1116 = vmatprep.subr.bf16.mxu0 0
    %1117 = vmatpush1.bf16.msra.mxu0 0
    %1118 = vmatprep.subr.bf16.mxu0 0
    %1119 = vmatpush1.bf16.msra.mxu0 0
    %1120 = vmatprep.subr.bf16.mxu0 0
    %1121 = vmatpush1.bf16.msra.mxu0 %v1101
    %1122 = vmatprep.subr.bf16.mxu0 0
    %1123 = vmatpush2.bf16.msra.mxu0 0
    %1124 = vmatprep.subr.bf16.mxu0 0
    %1125 = vmatpush2.bf16.msra.mxu0 0
    %1126 = vmatprep.subr.bf16.mxu0 0
    %1127 = vmatpush2.bf16.msra.mxu0 0
    %1128 = vmatprep.subr.bf16.mxu0 0
    %1129 = vmatpush2.bf16.msra.mxu0 0
    %1130 = vmatprep.subr.bf16.mxu0 0
    %1131 = vmatpush2.bf16.msra.mxu0 0
    %1132 = vmatprep.subr.bf16.mxu0 0
    %1133 = vmatpush2.bf16.msra.mxu0 0
    %1134 = vmatprep.subr.bf16.mxu0 0
    %1135 = vmatpush2.bf16.msra.mxu0 0
    %1136 = vmatprep.subr.bf16.mxu0 0
    %1137 = vmatpush2.bf16.msra.mxu0 0
    %1138 = vmatprep.mubr.bf16.mxu0 0
    %1139 = vmatmul.mubr.bf16.gmra.mxu0 %v1104
    %v1140 = vpop.f32.mrf.mxu0
    %v1141 = vadd.f32 0.0, %v1140
    %v1142 = vpop.f32.mrf.mxu0
    %v1143 = vpop.f32.mrf.mxu0
    %v1144 = vadd.f32 0.0, %v1143
    %v1145 = vpop.f32.mrf.mxu0
    %1146 = vdwg.mxu0
    %v1149 = vunpack.c.l.b16 %v80
    %v1150 = vunpack.c.l.b16 %v81
    %v1151 = vpack.c.b16 %v1150, %v1149
    %v1154 = vsel %vm162, %v1151, 0
    %1156 = vmatprep.subr.bf16.mxu0 0
    %1157 = vmatpush1.bf16.msra.mxu0 0
    %1158 = vmatprep.subr.bf16.mxu0 0
    %1159 = vmatpush1.bf16.msra.mxu0 0
    %1160 = vmatprep.subr.bf16.mxu0 0
    %1161 = vmatpush1.bf16.msra.mxu0 0
    %1162 = vmatprep.subr.bf16.mxu0 0
    %1163 = vmatpush1.bf16.msra.mxu0 0
    %1164 = vmatprep.subr.bf16.mxu0 0
    %1165 = vmatpush1.bf16.msra.mxu0 0
    %1166 = vmatprep.subr.bf16.mxu0 0
    %1167 = vmatpush1.bf16.msra.mxu0 0
    %1168 = vmatprep.subr.bf16.mxu0 0
    %1169 = vmatpush1.bf16.msra.mxu0 0
    %1170 = vmatprep.subr.bf16.mxu0 0
    %1171 = vmatpush1.bf16.msra.mxu0 %v1099
    %1172 = vmatprep.subr.bf16.mxu0 0
    %1173 = vmatpush2.bf16.msra.mxu0 0
    %1174 = vmatprep.subr.bf16.mxu0 0
    %1175 = vmatpush2.bf16.msra.mxu0 0
    %1176 = vmatprep.subr.bf16.mxu0 0
    %1177 = vmatpush2.bf16.msra.mxu0 0
    %1178 = vmatprep.subr.bf16.mxu0 0
    %1179 = vmatpush2.bf16.msra.mxu0 0
    %1180 = vmatprep.subr.bf16.mxu0 0
    %1181 = vmatpush2.bf16.msra.mxu0 0
    %1182 = vmatprep.subr.bf16.mxu0 0
    %1183 = vmatpush2.bf16.msra.mxu0 0
    %1184 = vmatprep.subr.bf16.mxu0 0
    %1185 = vmatpush2.bf16.msra.mxu0 0
    %1186 = vmatprep.subr.bf16.mxu0 0
    %1187 = vmatpush2.bf16.msra.mxu0 0
    %1188 = vmatprep.mubr.bf16.mxu0 0
    %1189 = vmatmul.mubr.bf16.gmra.mxu0 %v1154
    %v1190 = vpop.f32.mrf.mxu0
    %v1191 = vadd.f32 %v1141, %v1190
    %v1192 = vpop.f32.mrf.mxu0
    %v1193 = vpop.f32.mrf.mxu0
    %v1194 = vadd.f32 %v1144, %v1193
    %v1195 = vpop.f32.mrf.mxu0
    %1196 = vdwg.mxu0
    %v1199 = vunpack.c.l.b16 %v86
    %v1200 = vunpack.c.l.b16 %v87
    %v1201 = vpack.c.b16 %v1200, %v1199
    %1202 = vrot.lane.b32.xlu0 %v1099, 126
    %v1203 = vpop.permute.xlu0 %1202
    %v1206 = vsel %vm162, %v1201, 0
    %1208 = vmatprep.subr.bf16.mxu0 0
    %1209 = vmatpush1.bf16.msra.mxu0 0
    %1210 = vmatprep.subr.bf16.mxu0 0
    %1211 = vmatpush1.bf16.msra.mxu0 0
    %1212 = vmatprep.subr.bf16.mxu0 0
    %1213 = vmatpush1.bf16.msra.mxu0 0
    %1214 = vmatprep.subr.bf16.mxu0 0
    %1215 = vmatpush1.bf16.msra.mxu0 0
    %1216 = vmatprep.subr.bf16.mxu0 0
    %1217 = vmatpush1.bf16.msra.mxu0 0
    %1218 = vmatprep.subr.bf16.mxu0 0
    %1219 = vmatpush1.bf16.msra.mxu0 0
    %1220 = vmatprep.subr.bf16.mxu0 0
    %1221 = vmatpush1.bf16.msra.mxu0 0
    %1222 = vmatprep.subr.bf16.mxu0 0
    %1223 = vmatpush1.bf16.msra.mxu0 %v1203
    %1224 = vmatprep.subr.bf16.mxu0 0
    %1225 = vmatpush2.bf16.msra.mxu0 0
    %1226 = vmatprep.subr.bf16.mxu0 0
    %1227 = vmatpush2.bf16.msra.mxu0 0
    %1228 = vmatprep.subr.bf16.mxu0 0
    %1229 = vmatpush2.bf16.msra.mxu0 0
    %1230 = vmatprep.subr.bf16.mxu0 0
    %1231 = vmatpush2.bf16.msra.mxu0 0
    %1232 = vmatprep.subr.bf16.mxu0 0
    %1233 = vmatpush2.bf16.msra.mxu0 0
    %1234 = vmatprep.subr.bf16.mxu0 0
    %1235 = vmatpush2.bf16.msra.mxu0 0
    %1236 = vmatprep.subr.bf16.mxu0 0
    %1237 = vmatpush2.bf16.msra.mxu0 0
    %1238 = vmatprep.subr.bf16.mxu0 0
    %1239 = vmatpush2.bf16.msra.mxu0 0
    %1240 = vmatprep.mubr.bf16.mxu0 0
    %1241 = vmatmul.mubr.bf16.gmra.mxu0 %v1206
    %v1242 = vpop.f32.mrf.mxu0
    %v1243 = vadd.f32 0.0, %v1242
    %v1244 = vpop.f32.mrf.mxu0
    %v1245 = vpop.f32.mrf.mxu0
    %v1246 = vadd.f32 0.0, %v1245
    %v1247 = vpop.f32.mrf.mxu0
    %1248 = vdwg.mxu0
    %v1249 = vadd.f32 %v1191, %v1243
    %v1250 = vadd.f32 %v1194, %v1246
    %v1253 = vunpack.c.l.b16 %v89
    %v1254 = vunpack.c.l.b16 %v90
    %v1255 = vpack.c.b16 %v1254, %v1253
    %1256 = vrot.lane.b32.xlu0 %v1099, 125
    %v1257 = vpop.permute.xlu0 %1256
    %v1260 = vsel %vm162, %v1255, 0
    %1262 = vmatprep.subr.bf16.mxu0 0
    %1263 = vmatpush1.bf16.msra.mxu0 0
    %1264 = vmatprep.subr.bf16.mxu0 0
    %1265 = vmatpush1.bf16.msra.mxu0 0
    %1266 = vmatprep.subr.bf16.mxu0 0
    %1267 = vmatpush1.bf16.msra.mxu0 0
    %1268 = vmatprep.subr.bf16.mxu0 0
    %1269 = vmatpush1.bf16.msra.mxu0 0
    %1270 = vmatprep.subr.bf16.mxu0 0
    %1271 = vmatpush1.bf16.msra.mxu0 0
    %1272 = vmatprep.subr.bf16.mxu0 0
    %1273 = vmatpush1.bf16.msra.mxu0 0
    %1274 = vmatprep.subr.bf16.mxu0 0
    %1275 = vmatpush1.bf16.msra.mxu0 0
    %1276 = vmatprep.subr.bf16.mxu0 0
    %1277 = vmatpush1.bf16.msra.mxu0 %v1257
    %1278 = vmatprep.subr.bf16.mxu0 0
    %1279 = vmatpush2.bf16.msra.mxu0 0
    %1280 = vmatprep.subr.bf16.mxu0 0
    %1281 = vmatpush2.bf16.msra.mxu0 0
    %1282 = vmatprep.subr.bf16.mxu0 0
    %1283 = vmatpush2.bf16.msra.mxu0 0
    %1284 = vmatprep.subr.bf16.mxu0 0
    %1285 = vmatpush2.bf16.msra.mxu0 0
    %1286 = vmatprep.subr.bf16.mxu0 0
    %1287 = vmatpush2.bf16.msra.mxu0 0
    %1288 = vmatprep.subr.bf16.mxu0 0
    %1289 = vmatpush2.bf16.msra.mxu0 0
    %1290 = vmatprep.subr.bf16.mxu0 0
    %1291 = vmatpush2.bf16.msra.mxu0 0
    %1292 = vmatprep.subr.bf16.mxu0 0
    %1293 = vmatpush2.bf16.msra.mxu0 0
    %1294 = vmatprep.mubr.bf16.mxu0 0
    %1295 = vmatmul.mubr.bf16.gmra.mxu0 %v1260
    %v1296 = vpop.f32.mrf.mxu0
    %v1297 = vadd.f32 0.0, %v1296
    %v1298 = vpop.f32.mrf.mxu0
    %v1299 = vpop.f32.mrf.mxu0
    %v1300 = vadd.f32 0.0, %v1299
    %v1301 = vpop.f32.mrf.mxu0
    %1302 = vdwg.mxu0
    %v1303 = vadd.f32 %v1249, %v1297
    %v1304 = vadd.f32 %v1250, %v1300
    %v1307 = vunpack.c.l.b16 %v92
    %v1308 = vunpack.c.l.b16 %v93
    %v1309 = vpack.c.b16 %v1308, %v1307
    %1310 = vrot.lane.b32.xlu0 %v1099, 124
    %v1311 = vpop.permute.xlu0 %1310
    %v1314 = vsel %vm162, %v1309, 0
    %1316 = vmatprep.subr.bf16.mxu0 0
    %1317 = vmatpush1.bf16.msra.mxu0 0
    %1318 = vmatprep.subr.bf16.mxu0 0
    %1319 = vmatpush1.bf16.msra.mxu0 0
    %1320 = vmatprep.subr.bf16.mxu0 0
    %1321 = vmatpush1.bf16.msra.mxu0 0
    %1322 = vmatprep.subr.bf16.mxu0 0
    %1323 = vmatpush1.bf16.msra.mxu0 0
    %1324 = vmatprep.subr.bf16.mxu0 0
    %1325 = vmatpush1.bf16.msra.mxu0 0
    %1326 = vmatprep.subr.bf16.mxu0 0
    %1327 = vmatpush1.bf16.msra.mxu0 0
    %1328 = vmatprep.subr.bf16.mxu0 0
    %1329 = vmatpush1.bf16.msra.mxu0 0
    %1330 = vmatprep.subr.bf16.mxu0 0
    %1331 = vmatpush1.bf16.msra.mxu0 %v1311
    %1332 = vmatprep.subr.bf16.mxu0 0
    %1333 = vmatpush2.bf16.msra.mxu0 0
    %1334 = vmatprep.subr.bf16.mxu0 0
    %1335 = vmatpush2.bf16.msra.mxu0 0
    %1336 = vmatprep.subr.bf16.mxu0 0
    %1337 = vmatpush2.bf16.msra.mxu0 0
    %1338 = vmatprep.subr.bf16.mxu0 0
    %1339 = vmatpush2.bf16.msra.mxu0 0
    %1340 = vmatprep.subr.bf16.mxu0 0
    %1341 = vmatpush2.bf16.msra.mxu0 0
    %1342 = vmatprep.subr.bf16.mxu0 0
    %1343 = vmatpush2.bf16.msra.mxu0 0
    %1344 = vmatprep.subr.bf16.mxu0 0
    %1345 = vmatpush2.bf16.msra.mxu0 0
    %1346 = vmatprep.subr.bf16.mxu0 0
    %1347 = vmatpush2.bf16.msra.mxu0 0
    %1348 = vmatprep.mubr.bf16.mxu0 0
    %1349 = vmatmul.mubr.bf16.gmra.mxu0 %v1314
    %v1350 = vpop.f32.mrf.mxu0
    %v1351 = vadd.f32 0.0, %v1350
    %v1352 = vpop.f32.mrf.mxu0
    %v1353 = vpop.f32.mrf.mxu0
    %v1354 = vadd.f32 0.0, %v1353
    %v1355 = vpop.f32.mrf.mxu0
    %1356 = vdwg.mxu0
    %v1357 = vadd.f32 %v1303, %v1351
    %v1358 = vadd.f32 %v1304, %v1354
    %1360 = vset.pattern.permute.xlu0 0
    %1361 = vperm.xlu0 %1360, %v104
    %v1362 = vpop.permute.xlu0 %1361
    %1365 = vset.pattern.permute.xlu0 0
    %1366 = vperm.xlu0 %1365, %v105
    %v1367 = vpop.permute.xlu0 %1366
    %v1369 = vadd.f32 %v1357, %v1362
    %v1370 = vadd.f32 %v1358, %v1367
    %v1371 = vmax.f32 %v1369, 0.0
    %v1372 = vmax.f32 %v1370, 0.0
    %1374 = vset.pattern.permute.xlu0 0
    %1375 = vperm.xlu0 %1374, %v106
    %v1376 = vpop.permute.xlu0 %1375
    %1379 = vset.pattern.permute.xlu0 0
    %1380 = vperm.xlu0 %1379, %v107
    %v1381 = vpop.permute.xlu0 %1380
    %vm1383 = vcmask 15360
    %1384 = vst.msk [vmem:[#allocation5] sm:$0xff] %vm1383, %v1376
    %1385 = vst.msk [vmem:[#allocation5 + $0x8] sm:$0xff] %vm1383, %v1381
    %1388 = vrot.lane.b32.xlu0 %v1371, 2
    %v1389 = vpop.permute.xlu0 %1388
    %1390 = vrot.lane.b32.xlu0 %v1372, 2
    %v1391 = vpop.permute.xlu0 %1390
    %vm1394 = vcmask 113680
    %1395 = vst.msk [vmem:[#allocation5] sm:$0xff] %vm1394, %v1389
    %1396 = vst.msk [vmem:[#allocation5 + $0x8] sm:$0xff] %vm1394, %v1391
    %vm1397 = vcmask 130160
    %1398 = vst.msk [vmem:[#allocation5] sm:$0xff] %vm1397, %v1376
    %1399 = vst.msk [vmem:[#allocation5 + $0x8] sm:$0xff] %vm1397, %v1381
    %s1400 = scalar_lea.vmem [#allocation2], 8
    %1401 = vst.msk [vmem:[%s1400] sm:$0xf] %vm109, 0
    %1402 = vst.msk [vmem:[%s1400 + $0x4] sm:$0xf] %vm109, 0
    %s1403 = scalar_lea.vmem %s0, 16
    %v1404 = vld [vmem:[%s1403] sm:$0xff]
    %v1405 = vld [vmem:[%s1403 + $0x8] sm:$0xff]
    %v1406 = vpack.c.bf16 %v1405, %v1404
    %v1408 = vunpack.c.l.b16 %v1406
    %v1409 = vunpack.c.h.b16 %v1406
    %v1410 = vpack.c.b16 %v1408, %v1408
    %v1411 = vpack.c.b16 %v1409, %v1409
    %1412 = vrot.lane.b32.xlu0 %v1410, 1
    %v1413 = vpop.permute.xlu0 %1412
    %1414 = vrot.lane.b32.xlu0 %v1411, 1
    %v1415 = vpop.permute.xlu0 %1414
    %1418 = vst.msk [vmem:[%s1400] sm:$0xf] %vm126, %v1413
    %1419 = vst.msk [vmem:[%s1400 + $0x4] sm:$0xf] %vm126, %v1415
    %1420 = vst.msk [vmem:[%s1400] sm:$0xf] %vm129, 0
    %1421 = vst.msk [vmem:[%s1400 + $0x4] sm:$0xf] %vm129, 0
    %v1422 = vld [vmem:[%s1400] sm:$0xf]
    %v1423 = vld [vmem:[%s1400 + $0x4] sm:$0xf]
    %v1426 = vunpack.c.l.b16 %v1422
    %v1427 = vunpack.c.l.b16 %v1423
    %v1428 = vpack.c.b16 %v1427, %v1426
    %1429 = vrot.lane.b32.xlu0 %v1428, 127
    %v1430 = vpop.permute.xlu0 %1429
    %1432 = vmatprep.subr.bf16.mxu0 0
    %1433 = vmatpush1.bf16.msra.mxu0 0
    %1434 = vmatprep.subr.bf16.mxu0 0
    %1435 = vmatpush1.bf16.msra.mxu0 0
    %1436 = vmatprep.subr.bf16.mxu0 0
    %1437 = vmatpush1.bf16.msra.mxu0 0
    %1438 = vmatprep.subr.bf16.mxu0 0
    %1439 = vmatpush1.bf16.msra.mxu0 0
    %1440 = vmatprep.subr.bf16.mxu0 0
    %1441 = vmatpush1.bf16.msra.mxu0 0
    %1442 = vmatprep.subr.bf16.mxu0 0
    %1443 = vmatpush1.bf16.msra.mxu0 0
    %1444 = vmatprep.subr.bf16.mxu0 0
    %1445 = vmatpush1.bf16.msra.mxu0 0
    %1446 = vmatprep.subr.bf16.mxu0 0
    %1447 = vmatpush1.bf16.msra.mxu0 %v1430
    %1448 = vmatprep.subr.bf16.mxu0 0
    %1449 = vmatpush2.bf16.msra.mxu0 0
    %1450 = vmatprep.subr.bf16.mxu0 0
    %1451 = vmatpush2.bf16.msra.mxu0 0
    %1452 = vmatprep.subr.bf16.mxu0 0
    %1453 = vmatpush2.bf16.msra.mxu0 0
    %1454 = vmatprep.subr.bf16.mxu0 0
    %1455 = vmatpush2.bf16.msra.mxu0 0
    %1456 = vmatprep.subr.bf16.mxu0 0
    %1457 = vmatpush2.bf16.msra.mxu0 0
    %1458 = vmatprep.subr.bf16.mxu0 0
    %1459 = vmatpush2.bf16.msra.mxu0 0
    %1460 = vmatprep.subr.bf16.mxu0 0
    %1461 = vmatpush2.bf16.msra.mxu0 0
    %1462 = vmatprep.subr.bf16.mxu0 0
    %1463 = vmatpush2.bf16.msra.mxu0 0
    %1464 = vmatprep.mubr.bf16.mxu0 0
    %1465 = vmatmul.mubr.bf16.gmra.mxu0 %v164
    %v1466 = vpop.f32.mrf.mxu0
    %v1467 = vadd.f32 0.0, %v1466
    %v1468 = vpop.f32.mrf.mxu0
    %v1469 = vpop.f32.mrf.mxu0
    %v1470 = vadd.f32 0.0, %v1469
    %v1471 = vpop.f32.mrf.mxu0
    %1472 = vmatprep.mubr.bf16.mxu0 0
    %1473 = vmatmul.mubr.bf16.gmra.mxu0 %v167
    %v1474 = vpop.f32.mrf.mxu0
    %v1475 = vadd.f32 0.0, %v1474
    %v1476 = vpop.f32.mrf.mxu0
    %v1477 = vpop.f32.mrf.mxu0
    %v1478 = vadd.f32 0.0, %v1477
    %v1479 = vpop.f32.mrf.mxu0
    %1480 = vmatprep.mubr.bf16.mxu0 0
    %1481 = vmatmul.mubr.bf16.gmra.mxu0 %v170
    %v1482 = vpop.f32.mrf.mxu0
    %v1483 = vadd.f32 0.0, %v1482
    %v1484 = vpop.f32.mrf.mxu0
    %v1485 = vpop.f32.mrf.mxu0
    %v1486 = vadd.f32 0.0, %v1485
    %v1487 = vpop.f32.mrf.mxu0
    %1488 = vmatprep.mubr.bf16.mxu0 0
    %1489 = vmatmul.mubr.bf16.gmra.mxu0 %v173
    %v1490 = vpop.f32.mrf.mxu0
    %v1491 = vadd.f32 0.0, %v1490
    %v1492 = vpop.f32.mrf.mxu0
    %v1493 = vpop.f32.mrf.mxu0
    %v1494 = vadd.f32 0.0, %v1493
    %v1495 = vpop.f32.mrf.mxu0
    %1496 = vdwg.mxu0
    %1498 = vmatprep.subr.bf16.mxu0 0
    %1499 = vmatpush1.bf16.msra.mxu0 0
    %1500 = vmatprep.subr.bf16.mxu0 0
    %1501 = vmatpush1.bf16.msra.mxu0 0
    %1502 = vmatprep.subr.bf16.mxu0 0
    %1503 = vmatpush1.bf16.msra.mxu0 0
    %1504 = vmatprep.subr.bf16.mxu0 0
    %1505 = vmatpush1.bf16.msra.mxu0 0
    %1506 = vmatprep.subr.bf16.mxu0 0
    %1507 = vmatpush1.bf16.msra.mxu0 0
    %1508 = vmatprep.subr.bf16.mxu0 0
    %1509 = vmatpush1.bf16.msra.mxu0 0
    %1510 = vmatprep.subr.bf16.mxu0 0
    %1511 = vmatpush1.bf16.msra.mxu0 0
    %1512 = vmatprep.subr.bf16.mxu0 0
    %1513 = vmatpush1.bf16.msra.mxu0 %v1428
    %1514 = vmatprep.subr.bf16.mxu0 0
    %1515 = vmatpush2.bf16.msra.mxu0 0
    %1516 = vmatprep.subr.bf16.mxu0 0
    %1517 = vmatpush2.bf16.msra.mxu0 0
    %1518 = vmatprep.subr.bf16.mxu0 0
    %1519 = vmatpush2.bf16.msra.mxu0 0
    %1520 = vmatprep.subr.bf16.mxu0 0
    %1521 = vmatpush2.bf16.msra.mxu0 0
    %1522 = vmatprep.subr.bf16.mxu0 0
    %1523 = vmatpush2.bf16.msra.mxu0 0
    %1524 = vmatprep.subr.bf16.mxu0 0
    %1525 = vmatpush2.bf16.msra.mxu0 0
    %1526 = vmatprep.subr.bf16.mxu0 0
    %1527 = vmatpush2.bf16.msra.mxu0 0
    %1528 = vmatprep.subr.bf16.mxu0 0
    %1529 = vmatpush2.bf16.msra.mxu0 0
    %1530 = vmatprep.mubr.bf16.mxu0 0
    %1531 = vmatmul.mubr.bf16.gmra.mxu0 %v262
    %v1532 = vpop.f32.mrf.mxu0
    %v1533 = vadd.f32 %v1467, %v1532
    %v1534 = vpop.f32.mrf.mxu0
    %v1535 = vpop.f32.mrf.mxu0
    %v1536 = vadd.f32 %v1470, %v1535
    %v1537 = vpop.f32.mrf.mxu0
    %1538 = vmatprep.mubr.bf16.mxu0 0
    %1539 = vmatmul.mubr.bf16.gmra.mxu0 %v265
    %v1540 = vpop.f32.mrf.mxu0
    %v1541 = vadd.f32 %v1475, %v1540
    %v1542 = vpop.f32.mrf.mxu0
    %v1543 = vpop.f32.mrf.mxu0
    %v1544 = vadd.f32 %v1478, %v1543
    %v1545 = vpop.f32.mrf.mxu0
    %1546 = vmatprep.mubr.bf16.mxu0 0
    %1547 = vmatmul.mubr.bf16.gmra.mxu0 %v268
    %v1548 = vpop.f32.mrf.mxu0
    %v1549 = vadd.f32 %v1483, %v1548
    %v1550 = vpop.f32.mrf.mxu0
    %v1551 = vpop.f32.mrf.mxu0
    %v1552 = vadd.f32 %v1486, %v1551
    %v1553 = vpop.f32.mrf.mxu0
    %1554 = vmatprep.mubr.bf16.mxu0 0
    %1555 = vmatmul.mubr.bf16.gmra.mxu0 %v271
    %v1556 = vpop.f32.mrf.mxu0
    %v1557 = vadd.f32 %v1491, %v1556
    %v1558 = vpop.f32.mrf.mxu0
    %v1559 = vpop.f32.mrf.mxu0
    %v1560 = vadd.f32 %v1494, %v1559
    %v1561 = vpop.f32.mrf.mxu0
    %1562 = vdwg.mxu0
    %1563 = vrot.lane.b32.xlu0 %v1428, 126
    %v1564 = vpop.permute.xlu0 %1563
    %1566 = vmatprep.subr.bf16.mxu0 0
    %1567 = vmatpush1.bf16.msra.mxu0 0
    %1568 = vmatprep.subr.bf16.mxu0 0
    %1569 = vmatpush1.bf16.msra.mxu0 0
    %1570 = vmatprep.subr.bf16.mxu0 0
    %1571 = vmatpush1.bf16.msra.mxu0 0
    %1572 = vmatprep.subr.bf16.mxu0 0
    %1573 = vmatpush1.bf16.msra.mxu0 0
    %1574 = vmatprep.subr.bf16.mxu0 0
    %1575 = vmatpush1.bf16.msra.mxu0 0
    %1576 = vmatprep.subr.bf16.mxu0 0
    %1577 = vmatpush1.bf16.msra.mxu0 0
    %1578 = vmatprep.subr.bf16.mxu0 0
    %1579 = vmatpush1.bf16.msra.mxu0 0
    %1580 = vmatprep.subr.bf16.mxu0 0
    %1581 = vmatpush1.bf16.msra.mxu0 %v1564
    %1582 = vmatprep.subr.bf16.mxu0 0
    %1583 = vmatpush2.bf16.msra.mxu0 0
    %1584 = vmatprep.subr.bf16.mxu0 0
    %1585 = vmatpush2.bf16.msra.mxu0 0
    %1586 = vmatprep.subr.bf16.mxu0 0
    %1587 = vmatpush2.bf16.msra.mxu0 0
    %1588 = vmatprep.subr.bf16.mxu0 0
    %1589 = vmatpush2.bf16.msra.mxu0 0
    %1590 = vmatprep.subr.bf16.mxu0 0
    %1591 = vmatpush2.bf16.msra.mxu0 0
    %1592 = vmatprep.subr.bf16.mxu0 0
    %1593 = vmatpush2.bf16.msra.mxu0 0
    %1594 = vmatprep.subr.bf16.mxu0 0
    %1595 = vmatpush2.bf16.msra.mxu0 0
    %1596 = vmatprep.subr.bf16.mxu0 0
    %1597 = vmatpush2.bf16.msra.mxu0 0
    %1598 = vmatprep.mubr.bf16.mxu0 0
    %1599 = vmatmul.mubr.bf16.gmra.mxu0 %v362
    %v1600 = vpop.f32.mrf.mxu0
    %v1601 = vadd.f32 0.0, %v1600
    %v1602 = vpop.f32.mrf.mxu0
    %v1603 = vpop.f32.mrf.mxu0
    %v1604 = vadd.f32 0.0, %v1603
    %v1605 = vpop.f32.mrf.mxu0
    %1606 = vmatprep.mubr.bf16.mxu0 0
    %1607 = vmatmul.mubr.bf16.gmra.mxu0 %v365
    %v1608 = vpop.f32.mrf.mxu0
    %v1609 = vadd.f32 0.0, %v1608
    %v1610 = vpop.f32.mrf.mxu0
    %v1611 = vpop.f32.mrf.mxu0
    %v1612 = vadd.f32 0.0, %v1611
    %v1613 = vpop.f32.mrf.mxu0
    %1614 = vmatprep.mubr.bf16.mxu0 0
    %1615 = vmatmul.mubr.bf16.gmra.mxu0 %v368
    %v1616 = vpop.f32.mrf.mxu0
    %v1617 = vadd.f32 0.0, %v1616
    %v1618 = vpop.f32.mrf.mxu0
    %v1619 = vpop.f32.mrf.mxu0
    %v1620 = vadd.f32 0.0, %v1619
    %v1621 = vpop.f32.mrf.mxu0
    %1622 = vmatprep.mubr.bf16.mxu0 0
    %1623 = vmatmul.mubr.bf16.gmra.mxu0 %v371
    %v1624 = vpop.f32.mrf.mxu0
    %v1625 = vadd.f32 0.0, %v1624
    %v1626 = vpop.f32.mrf.mxu0
    %v1627 = vpop.f32.mrf.mxu0
    %v1628 = vadd.f32 0.0, %v1627
    %v1629 = vpop.f32.mrf.mxu0
    %1630 = vdwg.mxu0
    %v1631 = vadd.f32 %v1533, %v1601
    %v1632 = vadd.f32 %v1536, %v1604
    %v1633 = vadd.f32 %v1541, %v1609
    %v1634 = vadd.f32 %v1544, %v1612
    %v1635 = vadd.f32 %v1549, %v1617
    %v1636 = vadd.f32 %v1552, %v1620
    %v1637 = vadd.f32 %v1557, %v1625
    %v1638 = vadd.f32 %v1560, %v1628
    %1639 = vrot.lane.b32.xlu0 %v1428, 125
    %v1640 = vpop.permute.xlu0 %1639
    %1642 = vmatprep.subr.bf16.mxu0 0
    %1643 = vmatpush1.bf16.msra.mxu0 0
    %1644 = vmatprep.subr.bf16.mxu0 0
    %1645 = vmatpush1.bf16.msra.mxu0 0
    %1646 = vmatprep.subr.bf16.mxu0 0
    %1647 = vmatpush1.bf16.msra.mxu0 0
    %1648 = vmatprep.subr.bf16.mxu0 0
    %1649 = vmatpush1.bf16.msra.mxu0 0
    %1650 = vmatprep.subr.bf16.mxu0 0
    %1651 = vmatpush1.bf16.msra.mxu0 0
    %1652 = vmatprep.subr.bf16.mxu0 0
    %1653 = vmatpush1.bf16.msra.mxu0 0
    %1654 = vmatprep.subr.bf16.mxu0 0
    %1655 = vmatpush1.bf16.msra.mxu0 0
    %1656 = vmatprep.subr.bf16.mxu0 0
    %1657 = vmatpush1.bf16.msra.mxu0 %v1640
    %1658 = vmatprep.subr.bf16.mxu0 0
    %1659 = vmatpush2.bf16.msra.mxu0 0
    %1660 = vmatprep.subr.bf16.mxu0 0
    %1661 = vmatpush2.bf16.msra.mxu0 0
    %1662 = vmatprep.subr.bf16.mxu0 0
    %1663 = vmatpush2.bf16.msra.mxu0 0
    %1664 = vmatprep.subr.bf16.mxu0 0
    %1665 = vmatpush2.bf16.msra.mxu0 0
    %1666 = vmatprep.subr.bf16.mxu0 0
    %1667 = vmatpush2.bf16.msra.mxu0 0
    %1668 = vmatprep.subr.bf16.mxu0 0
    %1669 = vmatpush2.bf16.msra.mxu0 0
    %1670 = vmatprep.subr.bf16.mxu0 0
    %1671 = vmatpush2.bf16.msra.mxu0 0
    %1672 = vmatprep.subr.bf16.mxu0 0
    %1673 = vmatpush2.bf16.msra.mxu0 0
    %1674 = vmatprep.mubr.bf16.mxu0 0
    %1675 = vmatmul.mubr.bf16.gmra.mxu0 %v470
    %v1676 = vpop.f32.mrf.mxu0
    %v1677 = vadd.f32 0.0, %v1676
    %v1678 = vpop.f32.mrf.mxu0
    %v1679 = vpop.f32.mrf.mxu0
    %v1680 = vadd.f32 0.0, %v1679
    %v1681 = vpop.f32.mrf.mxu0
    %1682 = vmatprep.mubr.bf16.mxu0 0
    %1683 = vmatmul.mubr.bf16.gmra.mxu0 %v473
    %v1684 = vpop.f32.mrf.mxu0
    %v1685 = vadd.f32 0.0, %v1684
    %v1686 = vpop.f32.mrf.mxu0
    %v1687 = vpop.f32.mrf.mxu0
    %v1688 = vadd.f32 0.0, %v1687
    %v1689 = vpop.f32.mrf.mxu0
    %1690 = vmatprep.mubr.bf16.mxu0 0
    %1691 = vmatmul.mubr.bf16.gmra.mxu0 %v476
    %v1692 = vpop.f32.mrf.mxu0
    %v1693 = vadd.f32 0.0, %v1692
    %v1694 = vpop.f32.mrf.mxu0
    %v1695 = vpop.f32.mrf.mxu0
    %v1696 = vadd.f32 0.0, %v1695
    %v1697 = vpop.f32.mrf.mxu0
    %1698 = vmatprep.mubr.bf16.mxu0 0
    %1699 = vmatmul.mubr.bf16.gmra.mxu0 %v479
    %v1700 = vpop.f32.mrf.mxu0
    %v1701 = vadd.f32 0.0, %v1700
    %v1702 = vpop.f32.mrf.mxu0
    %v1703 = vpop.f32.mrf.mxu0
    %v1704 = vadd.f32 0.0, %v1703
    %v1705 = vpop.f32.mrf.mxu0
    %1706 = vdwg.mxu0
    %v1707 = vadd.f32 %v1631, %v1677
    %v1708 = vadd.f32 %v1632, %v1680
    %v1709 = vadd.f32 %v1633, %v1685
    %v1710 = vadd.f32 %v1634, %v1688
    %v1711 = vadd.f32 %v1635, %v1693
    %v1712 = vadd.f32 %v1636, %v1696
    %v1713 = vadd.f32 %v1637, %v1701
    %v1714 = vadd.f32 %v1638, %v1704
    %v1715 = vadd.f32 %v1707, %v557
    %v1716 = vadd.f32 %v1708, %v562
    %v1717 = vadd.f32 %v1709, %v567
    %v1718 = vadd.f32 %v1710, %v572
    %v1719 = vadd.f32 %v1711, %v577
    %v1720 = vadd.f32 %v1712, %v582
    %v1721 = vadd.f32 %v1713, %v587
    %v1722 = vadd.f32 %v1714, %v592
    %v1723 = vmax.f32 %v1715, 0.0
    %v1724 = vmax.f32 %v1716, 0.0
    %v1725 = vmax.f32 %v1717, 0.0
    %v1726 = vmax.f32 %v1718, 0.0
    %v1727 = vmax.f32 %v1719, 0.0
    %v1728 = vmax.f32 %v1720, 0.0
    %v1729 = vmax.f32 %v1721, 0.0
    %v1730 = vmax.f32 %v1722, 0.0
    %1739 = vrot.lane.b32.xlu0 %v1723, 127
    %v1740 = vpop.permute.xlu0 %1739
    %1741 = vrot.lane.b32.xlu0 %v1724, 127
    %v1742 = vpop.permute.xlu0 %1741
    %1743 = vrot.lane.b32.xlu0 %v1725, 127
    %v1744 = vpop.permute.xlu0 %1743
    %1745 = vrot.lane.b32.xlu0 %v1726, 127
    %v1746 = vpop.permute.xlu0 %1745
    %1747 = vrot.lane.b32.xlu0 %v1727, 127
    %v1748 = vpop.permute.xlu0 %1747
    %1749 = vrot.lane.b32.xlu0 %v1728, 127
    %v1750 = vpop.permute.xlu0 %1749
    %1751 = vrot.lane.b32.xlu0 %v1729, 127
    %v1752 = vpop.permute.xlu0 %1751
    %1753 = vrot.lane.b32.xlu0 %v1730, 127
    %v1754 = vpop.permute.xlu0 %1753
    %v1763 = vmax.f32 %v1723, %v1740
    %v1764 = vmax.f32 %v1724, %v1742
    %v1765 = vmax.f32 %v1725, %v1744
    %v1766 = vmax.f32 %v1726, %v1746
    %v1767 = vmax.f32 %v1727, %v1748
    %v1768 = vmax.f32 %v1728, %v1750
    %v1769 = vmax.f32 %v1729, %v1752
    %v1770 = vmax.f32 %v1730, %v1754
    %v1771 = vpack.c.bf16 %v1764, %v1763
    %v1772 = vpack.c.bf16 %v1766, %v1765
    %v1773 = vpack.c.bf16 %v1768, %v1767
    %v1774 = vpack.c.bf16 %v1770, %v1769
    %v1779 = vunpack.c.l.b16 %v1771
    %v1780 = vunpack.c.h.b16 %v1771
    %v1781 = vunpack.c.l.b16 %v1772
    %v1782 = vunpack.c.h.b16 %v1772
    %v1783 = vunpack.c.l.b16 %v1773
    %v1784 = vunpack.c.h.b16 %v1773
    %v1785 = vunpack.c.l.b16 %v1774
    %v1786 = vunpack.c.h.b16 %v1774
    %v1787 = vpack.c.b16 %v1779, %v1779
    %v1788 = vpack.c.b16 %v1780, %v1780
    %v1789 = vpack.c.b16 %v1781, %v1781
    %v1790 = vpack.c.b16 %v1782, %v1782
    %v1791 = vpack.c.b16 %v1783, %v1783
    %v1792 = vpack.c.b16 %v1784, %v1784
    %v1793 = vpack.c.b16 %v1785, %v1785
    %v1794 = vpack.c.b16 %v1786, %v1786
    %s1803 = scalar_lea.vmem [#allocation3], 32
    %1804 = vst.msk [vmem:[%s1803] sm:$0xf] %vm682, %v1787
    %1805 = vst.msk [vmem:[%s1803 + $0x4] sm:$0xf] %vm682, %v1788
    %1806 = vst.msk [vmem:[%s1803 + $0x8] sm:$0xf] %vm682, %v1789
    %1807 = vst.msk [vmem:[%s1803 + $0xc] sm:$0xf] %vm682, %v1790
    %1808 = vst.msk [vmem:[%s1803 + $0x10] sm:$0xf] %vm682, %v1791
    %1809 = vst.msk [vmem:[%s1803 + $0x14] sm:$0xf] %vm682, %v1792
    %1810 = vst.msk [vmem:[%s1803 + $0x18] sm:$0xf] %vm682, %v1793
    %1811 = vst.msk [vmem:[%s1803 + $0x1c] sm:$0xf] %vm682, %v1794
    %1812 = vst.msk [vmem:[%s1803] sm:$0xf] %vm691, 0
    %1813 = vst.msk [vmem:[%s1803 + $0x4] sm:$0xf] %vm691, 0
    %1814 = vst.msk [vmem:[%s1803 + $0x8] sm:$0xf] %vm691, 0
    %1815 = vst.msk [vmem:[%s1803 + $0xc] sm:$0xf] %vm691, 0
    %1816 = vst.msk [vmem:[%s1803 + $0x10] sm:$0xf] %vm691, 0
    %1817 = vst.msk [vmem:[%s1803 + $0x14] sm:$0xf] %vm691, 0
    %1818 = vst.msk [vmem:[%s1803 + $0x18] sm:$0xf] %vm691, 0
    %1819 = vst.msk [vmem:[%s1803 + $0x1c] sm:$0xf] %vm691, 0
    %v1820 = vld [vmem:[%s1803] sm:$0xf]
    %v1821 = vld [vmem:[%s1803 + $0x4] sm:$0xf]
    %v1822 = vld [vmem:[%s1803 + $0x8] sm:$0xf]
    %v1823 = vld [vmem:[%s1803 + $0xc] sm:$0xf]
    %v1824 = vld [vmem:[%s1803 + $0x10] sm:$0xf]
    %v1825 = vld [vmem:[%s1803 + $0x14] sm:$0xf]
    %v1826 = vld [vmem:[%s1803 + $0x18] sm:$0xf]
    %v1827 = vld [vmem:[%s1803 + $0x1c] sm:$0xf]
    %v1836 = vunpack.c.l.b16 %v1820
    %v1837 = vunpack.c.l.b16 %v1821
    %v1838 = vunpack.c.l.b16 %v1822
    %v1839 = vunpack.c.l.b16 %v1823
    %v1840 = vunpack.c.l.b16 %v1824
    %v1841 = vunpack.c.l.b16 %v1825
    %v1842 = vunpack.c.l.b16 %v1826
    %v1843 = vunpack.c.l.b16 %v1827
    %v1844 = vpack.c.b16 %v1837, %v1836
    %v1845 = vpack.c.b16 %v1839, %v1838
    %v1846 = vpack.c.b16 %v1841, %v1840
    %v1847 = vpack.c.b16 %v1843, %v1842
    %1848 = vrot.lane.b32.xlu0 %v1844, 127
    %v1849 = vpop.permute.xlu0 %1848
    %1850 = vrot.lane.b32.xlu0 %v1845, 127
    %v1851 = vpop.permute.xlu0 %1850
    %1852 = vrot.lane.b32.xlu0 %v1846, 127
    %v1853 = vpop.permute.xlu0 %1852
    %1854 = vrot.lane.b32.xlu0 %v1847, 127
    %v1855 = vpop.permute.xlu0 %1854
    %1860 = vmatprep.subr.bf16.mxu0 0
    %1861 = vmatpush1.bf16.msra.mxu0 0
    %1862 = vmatprep.subr.bf16.mxu0 0
    %1863 = vmatpush1.bf16.msra.mxu0 0
    %1864 = vmatprep.subr.bf16.mxu0 0
    %1865 = vmatpush1.bf16.msra.mxu0 0
    %1866 = vmatprep.subr.bf16.mxu0 0
    %1867 = vmatpush1.bf16.msra.mxu0 0
    %1868 = vmatprep.subr.bf16.mxu0 0
    %1869 = vmatpush1.bf16.msra.mxu0 %v1855
    %1870 = vmatprep.subr.bf16.mxu0 0
    %1871 = vmatpush1.bf16.msra.mxu0 %v1853
    %1872 = vmatprep.subr.bf16.mxu0 0
    %1873 = vmatpush1.bf16.msra.mxu0 %v1851
    %1874 = vmatprep.subr.bf16.mxu0 0
    %1875 = vmatpush1.bf16.msra.mxu0 %v1849
    %1876 = vmatprep.subr.bf16.mxu0 0
    %1877 = vmatpush2.bf16.msra.mxu0 0
    %1878 = vmatprep.subr.bf16.mxu0 0
    %1879 = vmatpush2.bf16.msra.mxu0 0
    %1880 = vmatprep.subr.bf16.mxu0 0
    %1881 = vmatpush2.bf16.msra.mxu0 0
    %1882 = vmatprep.subr.bf16.mxu0 0
    %1883 = vmatpush2.bf16.msra.mxu0 0
    %1884 = vmatprep.subr.bf16.mxu0 0
    %1885 = vmatpush2.bf16.msra.mxu0 0
    %1886 = vmatprep.subr.bf16.mxu0 0
    %1887 = vmatpush2.bf16.msra.mxu0 0
    %1888 = vmatprep.subr.bf16.mxu0 0
    %1889 = vmatpush2.bf16.msra.mxu0 0
    %1890 = vmatprep.subr.bf16.mxu0 0
    %1891 = vmatpush2.bf16.msra.mxu0 0
    %1892 = vmatprep.mubr.bf16.mxu0 0
    %1893 = vmatmul.mubr.bf16.gmra.mxu0 %v747
    %v1894 = vpop.f32.mrf.mxu0
    %v1895 = vadd.f32 0.0, %v1894
    %v1896 = vpop.f32.mrf.mxu0
    %v1897 = vpop.f32.mrf.mxu0
    %v1898 = vadd.f32 0.0, %v1897
    %v1899 = vpop.f32.mrf.mxu0
    %1900 = vdwg.mxu0
    %1905 = vmatprep.subr.bf16.mxu0 0
    %1906 = vmatpush1.bf16.msra.mxu0 0
    %1907 = vmatprep.subr.bf16.mxu0 0
    %1908 = vmatpush1.bf16.msra.mxu0 0
    %1909 = vmatprep.subr.bf16.mxu0 0
    %1910 = vmatpush1.bf16.msra.mxu0 0
    %1911 = vmatprep.subr.bf16.mxu0 0
    %1912 = vmatpush1.bf16.msra.mxu0 0
    %1913 = vmatprep.subr.bf16.mxu0 0
    %1914 = vmatpush1.bf16.msra.mxu0 %v1847
    %1915 = vmatprep.subr.bf16.mxu0 0
    %1916 = vmatpush1.bf16.msra.mxu0 %v1846
    %1917 = vmatprep.subr.bf16.mxu0 0
    %1918 = vmatpush1.bf16.msra.mxu0 %v1845
    %1919 = vmatprep.subr.bf16.mxu0 0
    %1920 = vmatpush1.bf16.msra.mxu0 %v1844
    %1921 = vmatprep.subr.bf16.mxu0 0
    %1922 = vmatpush2.bf16.msra.mxu0 0
    %1923 = vmatprep.subr.bf16.mxu0 0
    %1924 = vmatpush2.bf16.msra.mxu0 0
    %1925 = vmatprep.subr.bf16.mxu0 0
    %1926 = vmatpush2.bf16.msra.mxu0 0
    %1927 = vmatprep.subr.bf16.mxu0 0
    %1928 = vmatpush2.bf16.msra.mxu0 0
    %1929 = vmatprep.subr.bf16.mxu0 0
    %1930 = vmatpush2.bf16.msra.mxu0 0
    %1931 = vmatprep.subr.bf16.mxu0 0
    %1932 = vmatpush2.bf16.msra.mxu0 0
    %1933 = vmatprep.subr.bf16.mxu0 0
    %1934 = vmatpush2.bf16.msra.mxu0 0
    %1935 = vmatprep.subr.bf16.mxu0 0
    %1936 = vmatpush2.bf16.msra.mxu0 0
    %1937 = vmatprep.mubr.bf16.mxu0 0
    %1938 = vmatmul.mubr.bf16.gmra.mxu0 %v800
    %v1939 = vpop.f32.mrf.mxu0
    %v1940 = vadd.f32 %v1895, %v1939
    %v1941 = vpop.f32.mrf.mxu0
    %v1942 = vpop.f32.mrf.mxu0
    %v1943 = vadd.f32 %v1898, %v1942
    %v1944 = vpop.f32.mrf.mxu0
    %1945 = vdwg.mxu0
    %1946 = vrot.lane.b32.xlu0 %v1844, 126
    %v1947 = vpop.permute.xlu0 %1946
    %1948 = vrot.lane.b32.xlu0 %v1845, 126
    %v1949 = vpop.permute.xlu0 %1948
    %1950 = vrot.lane.b32.xlu0 %v1846, 126
    %v1951 = vpop.permute.xlu0 %1950
    %1952 = vrot.lane.b32.xlu0 %v1847, 126
    %v1953 = vpop.permute.xlu0 %1952
    %1958 = vmatprep.subr.bf16.mxu0 0
    %1959 = vmatpush1.bf16.msra.mxu0 0
    %1960 = vmatprep.subr.bf16.mxu0 0
    %1961 = vmatpush1.bf16.msra.mxu0 0
    %1962 = vmatprep.subr.bf16.mxu0 0
    %1963 = vmatpush1.bf16.msra.mxu0 0
    %1964 = vmatprep.subr.bf16.mxu0 0
    %1965 = vmatpush1.bf16.msra.mxu0 0
    %1966 = vmatprep.subr.bf16.mxu0 0
    %1967 = vmatpush1.bf16.msra.mxu0 %v1953
    %1968 = vmatprep.subr.bf16.mxu0 0
    %1969 = vmatpush1.bf16.msra.mxu0 %v1951
    %1970 = vmatprep.subr.bf16.mxu0 0
    %1971 = vmatpush1.bf16.msra.mxu0 %v1949
    %1972 = vmatprep.subr.bf16.mxu0 0
    %1973 = vmatpush1.bf16.msra.mxu0 %v1947
    %1974 = vmatprep.subr.bf16.mxu0 0
    %1975 = vmatpush2.bf16.msra.mxu0 0
    %1976 = vmatprep.subr.bf16.mxu0 0
    %1977 = vmatpush2.bf16.msra.mxu0 0
    %1978 = vmatprep.subr.bf16.mxu0 0
    %1979 = vmatpush2.bf16.msra.mxu0 0
    %1980 = vmatprep.subr.bf16.mxu0 0
    %1981 = vmatpush2.bf16.msra.mxu0 0
    %1982 = vmatprep.subr.bf16.mxu0 0
    %1983 = vmatpush2.bf16.msra.mxu0 0
    %1984 = vmatprep.subr.bf16.mxu0 0
    %1985 = vmatpush2.bf16.msra.mxu0 0
    %1986 = vmatprep.subr.bf16.mxu0 0
    %1987 = vmatpush2.bf16.msra.mxu0 0
    %1988 = vmatprep.subr.bf16.mxu0 0
    %1989 = vmatpush2.bf16.msra.mxu0 0
    %1990 = vmatprep.mubr.bf16.mxu0 0
    %1991 = vmatmul.mubr.bf16.gmra.mxu0 %v861
    %v1992 = vpop.f32.mrf.mxu0
    %v1993 = vadd.f32 0.0, %v1992
    %v1994 = vpop.f32.mrf.mxu0
    %v1995 = vpop.f32.mrf.mxu0
    %v1996 = vadd.f32 0.0, %v1995
    %v1997 = vpop.f32.mrf.mxu0
    %1998 = vdwg.mxu0
    %v1999 = vadd.f32 %v1940, %v1993
    %v2000 = vadd.f32 %v1943, %v1996
    %2001 = vrot.lane.b32.xlu0 %v1844, 125
    %v2002 = vpop.permute.xlu0 %2001
    %2003 = vrot.lane.b32.xlu0 %v1845, 125
    %v2004 = vpop.permute.xlu0 %2003
    %2005 = vrot.lane.b32.xlu0 %v1846, 125
    %v2006 = vpop.permute.xlu0 %2005
    %2007 = vrot.lane.b32.xlu0 %v1847, 125
    %v2008 = vpop.permute.xlu0 %2007
    %2013 = vmatprep.subr.bf16.mxu0 0
    %2014 = vmatpush1.bf16.msra.mxu0 0
    %2015 = vmatprep.subr.bf16.mxu0 0
    %2016 = vmatpush1.bf16.msra.mxu0 0
    %2017 = vmatprep.subr.bf16.mxu0 0
    %2018 = vmatpush1.bf16.msra.mxu0 0
    %2019 = vmatprep.subr.bf16.mxu0 0
    %2020 = vmatpush1.bf16.msra.mxu0 0
    %2021 = vmatprep.subr.bf16.mxu0 0
    %2022 = vmatpush1.bf16.msra.mxu0 %v2008
    %2023 = vmatprep.subr.bf16.mxu0 0
    %2024 = vmatpush1.bf16.msra.mxu0 %v2006
    %2025 = vmatprep.subr.bf16.mxu0 0
    %2026 = vmatpush1.bf16.msra.mxu0 %v2004
    %2027 = vmatprep.subr.bf16.mxu0 0
    %2028 = vmatpush1.bf16.msra.mxu0 %v2002
    %2029 = vmatprep.subr.bf16.mxu0 0
    %2030 = vmatpush2.bf16.msra.mxu0 0
    %2031 = vmatprep.subr.bf16.mxu0 0
    %2032 = vmatpush2.bf16.msra.mxu0 0
    %2033 = vmatprep.subr.bf16.mxu0 0
    %2034 = vmatpush2.bf16.msra.mxu0 0
    %2035 = vmatprep.subr.bf16.mxu0 0
    %2036 = vmatpush2.bf16.msra.mxu0 0
    %2037 = vmatprep.subr.bf16.mxu0 0
    %2038 = vmatpush2.bf16.msra.mxu0 0
    %2039 = vmatprep.subr.bf16.mxu0 0
    %2040 = vmatpush2.bf16.msra.mxu0 0
    %2041 = vmatprep.subr.bf16.mxu0 0
    %2042 = vmatpush2.bf16.msra.mxu0 0
    %2043 = vmatprep.subr.bf16.mxu0 0
    %2044 = vmatpush2.bf16.msra.mxu0 0
    %2045 = vmatprep.mubr.bf16.mxu0 0
    %2046 = vmatmul.mubr.bf16.gmra.mxu0 %v924
    %v2047 = vpop.f32.mrf.mxu0
    %v2048 = vadd.f32 0.0, %v2047
    %v2049 = vpop.f32.mrf.mxu0
    %v2050 = vpop.f32.mrf.mxu0
    %v2051 = vadd.f32 0.0, %v2050
    %v2052 = vpop.f32.mrf.mxu0
    %2053 = vdwg.mxu0
    %v2054 = vadd.f32 %v1999, %v2048
    %v2055 = vadd.f32 %v2000, %v2051
    %2056 = vrot.lane.b32.xlu0 %v1844, 124
    %v2057 = vpop.permute.xlu0 %2056
    %2058 = vrot.lane.b32.xlu0 %v1845, 124
    %v2059 = vpop.permute.xlu0 %2058
    %2060 = vrot.lane.b32.xlu0 %v1846, 124
    %v2061 = vpop.permute.xlu0 %2060
    %2062 = vrot.lane.b32.xlu0 %v1847, 124
    %v2063 = vpop.permute.xlu0 %2062
    %2068 = vmatprep.subr.bf16.mxu0 0
    %2069 = vmatpush1.bf16.msra.mxu0 0
    %2070 = vmatprep.subr.bf16.mxu0 0
    %2071 = vmatpush1.bf16.msra.mxu0 0
    %2072 = vmatprep.subr.bf16.mxu0 0
    %2073 = vmatpush1.bf16.msra.mxu0 0
    %2074 = vmatprep.subr.bf16.mxu0 0
    %2075 = vmatpush1.bf16.msra.mxu0 0
    %2076 = vmatprep.subr.bf16.mxu0 0
    %2077 = vmatpush1.bf16.msra.mxu0 %v2063
    %2078 = vmatprep.subr.bf16.mxu0 0
    %2079 = vmatpush1.bf16.msra.mxu0 %v2061
    %2080 = vmatprep.subr.bf16.mxu0 0
    %2081 = vmatpush1.bf16.msra.mxu0 %v2059
    %2082 = vmatprep.subr.bf16.mxu0 0
    %2083 = vmatpush1.bf16.msra.mxu0 %v2057
    %2084 = vmatprep.subr.bf16.mxu0 0
    %2085 = vmatpush2.bf16.msra.mxu0 0
    %2086 = vmatprep.subr.bf16.mxu0 0
    %2087 = vmatpush2.bf16.msra.mxu0 0
    %2088 = vmatprep.subr.bf16.mxu0 0
    %2089 = vmatpush2.bf16.msra.mxu0 0
    %2090 = vmatprep.subr.bf16.mxu0 0
    %2091 = vmatpush2.bf16.msra.mxu0 0
    %2092 = vmatprep.subr.bf16.mxu0 0
    %2093 = vmatpush2.bf16.msra.mxu0 0
    %2094 = vmatprep.subr.bf16.mxu0 0
    %2095 = vmatpush2.bf16.msra.mxu0 0
    %2096 = vmatprep.subr.bf16.mxu0 0
    %2097 = vmatpush2.bf16.msra.mxu0 0
    %2098 = vmatprep.subr.bf16.mxu0 0
    %2099 = vmatpush2.bf16.msra.mxu0 0
    %2100 = vmatprep.mubr.bf16.mxu0 0
    %2101 = vmatmul.mubr.bf16.gmra.mxu0 %v987
    %v2102 = vpop.f32.mrf.mxu0
    %v2103 = vadd.f32 0.0, %v2102
    %v2104 = vpop.f32.mrf.mxu0
    %v2105 = vpop.f32.mrf.mxu0
    %v2106 = vadd.f32 0.0, %v2105
    %v2107 = vpop.f32.mrf.mxu0
    %2108 = vdwg.mxu0
    %v2109 = vadd.f32 %v2054, %v2103
    %v2110 = vadd.f32 %v2055, %v2106
    %v2111 = vadd.f32 %v2109, %v1035
    %v2112 = vadd.f32 %v2110, %v1040
    %v2113 = vmax.f32 %v2111, 0.0
    %v2114 = vmax.f32 %v2112, 0.0
    %s2115 = scalar_lea.vmem [#allocation4], 8
    %2116 = vst.msk [vmem:[%s2115] sm:$0xf] %vm1067, %v1057
    %2117 = vst.msk [vmem:[%s2115 + $0x4] sm:$0xf] %vm1067, %v1064
    %v2118 = vpack.c.bf16 %v2114, %v2113
    %v2120 = vunpack.c.l.b16 %v2118
    %v2121 = vunpack.c.h.b16 %v2118
    %v2122 = vpack.c.b16 %v2120, %v2120
    %v2123 = vpack.c.b16 %v2121, %v2121
    %2124 = vrot.lane.b32.xlu0 %v2122, 2
    %v2125 = vpop.permute.xlu0 %2124
    %2126 = vrot.lane.b32.xlu0 %v2123, 2
    %v2127 = vpop.permute.xlu0 %2126
    %2130 = vst.msk [vmem:[%s2115] sm:$0xf] %vm1082, %v2125
    %2131 = vst.msk [vmem:[%s2115 + $0x4] sm:$0xf] %vm1082, %v2127
    %2132 = vst.msk [vmem:[%s2115] sm:$0xf] %vm1085, %v1057
    %2133 = vst.msk [vmem:[%s2115 + $0x4] sm:$0xf] %vm1085, %v1064
    %v2134 = vld [vmem:[%s2115] sm:$0xf]
    %v2135 = vld [vmem:[%s2115 + $0x4] sm:$0xf]
    %v2138 = vunpack.c.l.b16 %v2134
    %v2139 = vunpack.c.l.b16 %v2135
    %v2140 = vpack.c.b16 %v2139, %v2138
    %2141 = vrot.lane.b32.xlu0 %v2140, 127
    %v2142 = vpop.permute.xlu0 %2141
    %2144 = vmatprep.subr.bf16.mxu0 0
    %2145 = vmatpush1.bf16.msra.mxu0 0
    %2146 = vmatprep.subr.bf16.mxu0 0
    %2147 = vmatpush1.bf16.msra.mxu0 0
    %2148 = vmatprep.subr.bf16.mxu0 0
    %2149 = vmatpush1.bf16.msra.mxu0 0
    %2150 = vmatprep.subr.bf16.mxu0 0
    %2151 = vmatpush1.bf16.msra.mxu0 0
    %2152 = vmatprep.subr.bf16.mxu0 0
    %2153 = vmatpush1.bf16.msra.mxu0 0
    %2154 = vmatprep.subr.bf16.mxu0 0
    %2155 = vmatpush1.bf16.msra.mxu0 0
    %2156 = vmatprep.subr.bf16.mxu0 0
    %2157 = vmatpush1.bf16.msra.mxu0 0
    %2158 = vmatprep.subr.bf16.mxu0 0
    %2159 = vmatpush1.bf16.msra.mxu0 %v2142
    %2160 = vmatprep.subr.bf16.mxu0 0
    %2161 = vmatpush2.bf16.msra.mxu0 0
    %2162 = vmatprep.subr.bf16.mxu0 0
    %2163 = vmatpush2.bf16.msra.mxu0 0
    %2164 = vmatprep.subr.bf16.mxu0 0
    %2165 = vmatpush2.bf16.msra.mxu0 0
    %2166 = vmatprep.subr.bf16.mxu0 0
    %2167 = vmatpush2.bf16.msra.mxu0 0
    %2168 = vmatprep.subr.bf16.mxu0 0
    %2169 = vmatpush2.bf16.msra.mxu0 0
    %2170 = vmatprep.subr.bf16.mxu0 0
    %2171 = vmatpush2.bf16.msra.mxu0 0
    %2172 = vmatprep.subr.bf16.mxu0 0
    %2173 = vmatpush2.bf16.msra.mxu0 0
    %2174 = vmatprep.subr.bf16.mxu0 0
    %2175 = vmatpush2.bf16.msra.mxu0 0
    %2176 = vmatprep.mubr.bf16.mxu0 0
    %2177 = vmatmul.mubr.bf16.gmra.mxu0 %v1104
    %v2178 = vpop.f32.mrf.mxu0
    %v2179 = vadd.f32 0.0, %v2178
    %v2180 = vpop.f32.mrf.mxu0
    %v2181 = vpop.f32.mrf.mxu0
    %v2182 = vadd.f32 0.0, %v2181
    %v2183 = vpop.f32.mrf.mxu0
    %2184 = vdwg.mxu0
    %2186 = vmatprep.subr.bf16.mxu0 0
    %2187 = vmatpush1.bf16.msra.mxu0 0
    %2188 = vmatprep.subr.bf16.mxu0 0
    %2189 = vmatpush1.bf16.msra.mxu0 0
    %2190 = vmatprep.subr.bf16.mxu0 0
    %2191 = vmatpush1.bf16.msra.mxu0 0
    %2192 = vmatprep.subr.bf16.mxu0 0
    %2193 = vmatpush1.bf16.msra.mxu0 0
    %2194 = vmatprep.subr.bf16.mxu0 0
    %2195 = vmatpush1.bf16.msra.mxu0 0
    %2196 = vmatprep.subr.bf16.mxu0 0
    %2197 = vmatpush1.bf16.msra.mxu0 0
    %2198 = vmatprep.subr.bf16.mxu0 0
    %2199 = vmatpush1.bf16.msra.mxu0 0
    %2200 = vmatprep.subr.bf16.mxu0 0
    %2201 = vmatpush1.bf16.msra.mxu0 %v2140
    %2202 = vmatprep.subr.bf16.mxu0 0
    %2203 = vmatpush2.bf16.msra.mxu0 0
    %2204 = vmatprep.subr.bf16.mxu0 0
    %2205 = vmatpush2.bf16.msra.mxu0 0
    %2206 = vmatprep.subr.bf16.mxu0 0
    %2207 = vmatpush2.bf16.msra.mxu0 0
    %2208 = vmatprep.subr.bf16.mxu0 0
    %2209 = vmatpush2.bf16.msra.mxu0 0
    %2210 = vmatprep.subr.bf16.mxu0 0
    %2211 = vmatpush2.bf16.msra.mxu0 0
    %2212 = vmatprep.subr.bf16.mxu0 0
    %2213 = vmatpush2.bf16.msra.mxu0 0
    %2214 = vmatprep.subr.bf16.mxu0 0
    %2215 = vmatpush2.bf16.msra.mxu0 0
    %2216 = vmatprep.subr.bf16.mxu0 0
    %2217 = vmatpush2.bf16.msra.mxu0 0
    %2218 = vmatprep.mubr.bf16.mxu0 0
    %2219 = vmatmul.mubr.bf16.gmra.mxu0 %v1154
    %v2220 = vpop.f32.mrf.mxu0
    %v2221 = vadd.f32 %v2179, %v2220
    %v2222 = vpop.f32.mrf.mxu0
    %v2223 = vpop.f32.mrf.mxu0
    %v2224 = vadd.f32 %v2182, %v2223
    %v2225 = vpop.f32.mrf.mxu0
    %2226 = vdwg.mxu0
    %2227 = vrot.lane.b32.xlu0 %v2140, 126
    %v2228 = vpop.permute.xlu0 %2227
    %2230 = vmatprep.subr.bf16.mxu0 0
    %2231 = vmatpush1.bf16.msra.mxu0 0
    %2232 = vmatprep.subr.bf16.mxu0 0
    %2233 = vmatpush1.bf16.msra.mxu0 0
    %2234 = vmatprep.subr.bf16.mxu0 0
    %2235 = vmatpush1.bf16.msra.mxu0 0
    %2236 = vmatprep.subr.bf16.mxu0 0
    %2237 = vmatpush1.bf16.msra.mxu0 0
    %2238 = vmatprep.subr.bf16.mxu0 0
    %2239 = vmatpush1.bf16.msra.mxu0 0
    %2240 = vmatprep.subr.bf16.mxu0 0
    %2241 = vmatpush1.bf16.msra.mxu0 0
    %2242 = vmatprep.subr.bf16.mxu0 0
    %2243 = vmatpush1.bf16.msra.mxu0 0
    %2244 = vmatprep.subr.bf16.mxu0 0
    %2245 = vmatpush1.bf16.msra.mxu0 %v2228
    %2246 = vmatprep.subr.bf16.mxu0 0
    %2247 = vmatpush2.bf16.msra.mxu0 0
    %2248 = vmatprep.subr.bf16.mxu0 0
    %2249 = vmatpush2.bf16.msra.mxu0 0
    %2250 = vmatprep.subr.bf16.mxu0 0
    %2251 = vmatpush2.bf16.msra.mxu0 0
    %2252 = vmatprep.subr.bf16.mxu0 0
    %2253 = vmatpush2.bf16.msra.mxu0 0
    %2254 = vmatprep.subr.bf16.mxu0 0
    %2255 = vmatpush2.bf16.msra.mxu0 0
    %2256 = vmatprep.subr.bf16.mxu0 0
    %2257 = vmatpush2.bf16.msra.mxu0 0
    %2258 = vmatprep.subr.bf16.mxu0 0
    %2259 = vmatpush2.bf16.msra.mxu0 0
    %2260 = vmatprep.subr.bf16.mxu0 0
    %2261 = vmatpush2.bf16.msra.mxu0 0
    %2262 = vmatprep.mubr.bf16.mxu0 0
    %2263 = vmatmul.mubr.bf16.gmra.mxu0 %v1206
    %v2264 = vpop.f32.mrf.mxu0
    %v2265 = vadd.f32 0.0, %v2264
    %v2266 = vpop.f32.mrf.mxu0
    %v2267 = vpop.f32.mrf.mxu0
    %v2268 = vadd.f32 0.0, %v2267
    %v2269 = vpop.f32.mrf.mxu0
    %2270 = vdwg.mxu0
    %v2271 = vadd.f32 %v2221, %v2265
    %v2272 = vadd.f32 %v2224, %v2268
    %2273 = vrot.lane.b32.xlu0 %v2140, 125
    %v2274 = vpop.permute.xlu0 %2273
    %2276 = vmatprep.subr.bf16.mxu0 0
    %2277 = vmatpush1.bf16.msra.mxu0 0
    %2278 = vmatprep.subr.bf16.mxu0 0
    %2279 = vmatpush1.bf16.msra.mxu0 0
    %2280 = vmatprep.subr.bf16.mxu0 0
    %2281 = vmatpush1.bf16.msra.mxu0 0
    %2282 = vmatprep.subr.bf16.mxu0 0
    %2283 = vmatpush1.bf16.msra.mxu0 0
    %2284 = vmatprep.subr.bf16.mxu0 0
    %2285 = vmatpush1.bf16.msra.mxu0 0
    %2286 = vmatprep.subr.bf16.mxu0 0
    %2287 = vmatpush1.bf16.msra.mxu0 0
    %2288 = vmatprep.subr.bf16.mxu0 0
    %2289 = vmatpush1.bf16.msra.mxu0 0
    %2290 = vmatprep.subr.bf16.mxu0 0
    %2291 = vmatpush1.bf16.msra.mxu0 %v2274
    %2292 = vmatprep.subr.bf16.mxu0 0
    %2293 = vmatpush2.bf16.msra.mxu0 0
    %2294 = vmatprep.subr.bf16.mxu0 0
    %2295 = vmatpush2.bf16.msra.mxu0 0
    %2296 = vmatprep.subr.bf16.mxu0 0
    %2297 = vmatpush2.bf16.msra.mxu0 0
    %2298 = vmatprep.subr.bf16.mxu0 0
    %2299 = vmatpush2.bf16.msra.mxu0 0
    %2300 = vmatprep.subr.bf16.mxu0 0
    %2301 = vmatpush2.bf16.msra.mxu0 0
    %2302 = vmatprep.subr.bf16.mxu0 0
    %2303 = vmatpush2.bf16.msra.mxu0 0
    %2304 = vmatprep.subr.bf16.mxu0 0
    %2305 = vmatpush2.bf16.msra.mxu0 0
    %2306 = vmatprep.subr.bf16.mxu0 0
    %2307 = vmatpush2.bf16.msra.mxu0 0
    %2308 = vmatprep.mubr.bf16.mxu0 0
    %2309 = vmatmul.mubr.bf16.gmra.mxu0 %v1260
    %v2310 = vpop.f32.mrf.mxu0
    %v2311 = vadd.f32 0.0, %v2310
    %v2312 = vpop.f32.mrf.mxu0
    %v2313 = vpop.f32.mrf.mxu0
    %v2314 = vadd.f32 0.0, %v2313
    %v2315 = vpop.f32.mrf.mxu0
    %2316 = vdwg.mxu0
    %v2317 = vadd.f32 %v2271, %v2311
    %v2318 = vadd.f32 %v2272, %v2314
    %2319 = vrot.lane.b32.xlu0 %v2140, 124
    %v2320 = vpop.permute.xlu0 %2319
    %2322 = vmatprep.subr.bf16.mxu0 0
    %2323 = vmatpush1.bf16.msra.mxu0 0
    %2324 = vmatprep.subr.bf16.mxu0 0
    %2325 = vmatpush1.bf16.msra.mxu0 0
    %2326 = vmatprep.subr.bf16.mxu0 0
    %2327 = vmatpush1.bf16.msra.mxu0 0
    %2328 = vmatprep.subr.bf16.mxu0 0
    %2329 = vmatpush1.bf16.msra.mxu0 0
    %2330 = vmatprep.subr.bf16.mxu0 0
    %2331 = vmatpush1.bf16.msra.mxu0 0
    %2332 = vmatprep.subr.bf16.mxu0 0
    %2333 = vmatpush1.bf16.msra.mxu0 0
    %2334 = vmatprep.subr.bf16.mxu0 0
    %2335 = vmatpush1.bf16.msra.mxu0 0
    %2336 = vmatprep.subr.bf16.mxu0 0
    %2337 = vmatpush1.bf16.msra.mxu0 %v2320
    %2338 = vmatprep.subr.bf16.mxu0 0
    %2339 = vmatpush2.bf16.msra.mxu0 0
    %2340 = vmatprep.subr.bf16.mxu0 0
    %2341 = vmatpush2.bf16.msra.mxu0 0
    %2342 = vmatprep.subr.bf16.mxu0 0
    %2343 = vmatpush2.bf16.msra.mxu0 0
    %2344 = vmatprep.subr.bf16.mxu0 0
    %2345 = vmatpush2.bf16.msra.mxu0 0
    %2346 = vmatprep.subr.bf16.mxu0 0
    %2347 = vmatpush2.bf16.msra.mxu0 0
    %2348 = vmatprep.subr.bf16.mxu0 0
    %2349 = vmatpush2.bf16.msra.mxu0 0
    %2350 = vmatprep.subr.bf16.mxu0 0
    %2351 = vmatpush2.bf16.msra.mxu0 0
    %2352 = vmatprep.subr.bf16.mxu0 0
    %2353 = vmatpush2.bf16.msra.mxu0 0
    %2354 = vmatprep.mubr.bf16.mxu0 0
    %2355 = vmatmul.mubr.bf16.gmra.mxu0 %v1314
    %v2356 = vpop.f32.mrf.mxu0
    %v2357 = vadd.f32 0.0, %v2356
    %v2358 = vpop.f32.mrf.mxu0
    %v2359 = vpop.f32.mrf.mxu0
    %v2360 = vadd.f32 0.0, %v2359
    %v2361 = vpop.f32.mrf.mxu0
    %2362 = vdwg.mxu0
    %v2363 = vadd.f32 %v2317, %v2357
    %v2364 = vadd.f32 %v2318, %v2360
    %v2365 = vadd.f32 %v2363, %v1362
    %v2366 = vadd.f32 %v2364, %v1367
    %v2367 = vmax.f32 %v2365, 0.0
    %v2368 = vmax.f32 %v2366, 0.0
    %s2369 = scalar_lea.vmem [#allocation5], 16
    %2370 = vst.msk [vmem:[%s2369] sm:$0xff] %vm1383, %v1376
    %2371 = vst.msk [vmem:[%s2369 + $0x8] sm:$0xff] %vm1383, %v1381
    %2374 = vrot.lane.b32.xlu0 %v2367, 2
    %v2375 = vpop.permute.xlu0 %2374
    %2376 = vrot.lane.b32.xlu0 %v2368, 2
    %v2377 = vpop.permute.xlu0 %2376
    %2380 = vst.msk [vmem:[%s2369] sm:$0xff] %vm1394, %v2375
    %2381 = vst.msk [vmem:[%s2369 + $0x8] sm:$0xff] %vm1394, %v2377
    %2382 = vst.msk [vmem:[%s2369] sm:$0xff] %vm1397, %v1376
    %2383 = vst.msk [vmem:[%s2369 + $0x8] sm:$0xff] %vm1397, %v1381
    // Predicated region
    $region34: #{encoder_forward.1} parent=1 // pred_check
      _
    $region35: #{encoder_forward.1} parent=1 // pred_check_branch
      %2385 = sbr.rel (0) target = $region37
    $region36: #{encoder_forward.1} parent=1 // pred_region
      %s2387 = ssub.s32 512, 512
      %2388 = vsyncadd [#allocation6], %s2387
      %s2389 = sshll.u32 [#allocation5], 4
      %s2390 = int_to_ptr.vmem [resolvable:$true] %s2389
      %2395 = dma.vmem_to_hbm [thread:$0]  %s2390, 512, %s8, [#allocation6], 128, 128, 8
    $region37: #{encoder_forward.1} parent=1 // pred_fallthru
      _
    // Predicated region
    $region38: #{encoder_forward.1} parent=1 // pred_check
      _
    $region39: #{encoder_forward.1} parent=1 // pred_check_branch
      %2397 = sbr.rel (0) target = $region41
    $region40: #{encoder_forward.1} parent=1 // pred_region
      %2398 = dma.done [#allocation6], 512
    $region41: #{encoder_forward.1} parent=1 // pred_fallthru
      _
    %2399 = vsyncpa [#allocation6], 1

</llo_original>
